<compile_context>
chip_gen: v7x
topology: tpu7x:2x2x1
jax: 0.10.0
libtpu: 0.0.40
codegen_flags: <defaults>
</compile_context>

<pallas_src>
import functools
import math

import jax
import jax.numpy as jnp
from jax.experimental import pallas as pl
from jax.experimental.pallas import tpu as pltpu


# ------------------------------ tiling helpers ------------------------------

_TM, _TN, _TK = 512, 1024, 2048           # tile targets (fit v7x 64 MiB VMEM)
_VMEM_LIMIT = 48 * 1024 * 1024            # explicit scoped-VMEM request


def _round_up(x, m):
    return (x + m - 1) // m * m


def _tile_n(dim, target=_TN, align=128):
    return _round_up(dim, align) if dim <= target else target


def _tile_k(dim, target=_TK, align=128):
    return _round_up(dim, align) if dim <= target else target


def _tile_m(m, target=_TM, align=8):
    """Largest M tile <= target that divides M exactly (avoids pad/slice)."""
    if m <= target:
        return _round_up(m, align)
    for t in range(target, align - 1, -align):
        if m % t == 0:
            return t
    return target                          # fallback: pad/slice (rare)


def _pad2(a, rows, cols):
    r, c = a.shape
    if r == rows and c == cols:
        return a
    return jnp.pad(a, ((0, rows - r), (0, cols - c)))


def _gelu(x):
    # TODO(synk): torchvision nn.GELU() uses the exact erf formulation; tanh
    # approximation used here (~1e-3 relative difference) since erf lowering on
    # Mosaic TPU is not guaranteed.
    c = 0.7978845608028654  # sqrt(2/pi)
    return 0.5 * x * (1.0 + jnp.tanh(c * (x + 0.044715 * x * x * x)))


def _heads_per_step(num_heads, head_dim):
    """Largest head group (<=8) dividing num_heads with 128-aligned lane width."""
    for hps in range(min(8, num_heads), 0, -1):
        if num_heads % hps == 0 and (hps * head_dim) % 128 == 0:
            return hps
    return num_heads       # single group: block spans the full 3D (always legal)


def _qkv_group_perm(D, num_heads, hps):
    """Column permutation of the fused QKV projection.

    torchvision in_proj layout [q(all heads) | k | v]  ->  per head-group g:
    [q_{g} | k_{g} | v_{g}], so the attention kernel reads 128-lane-aligned
    q/k/v slabs for its head group without cross-lane relayouts of the load.
    """
    Dh = D // num_heads
    perm = []
    for g in range(num_heads // hps):
        for t in range(3):                       # q, k, v
            for hh in range(hps):
                base = t * D + (g * hps + hh) * Dh
                perm.extend(range(base, base + Dh))
    return jnp.asarray(perm, dtype=jnp.int32)


# ----------------------------- Pallas kernels ------------------------------

def _matmul_kernel(x_ref, w_ref, b_ref, *rest, activation, has_residual):
    """Single-K-tile matmul; bias/GELU/residual fused in the epilogue."""
    if has_residual:
        r_ref, o_ref = rest
    else:
        (o_ref,) = rest
    acc = jnp.dot(x_ref[...].astype(jnp.bfloat16),
                  w_ref[...].astype(jnp.bfloat16),
                  preferred_element_type=jnp.float32)
    acc = acc + b_ref[...].astype(jnp.float32)
    if activation == "gelu":
        acc = _gelu(acc)
    if has_residual:
        acc = acc + r_ref[...].astype(jnp.float32)
    o_ref[...] = acc.astype(o_ref.dtype)


def _matmul_acc_kernel(x_ref, w_ref, b_ref, *rest, activation, has_residual):
    """K-tiled matmul with f32 VMEM accumulator (only used when K > one tile)."""
    if has_residual:
        r_ref, o_ref, acc_ref = rest
    else:
        o_ref, acc_ref = rest
    k = pl.program_id(2)

    @pl.when(k == 0)
    def _():
        acc_ref[...] = jnp.zeros_like(acc_ref)

    acc_ref[...] += jnp.dot(x_ref[...].astype(jnp.bfloat16),
                            w_ref[...].astype(jnp.bfloat16),
                            preferred_element_type=jnp.float32)

    @pl.when(k == pl.num_programs(2) - 1)
    def _():
        acc = acc_ref[...] + b_ref[...].astype(jnp.float32)
        if activation == "gelu":
            acc = _gelu(acc)
        if has_residual:
            acc = acc + r_ref[...].astype(jnp.float32)
        o_ref[...] = acc.astype(o_ref.dtype)


def _ln_matmul_kernel(x_ref, g_ref, bln_ref, w_ref, b_ref, o_ref, y_ref,
                      *, activation, eps):
    """LayerNorm fused into the consuming matmul (full K).

    The normalized (tm, K) block is computed once per row-tile (at the first N
    tile) into a bf16 VMEM scratch and reused across all N tiles.
    """
    @pl.when(pl.program_id(1) == 0)
    def _():
        x = x_ref[...].astype(jnp.float32)
        mean = jnp.mean(x, axis=-1, keepdims=True)
        cent = x - mean
        var = jnp.mean(cent * cent, axis=-1, keepdims=True)
        y = cent * jax.lax.rsqrt(var + eps)
        y = y * g_ref[...].astype(jnp.float32) + bln_ref[...].astype(jnp.float32)
        y_ref[...] = y.astype(y_ref.dtype)

    acc = jnp.dot(y_ref[...], w_ref[...].astype(jnp.bfloat16),
                  preferred_element_type=jnp.float32)
    acc = acc + b_ref[...].astype(jnp.float32)
    if activation == "gelu":
        acc = _gelu(acc)
    o_ref[...] = acc.astype(o_ref.dtype)


def _attention_kernel(qkv_ref, o_ref, *, hps, head_dim, s_real, scale):
    """One (batch element, head group) per grid step; QKV consumed fused.

    qkv block layout (per group): [q_0..q_{hps-1} | k_... | v_...], each slab
    128-lane aligned.  Heads are processed in pairs; each pair's (S, 2*Dh)
    result is written immediately (no full-width concat, bounded vreg usage).
    """
    qkv = qkv_ref[0]                                  # (S_pad, 3*hps*Dh)
    s_pad = qkv.shape[0]
    hd = hps * head_dim
    q_all = qkv[:, 0:hd].astype(jnp.bfloat16)
    k_all = qkv[:, hd:2 * hd].astype(jnp.bfloat16)
    v_all = qkv[:, 2 * hd:3 * hd].astype(jnp.bfloat16)

    # Mask key columns belonging to the once-padded sequence tail.
    kmask = jax.lax.broadcasted_iota(jnp.int32, (s_pad, s_pad), 1) < s_real

    def one_head(h):
        lo = h * head_dim
        q = q_all[:, lo:lo + head_dim]
        k = k_all[:, lo:lo + head_dim]
        v = v_all[:, lo:lo + head_dim]
        s = jax.lax.dot_general(q, k, (((1,), (1,)), ((), ())),
                                preferred_element_type=jnp.float32) * scale
        s = jnp.where(kmask, s, -1e30)
        s = s - jnp.max(s, axis=-1, keepdims=True)
        p = jnp.exp(s)
        p = p * pl.reciprocal(jnp.sum(p, axis=-1, keepdims=True), approx=True)
        return jnp.dot(p.astype(jnp.bfloat16), v,
                       preferred_element_type=jnp.float32)

    n_pairs, rem = hps // 2, hps % 2
    for pair in range(n_pairs):
        h0 = 2 * pair
        o = jnp.concatenate([one_head(h0), one_head(h0 + 1)], axis=-1)
        o_ref[0, :, h0 * head_dim:(h0 + 2) * head_dim] = o.astype(o_ref.dtype)
    if rem:
        h0 = hps - 1
        o_ref[0, :, h0 * head_dim:(h0 + 1) * head_dim] = \
            one_head(h0).astype(o_ref.dtype)


# ------------------------------ kernel wrappers ------------------------------

def linear(x, w, b, residual=None, activation=None, out_dtype=None):
    """o = act(x @ w + b) (+ residual), K-tiled only when K exceeds one tile."""
    M, K = x.shape
    N = w.shape[1]
    out_dtype = out_dtype or x.dtype
    has_res = residual is not None
    tm, tn, tk = _tile_m(M), _tile_n(N), _tile_k(K)
    Mp, Np, Kp = _round_up(M, tm), _round_up(N, tn), _round_up(K, tk)
    kt = Kp // tk

    xp = _pad2(x, Mp, Kp)
    wp = _pad2(w, Kp, Np)
    bp = _pad2(b.reshape(1, N), 1, Np)
    args = [xp, wp, bp]

    cost = pl.CostEstimate(
        flops=2 * Mp * Np * Kp,
        transcendentals=Mp * Np if activation == "gelu" else 0,
        bytes_accessed=2 * (Mp * Kp + Kp * Np + Mp * Np * (2 if has_res else 1)))

    if kt == 1:
        in_specs = [
            pl.BlockSpec((tm, tk), lambda i, j: (i, 0)),
            pl.BlockSpec((tk, tn), lambda i, j: (0, j)),
            pl.BlockSpec((1, tn), lambda i, j: (0, j)),
        ]
        if has_res:
            args.append(_pad2(residual, Mp, Np))
            in_specs.append(pl.BlockSpec((tm, tn), lambda i, j: (i, j)))
        out = pl.pallas_call(
            functools.partial(_matmul_kernel, activation=activation,
                              has_residual=has_res),
            grid=(Mp // tm, Np // tn),
            in_specs=in_specs,
            out_specs=pl.BlockSpec((tm, tn), lambda i, j: (i, j)),
            out_shape=jax.ShapeDtypeStruct((Mp, Np), out_dtype),
            compiler_params=pltpu.CompilerParams(
                dimension_semantics=("parallel", "parallel"),
                vmem_limit_bytes=_VMEM_LIMIT),
            cost_estimate=cost,
        )(*args)
    else:
        in_specs = [
            pl.BlockSpec((tm, tk), lambda i, j, k: (i, k)),
            pl.BlockSpec((tk, tn), lambda i, j, k: (k, j)),
            pl.BlockSpec((1, tn), lambda i, j, k: (0, j)),
        ]
        if has_res:
            args.append(_pad2(residual, Mp, Np))
            in_specs.append(pl.BlockSpec((tm, tn), lambda i, j, k: (i, j)))
        out = pl.pallas_call(
            functools.partial(_matmul_acc_kernel, activation=activation,
                              has_residual=has_res),
            grid=(Mp // tm, Np // tn, kt),
            in_specs=in_specs,
            out_specs=pl.BlockSpec((tm, tn), lambda i, j, k: (i, j)),
            out_shape=jax.ShapeDtypeStruct((Mp, Np), out_dtype),
            scratch_shapes=[pltpu.VMEM((tm, tn), jnp.float32)],
            compiler_params=pltpu.CompilerParams(
                dimension_semantics=("parallel", "parallel", "arbitrary"),
                vmem_limit_bytes=_VMEM_LIMIT),
            cost_estimate=cost,
        )(*args)
    return out[:M, :N] if (Mp != M or Np != N) else out


def ln_linear(x, gamma, beta, w, b, activation=None, eps=1e-6, out_dtype=None):
    """o = act(LayerNorm(x) @ w + b), LN fused into the matmul (full K)."""
    M, K = x.shape
    N = w.shape[1]
    out_dtype = out_dtype or x.dtype
    tm, tn = _tile_m(M), _tile_n(N)
    Mp, Np = _round_up(M, tm), _round_up(N, tn)

    xp = _pad2(x, Mp, K)                 # K never padded (row-LN needs full K)
    wp = _pad2(w, K, Np)
    bp = _pad2(b.reshape(1, N), 1, Np)

    out = pl.pallas_call(
        functools.partial(_ln_matmul_kernel, activation=activation, eps=eps),
        grid=(Mp // tm, Np // tn),
        in_specs=[
            pl.BlockSpec((tm, K), lambda i, j: (i, 0)),
            pl.BlockSpec((1, K), lambda i, j: (0, 0)),
            pl.BlockSpec((1, K), lambda i, j: (0, 0)),
            pl.BlockSpec((K, tn), lambda i, j: (0, j)),
            pl.BlockSpec((1, tn), lambda i, j: (0, j)),
        ],
        out_specs=pl.BlockSpec((tm, tn), lambda i, j: (i, j)),
        out_shape=jax.ShapeDtypeStruct((Mp, Np), out_dtype),
        scratch_shapes=[pltpu.VMEM((tm, K), jnp.bfloat16)],
        compiler_params=pltpu.CompilerParams(
            # j is "arbitrary": the LN scratch computed at j==0 is reused
            # across all N tiles of the same row tile on the same core.
            dimension_semantics=("parallel", "arbitrary"),
            vmem_limit_bytes=_VMEM_LIMIT),
        cost_estimate=pl.CostEstimate(
            flops=2 * Mp * Np * K,
            transcendentals=Mp * Np if activation == "gelu" else Mp,
            bytes_accessed=2 * (Mp * K + K * Np + Mp * Np)),
    )(xp, gamma.reshape(1, K), beta.reshape(1, K), wp, bp)
    return out[:M, :N] if (Mp != M or Np != N) else out


def attention(qkv, B, S_pad, S_real, D, num_heads, hps):
    """qkv: (B*S_pad, 3D) fused projection (group-permuted columns).

    Returns (B*S_pad, D) bf16 with heads concatenated in natural order.
    """
    Dh = D // num_heads
    scale = 1.0 / math.sqrt(Dh)
    G = num_heads // hps
    qkv3 = qkv.reshape(B, S_pad, 3 * D)
    out = pl.pallas_call(
        functools.partial(_attention_kernel, hps=hps, head_dim=Dh,
                          s_real=S_real, scale=scale),
        grid=(B, G),
        in_specs=[pl.BlockSpec((1, S_pad, 3 * hps * Dh), lambda b, g: (b, 0, g))],
        out_specs=pl.BlockSpec((1, S_pad, hps * Dh), lambda b, g: (b, 0, g)),
        out_shape=jax.ShapeDtypeStruct((B, S_pad, D), qkv.dtype),
        compiler_params=pltpu.CompilerParams(
            dimension_semantics=("parallel", "parallel"),
            vmem_limit_bytes=_VMEM_LIMIT),
        cost_estimate=pl.CostEstimate(
            flops=4 * B * num_heads * S_pad * S_pad * Dh,
            transcendentals=B * num_heads * S_pad * S_pad,
            bytes_accessed=B * S_pad * 4 * D * 2),
    )(qkv3)
    return out.reshape(B * S_pad, D)


# --------------------------- parameters & forward ---------------------------

def init_params(key, cfg):
    D, C, P = cfg["hidden"], cfg["channels"], cfg["patch"]
    mlp, L, ncls, S = cfg["mlp_dim"], cfg["layers"], cfg["num_classes"], cfg["seq_len"]
    nH = cfg["heads"]
    hps = _heads_per_step(nH, D // nH)
    # Fused QKV columns permuted once at init (torchvision in_proj layout ->
    # per-head-group layout the attention kernel consumes); identity when G==1.
    perm = _qkv_group_perm(D, nH, hps)

    def nrm(k, shape, std=0.02, dtype=jnp.bfloat16):
        return (std * jax.random.normal(k, shape, jnp.float32)).astype(dtype)

    keys = iter(jax.random.split(key, 16 + 8 * L))
    params = {
        # conv_proj.weight (D, C, P, P) flattened over (C,kh,kw) and transposed
        "patch_w": nrm(next(keys), (C * P * P, D)),
        "patch_b": jnp.zeros((D,), jnp.float32),
        "class_token": jnp.zeros((1, 1, D), jnp.float32),
        "pos_emb": nrm(next(keys), (1, S, D), dtype=jnp.float32),
        "ln_f_g": jnp.ones((D,), jnp.float32),
        "ln_f_b": jnp.zeros((D,), jnp.float32),
        "head_w": nrm(next(keys), (D, ncls)),
        "head_b": jnp.zeros((ncls,), jnp.float32),
        "layers": [],
    }
    for _ in range(L):
        w_in = nrm(next(keys), (D, 3 * D))          # in_proj_weight.T  [q|k|v]
        b_in = jnp.zeros((3 * D,), jnp.float32)
        params["layers"].append({
            "ln1_g": jnp.ones((D,), jnp.float32),
            "ln1_b": jnp.zeros((D,), jnp.float32),
            "w_in": w_in[:, perm],
            "b_in": b_in[perm],
            "w_out": nrm(next(keys), (D, D)),        # out_proj.weight.T
            "b_out": jnp.zeros((D,), jnp.float32),
            "ln2_g": jnp.ones((D,), jnp.float32),
            "ln2_b": jnp.zeros((D,), jnp.float32),
            "w_fc1": nrm(next(keys), (D, mlp)),
            "b_fc1": jnp.zeros((mlp,), jnp.float32),
            "w_fc2": nrm(next(keys), (mlp, D)),
            "b_fc2": jnp.zeros((D,), jnp.float32),
        })
    return params


def vit_forward(params, x, cfg):
    B, C, H, W = x.shape
    P, D, nH = cfg["patch"], cfg["hidden"], cfg["heads"]
    nh, nw = H // P, W // P
    npatch = nh * nw

    # --- patch embedding: Conv2d(k=P, s=P)  ==  patchify + matmul ---
    # TODO(synk): patchify is still an XLA reshape/transpose pass; folding it
    # into the projection kernel via an Element-mapped BlockSpec would remove
    # one HBM round trip of the input image.
    patches = x.reshape(B, C, nh, P, nw, P).transpose(0, 2, 4, 1, 3, 5)
    patches = patches.reshape(B * npatch, C * P * P).astype(jnp.bfloat16)
    tok = linear(patches, params["patch_w"], params["patch_b"])
    tok = tok.reshape(B, npatch, D).astype(jnp.float32)

    # --- class token + positional embedding (dropout p=0.0 -> identity) ---
    cls = jnp.broadcast_to(params["class_token"], (B, 1, D))
    h = jnp.concatenate([cls, tok], axis=1) + params["pos_emb"]

    # Pad the sequence ONCE and carry S_pad through all layers; padded key
    # columns are masked inside the attention kernel.
    S_real = npatch + 1
    S_pad = _round_up(S_real, 8)
    if S_pad != S_real:
        h = jnp.pad(h, ((0, 0), (0, S_pad - S_real), (0, 0)))
    h = h.astype(jnp.bfloat16).reshape(B * S_pad, D)   # bf16 residual stream

    hps = _heads_per_step(nH, D // nH)
    for lp in params["layers"]:
        # pre-LN multi-head self-attention (LN fused into the QKV projection)
        qkv = ln_linear(h, lp["ln1_g"], lp["ln1_b"], lp["w_in"], lp["b_in"])
        o = attention(qkv, B, S_pad, S_real, D, nH, hps)
        h = linear(o, lp["w_out"], lp["b_out"], residual=h)       # out-proj + res
        # pre-LN MLP (LN fused into fc1, GELU fused, residual fused into fc2)
        m = ln_linear(h, lp["ln2_g"], lp["ln2_b"], lp["w_fc1"], lp["b_fc1"],
                      activation="gelu")
        h = linear(m, lp["w_fc2"], lp["b_fc2"], residual=h)        # fc2 + res

    # Final LN fused into the classification head; LN is row-wise, so applying
    # it only to the class-token row equals LN-then-select (B rows, not B*S).
    cls_tok = h.reshape(B, S_pad, D)[:, 0, :]
    return ln_linear(cls_tok, params["ln_f_g"], params["ln_f_b"],
                     params["head_w"], params["head_b"],
                     out_dtype=jnp.float32)


# --------------------------------- driver -----------------------------------

if __name__ == "__main__":
    # Scaled-down ViT-L/16-shaped config (same topology, small dims).
    cfg = dict(channels=3, image_size=32, patch=16, hidden=128, heads=4,
               mlp_dim=256, layers=2, num_classes=16)
    cfg["seq_len"] = (cfg["image_size"] // cfg["patch"]) ** 2 + 1   # 5

    key = jax.random.PRNGKey(0)
    kp, kx = jax.random.split(key)
    params = init_params(kp, cfg)
    x = jax.random.normal(
        kx, (2, cfg["channels"], cfg["image_size"], cfg["image_size"]),
        dtype=jnp.float32)

    fwd = jax.jit(functools.partial(vit_forward, cfg=cfg))
    logits = fwd(params, x)
    jax.block_until_ready(logits)
    assert logits.shape == (2, cfg["num_classes"])
    assert logits.dtype == jnp.float32
    assert bool(jnp.all(jnp.isfinite(logits)))
    print("KERNEL_OK")
</pallas_src>

<mosaic_0001>
module attributes {stable_mosaic.version = 11 : i64} {
  func.func @_matmul_kernel(%arg0: i32, %arg1: i32, %arg2: memref<8x768xbf16, #tpu.memory_space<vmem>>, %arg3: memref<768x128xbf16, #tpu.memory_space<vmem>>, %arg4: memref<1x128xf32, #tpu.memory_space<vmem>>, %arg5: memref<8x128xbf16, #tpu.memory_space<vmem>>) attributes {dimension_semantics = [#tpu.dimension_semantics<parallel>, #tpu.dimension_semantics<parallel>], iteration_bounds = array<i64: 1, 1>, scalar_prefetch = 0 : i64, scratch_operands = 0 : i64, tpu.core_type = #tpu.core_type<tc>, window_params = [{transform_indices = @transform_0, window_bounds = array<i64: 8, 768>}, {transform_indices = @transform_1, window_bounds = array<i64: 768, 128>}, {transform_indices = @transform_2, window_bounds = array<i64: 1, 128>}, {transform_indices = @transform_3, window_bounds = array<i64: 8, 128>}]} {
    %c0 = arith.constant 0 : index
    %c0_0 = arith.constant 0 : index
    %0 = vector.load %arg2[%c0, %c0_0] : memref<8x768xbf16, #tpu.memory_space<vmem>>, vector<8x768xbf16>
    %c0_1 = arith.constant 0 : index
    %c0_2 = arith.constant 0 : index
    %1 = vector.load %arg3[%c0_1, %c0_2] : memref<768x128xbf16, #tpu.memory_space<vmem>>, vector<768x128xbf16>
    %cst = arith.constant dense<0.000000e+00> : vector<8x128xf32>
    %2 = tpu.matmul %0, %1, %cst {dimension_numbers = #tpu.dot_dimension_numbers<[1], [0], [0], [1], [0, 0, 1, 1], [], []>} : vector<8x768xbf16>, vector<768x128xbf16>, vector<8x128xf32> -> vector<8x128xf32>
    %c0_3 = arith.constant 0 : index
    %c0_4 = arith.constant 0 : index
    %3 = vector.load %arg4[%c0_3, %c0_4] : memref<1x128xf32, #tpu.memory_space<vmem>>, vector<1x128xf32>
    %4 = vector.broadcast %3 : vector<1x128xf32> to vector<8x128xf32>
    %5 = arith.addf %2, %4 : vector<8x128xf32>
    %6 = arith.truncf %5 : vector<8x128xf32> to vector<8x128xbf16>
    %c0_5 = arith.constant 0 : index
    %c0_6 = arith.constant 0 : index
    %7 = vector.load %arg5[%c0_5, %c0_6] : memref<8x128xbf16, #tpu.memory_space<vmem>>, vector<8x128xbf16>
    tpu.vector_store %arg5[%c0_5, %c0_6], %6 {strides = array<i32>} : memref<8x128xbf16, #tpu.memory_space<vmem>>, vector<8x128xbf16>,
    return
  }
  func.func @transform_0(%arg0: i32, %arg1: i32) -> (i32, i32) {
    %c0_i32 = arith.constant 0 : i32
    %c0_i32_0 = arith.constant 0 : i32
    return %arg0, %c0_i32 : i32, i32
  }
  func.func @transform_1(%arg0: i32, %arg1: i32) -> (i32, i32) {
    %c0_i32 = arith.constant 0 : i32
    %c0_i32_0 = arith.constant 0 : i32
    return %c0_i32, %arg1 : i32, i32
  }
  func.func @transform_2(%arg0: i32, %arg1: i32) -> (i32, i32) {
    %c0_i32 = arith.constant 0 : i32
    %c0_i32_0 = arith.constant 0 : i32
    return %c0_i32, %arg1 : i32, i32
  }
  func.func @transform_3(%arg0: i32, %arg1: i32) -> (i32, i32) {
    %c0_i32 = arith.constant 0 : i32
    return %arg0, %arg1 : i32, i32
  }
}

module attributes {stable_mosaic.version = 11 : i64} {
  func.func @_attention_kernel(%arg0: i32, %arg1: i32, %arg2: memref<1x8x384xbf16, #tpu.memory_space<vmem>>, %arg3: memref<1x8x128xbf16, #tpu.memory_space<vmem>>) attributes {dimension_semantics = [#tpu.dimension_semantics<parallel>, #tpu.dimension_semantics<parallel>], iteration_bounds = array<i64: 2, 1>, scalar_prefetch = 0 : i64, scratch_operands = 0 : i64, tpu.core_type = #tpu.core_type<tc>, window_params = [{transform_indices = @transform_0, window_bounds = array<i64: 1, 8, 384>}, {transform_indices = @transform_1, window_bounds = array<i64: 1, 8, 128>}]} {
    %c0 = arith.constant 0 : index
    %c0_0 = arith.constant 0 : index
    %c0_1 = arith.constant 0 : index
    %0 = vector.load %arg2[%c0, %c0_0, %c0_1] : memref<1x8x384xbf16, #tpu.memory_space<vmem>>, vector<1x8x384xbf16>
    %1 = vector.shape_cast %0 : vector<1x8x384xbf16> to vector<8x384xbf16>
    %2 = vector.extract_strided_slice %1 {offsets = [0, 0], sizes = [8, 128], strides = [1, 1]} : vector<8x384xbf16> to vector<8x128xbf16>
    %3 = vector.extract_strided_slice %1 {offsets = [0, 128], sizes = [8, 128], strides = [1, 1]} : vector<8x384xbf16> to vector<8x128xbf16>
    %4 = vector.extract_strided_slice %1 {offsets = [0, 256], sizes = [8, 128], strides = [1, 1]} : vector<8x384xbf16> to vector<8x128xbf16>
    %5 = tpu.iota {dimensions = array<i32: 1>} : vector<8x8xi32>
    %c5_i32 = arith.constant 5 : i32
    %6 = vector.broadcast %c5_i32 : i32 to vector<8x8xi32>
    %7 = arith.cmpi slt, %5, %6 : vector<8x8xi32>
    %8 = vector.extract_strided_slice %2 {offsets = [0, 0], sizes = [8, 32], strides = [1, 1]} : vector<8x128xbf16> to vector<8x32xbf16>
    %9 = vector.extract_strided_slice %3 {offsets = [0, 0], sizes = [8, 32], strides = [1, 1]} : vector<8x128xbf16> to vector<8x32xbf16>
    %10 = vector.extract_strided_slice %4 {offsets = [0, 0], sizes = [8, 32], strides = [1, 1]} : vector<8x128xbf16> to vector<8x32xbf16>
    %cst = arith.constant dense<0.000000e+00> : vector<8x8xf32>
    %11 = tpu.matmul %8, %9, %cst {dimension_numbers = #tpu.dot_dimension_numbers<[1], [1], [0], [0], [0, 0, 1, 0], [], []>} : vector<8x32xbf16>, vector<8x32xbf16>, vector<8x8xf32> -> vector<8x8xf32>
    %cst_2 = arith.constant 0.176776692 : f32
    %12 = vector.broadcast %cst_2 : f32 to vector<8x8xf32>
    %13 = arith.mulf %11, %12 : vector<8x8xf32>
    %cst_3 = arith.constant -1.000000e+30 : f32
    %14 = vector.broadcast %cst_3 : f32 to vector<8x8xf32>
    %15 = arith.select %7, %13, %14 : vector<8x8xi1>, vector<8x8xf32>
    %cst_4 = arith.constant dense<0xFF800000> : vector<8xf32>
    %16 = vector.multi_reduction <maximumf>, %15, %cst_4 [1] : vector<8x8xf32> to vector<8xf32>
    %17 = vector.shape_cast %16 : vector<8xf32> to vector<8x1xf32>
    %18 = vector.broadcast %17 : vector<8x1xf32> to vector<8x8xf32>
    %19 = arith.subf %15, %18 : vector<8x8xf32>
    %20 = math.exp %19 : vector<8x8xf32>
    %cst_5 = arith.constant dense<0.000000e+00> : vector<8xf32>
    %21 = vector.multi_reduction <add>, %20, %cst_5 [1] : vector<8x8xf32> to vector<8xf32>
    %22 = vector.shape_cast %21 : vector<8xf32> to vector<8x1xf32>
    %23 = tpu.reciprocal %22 {approx = true} : vector<8x1xf32> -> vector<8x1xf32>
    %24 = vector.broadcast %23 : vector<8x1xf32> to vector<8x8xf32>
    %25 = arith.mulf %20, %24 : vector<8x8xf32>
    %26 = arith.truncf %25 : vector<8x8xf32> to vector<8x8xbf16>
    %cst_6 = arith.constant dense<0.000000e+00> : vector<8x32xf32>
    %27 = tpu.matmul %26, %10, %cst_6 {dimension_numbers = #tpu.dot_dimension_numbers<[1], [0], [0], [1], [0, 0, 1, 1], [], []>} : vector<8x8xbf16>, vector<8x32xbf16>, vector<8x32xf32> -> vector<8x32xf32>
    %28 = vector.extract_strided_slice %2 {offsets = [0, 32], sizes = [8, 32], strides = [1, 1]} : vector<8x128xbf16> to vector<8x32xbf16>
    %29 = vector.extract_strided_slice %3 {offsets = [0, 32], sizes = [8, 32], strides = [1, 1]} : vector<8x128xbf16> to vector<8x32xbf16>
    %30 = vector.extract_strided_slice %4 {offsets = [0, 32], sizes = [8, 32], strides = [1, 1]} : vector<8x128xbf16> to vector<8x32xbf16>
    %cst_7 = arith.constant dense<0.000000e+00> : vector<8x8xf32>
    %31 = tpu.matmul %28, %29, %cst_7 {dimension_numbers = #tpu.dot_dimension_numbers<[1], [1], [0], [0], [0, 0, 1, 0], [], []>} : vector<8x32xbf16>, vector<8x32xbf16>, vector<8x8xf32> -> vector<8x8xf32>
    %cst_8 = arith.constant 0.176776692 : f32
    %32 = vector.broadcast %cst_8 : f32 to vector<8x8xf32>
    %33 = arith.mulf %31, %32 : vector<8x8xf32>
    %cst_9 = arith.constant -1.000000e+30 : f32
    %34 = vector.broadcast %cst_9 : f32 to vector<8x8xf32>
    %35 = arith.select %7, %33, %34 : vector<8x8xi1>, vector<8x8xf32>
    %cst_10 = arith.constant dense<0xFF800000> : vector<8xf32>
    %36 = vector.multi_reduction <maximumf>, %35, %cst_10 [1] : vector<8x8xf32> to vector<8xf32>
    %37 = vector.shape_cast %36 : vector<8xf32> to vector<8x1xf32>
    %38 = vector.broadcast %37 : vector<8x1xf32> to vector<8x8xf32>
    %39 = arith.subf %35, %38 : vector<8x8xf32>
    %40 = math.exp %39 : vector<8x8xf32>
    %cst_11 = arith.constant dense<0.000000e+00> : vector<8xf32>
    %41 = vector.multi_reduction <add>, %40, %cst_11 [1] : vector<8x8xf32> to vector<8xf32>
    %42 = vector.shape_cast %41 : vector<8xf32> to vector<8x1xf32>
    %43 = tpu.reciprocal %42 {approx = true} : vector<8x1xf32> -> vector<8x1xf32>
    %44 = vector.broadcast %43 : vector<8x1xf32> to vector<8x8xf32>
    %45 = arith.mulf %40, %44 : vector<8x8xf32>
    %46 = arith.truncf %45 : vector<8x8xf32> to vector<8x8xbf16>
    %cst_12 = arith.constant dense<0.000000e+00> : vector<8x32xf32>
    %47 = tpu.matmul %46, %30, %cst_12 {dimension_numbers = #tpu.dot_dimension_numbers<[1], [0], [0], [1], [0, 0, 1, 1], [], []>} : vector<8x8xbf16>, vector<8x32xbf16>, vector<8x32xf32> -> vector<8x32xf32>
    %48 = tpu.concatenate %27, %47 in 1 : vector<8x32xf32>, vector<8x32xf32> -> vector<8x64xf32>
    %49 = arith.truncf %48 : vector<8x64xf32> to vector<8x64xbf16>
    %c0_13 = arith.constant 0 : index
    %c0_14 = arith.constant 0 : index
    %c0_15 = arith.constant 0 : index
    %50 = vector.load %arg3[%c0_13, %c0_14, %c0_15] : memref<1x8x128xbf16, #tpu.memory_space<vmem>>, vector<1x8x64xbf16>
    %51 = vector.shape_cast %50 : vector<1x8x64xbf16> to vector<8x64xbf16>
    %52 = vector.shape_cast %49 : vector<8x64xbf16> to vector<1x8x64xbf16>
    tpu.vector_store %arg3[%c0_13, %c0_14, %c0_15], %52 {strides = array<i32>} : memref<1x8x128xbf16, #tpu.memory_space<vmem>>, vector<1x8x64xbf16>,
    %53 = vector.extract_strided_slice %2 {offsets = [0, 64], sizes = [8, 32], strides = [1, 1]} : vector<8x128xbf16> to vector<8x32xbf16>
    %54 = vector.extract_strided_slice %3 {offsets = [0, 64], sizes = [8, 32], strides = [1, 1]} : vector<8x128xbf16> to vector<8x32xbf16>
    %55 = vector.extract_strided_slice %4 {offsets = [0, 64], sizes = [8, 32], strides = [1, 1]} : vector<8x128xbf16> to vector<8x32xbf16>
    %cst_16 = arith.constant dense<0.000000e+00> : vector<8x8xf32>
    %56 = tpu.matmul %53, %54, %cst_16 {dimension_numbers = #tpu.dot_dimension_numbers<[1], [1], [0], [0], [0, 0, 1, 0], [], []>} : vector<8x32xbf16>, vector<8x32xbf16>, vector<8x8xf32> -> vector<8x8xf32>
    %cst_17 = arith.constant 0.176776692 : f32
    %57 = vector.broadcast %cst_17 : f32 to vector<8x8xf32>
    %58 = arith.mulf %56, %57 : vector<8x8xf32>
    %cst_18 = arith.constant -1.000000e+30 : f32
    %59 = vector.broadcast %cst_18 : f32 to vector<8x8xf32>
    %60 = arith.select %7, %58, %59 : vector<8x8xi1>, vector<8x8xf32>
    %cst_19 = arith.constant dense<0xFF800000> : vector<8xf32>
    %61 = vector.multi_reduction <maximumf>, %60, %cst_19 [1] : vector<8x8xf32> to vector<8xf32>
    %62 = vector.shape_cast %61 : vector<8xf32> to vector<8x1xf32>
    %63 = vector.broadcast %62 : vector<8x1xf32> to vector<8x8xf32>
    %64 = arith.subf %60, %63 : vector<8x8xf32>
    %65 = math.exp %64 : vector<8x8xf32>
    %cst_20 = arith.constant dense<0.000000e+00> : vector<8xf32>
    %66 = vector.multi_reduction <add>, %65, %cst_20 [1] : vector<8x8xf32> to vector<8xf32>
    %67 = vector.shape_cast %66 : vector<8xf32> to vector<8x1xf32>
    %68 = tpu.reciprocal %67 {approx = true} : vector<8x1xf32> -> vector<8x1xf32>
    %69 = vector.broadcast %68 : vector<8x1xf32> to vector<8x8xf32>
    %70 = arith.mulf %65, %69 : vector<8x8xf32>
    %71 = arith.truncf %70 : vector<8x8xf32> to vector<8x8xbf16>
    %cst_21 = arith.constant dense<0.000000e+00> : vector<8x32xf32>
    %72 = tpu.matmul %71, %55, %cst_21 {dimension_numbers = #tpu.dot_dimension_numbers<[1], [0], [0], [1], [0, 0, 1, 1], [], []>} : vector<8x8xbf16>, vector<8x32xbf16>, vector<8x32xf32> -> vector<8x32xf32>
    %73 = vector.extract_strided_slice %2 {offsets = [0, 96], sizes = [8, 32], strides = [1, 1]} : vector<8x128xbf16> to vector<8x32xbf16>
    %74 = vector.extract_strided_slice %3 {offsets = [0, 96], sizes = [8, 32], strides = [1, 1]} : vector<8x128xbf16> to vector<8x32xbf16>
    %75 = vector.extract_strided_slice %4 {offsets = [0, 96], sizes = [8, 32], strides = [1, 1]} : vector<8x128xbf16> to vector<8x32xbf16>
    %cst_22 = arith.constant dense<0.000000e+00> : vector<8x8xf32>
    %76 = tpu.matmul %73, %74, %cst_22 {dimension_numbers = #tpu.dot_dimension_numbers<[1], [1], [0], [0], [0, 0, 1, 0], [], []>} : vector<8x32xbf16>, vector<8x32xbf16>, vector<8x8xf32> -> vector<8x8xf32>
    %cst_23 = arith.constant 0.176776692 : f32
    %77 = vector.broadcast %cst_23 : f32 to vector<8x8xf32>
    %78 = arith.mulf %76, %77 : vector<8x8xf32>
    %cst_24 = arith.constant -1.000000e+30 : f32
    %79 = vector.broadcast %cst_24 : f32 to vector<8x8xf32>
    %80 = arith.select %7, %78, %79 : vector<8x8xi1>, vector<8x8xf32>
    %cst_25 = arith.constant dense<0xFF800000> : vector<8xf32>
    %81 = vector.multi_reduction <maximumf>, %80, %cst_25 [1] : vector<8x8xf32> to vector<8xf32>
    %82 = vector.shape_cast %81 : vector<8xf32> to vector<8x1xf32>
    %83 = vector.broadcast %82 : vector<8x1xf32> to vector<8x8xf32>
    %84 = arith.subf %80, %83 : vector<8x8xf32>
    %85 = math.exp %84 : vector<8x8xf32>
    %cst_26 = arith.constant dense<0.000000e+00> : vector<8xf32>
    %86 = vector.multi_reduction <add>, %85, %cst_26 [1] : vector<8x8xf32> to vector<8xf32>
    %87 = vector.shape_cast %86 : vector<8xf32> to vector<8x1xf32>
    %88 = tpu.reciprocal %87 {approx = true} : vector<8x1xf32> -> vector<8x1xf32>
    %89 = vector.broadcast %88 : vector<8x1xf32> to vector<8x8xf32>
    %90 = arith.mulf %85, %89 : vector<8x8xf32>
    %91 = arith.truncf %90 : vector<8x8xf32> to vector<8x8xbf16>
    %cst_27 = arith.constant dense<0.000000e+00> : vector<8x32xf32>
    %92 = tpu.matmul %91, %75, %cst_27 {dimension_numbers = #tpu.dot_dimension_numbers<[1], [0], [0], [1], [0, 0, 1, 1], [], []>} : vector<8x8xbf16>, vector<8x32xbf16>, vector<8x32xf32> -> vector<8x32xf32>
    %93 = tpu.concatenate %72, %92 in 1 : vector<8x32xf32>, vector<8x32xf32> -> vector<8x64xf32>
    %94 = arith.truncf %93 : vector<8x64xf32> to vector<8x64xbf16>
    %c0_28 = arith.constant 0 : index
    %c0_29 = arith.constant 0 : index
    %c64 = arith.constant 64 : index
    %95 = vector.load %arg3[%c0_28, %c0_29, %c64] : memref<1x8x128xbf16, #tpu.memory_space<vmem>>, vector<1x8x64xbf16>
    %96 = vector.shape_cast %95 : vector<1x8x64xbf16> to vector<8x64xbf16>
    %97 = vector.shape_cast %94 : vector<8x64xbf16> to vector<1x8x64xbf16>
    tpu.vector_store %arg3[%c0_28, %c0_29, %c64], %97 {strides = array<i32>} : memref<1x8x128xbf16, #tpu.memory_space<vmem>>, vector<1x8x64xbf16>,
    return
  }
  func.func @transform_0(%arg0: i32, %arg1: i32) -> (i32, i32, i32) {
    %c0_i32 = arith.constant 0 : i32
    %c0_i32_0 = arith.constant 0 : i32
    return %arg0, %c0_i32, %arg1 : i32, i32, i32
  }
  func.func @transform_1(%arg0: i32, %arg1: i32) -> (i32, i32, i32) {
    %c0_i32 = arith.constant 0 : i32
    %c0_i32_0 = arith.constant 0 : i32
    return %arg0, %c0_i32, %arg1 : i32, i32, i32
  }
}

module attributes {stable_mosaic.version = 11 : i64} {
  func.func @_matmul_kernel(%arg0: i32, %arg1: i32, %arg2: memref<16x128xbf16, #tpu.memory_space<vmem>>, %arg3: memref<128x128xbf16, #tpu.memory_space<vmem>>, %arg4: memref<1x128xf32, #tpu.memory_space<vmem>>, %arg5: memref<16x128xbf16, #tpu.memory_space<vmem>>, %arg6: memref<16x128xbf16, #tpu.memory_space<vmem>>) attributes {dimension_semantics = [#tpu.dimension_semantics<parallel>, #tpu.dimension_semantics<parallel>], iteration_bounds = array<i64: 1, 1>, scalar_prefetch = 0 : i64, scratch_operands = 0 : i64, tpu.core_type = #tpu.core_type<tc>, window_params = [{transform_indices = @transform_0, window_bounds = array<i64: 16, 128>}, {transform_indices = @transform_1, window_bounds = array<i64: 128, 128>}, {transform_indices = @transform_2, window_bounds = array<i64: 1, 128>}, {transform_indices = @transform_3, window_bounds = array<i64: 16, 128>}, {transform_indices = @transform_4, window_bounds = array<i64: 16, 128>}]} {
    %c0 = arith.constant 0 : index
    %c0_0 = arith.constant 0 : index
    %0 = vector.load %arg2[%c0, %c0_0] : memref<16x128xbf16, #tpu.memory_space<vmem>>, vector<16x128xbf16>
    %c0_1 = arith.constant 0 : index
    %c0_2 = arith.constant 0 : index
    %1 = vector.load %arg3[%c0_1, %c0_2] : memref<128x128xbf16, #tpu.memory_space<vmem>>, vector<128x128xbf16>
    %cst = arith.constant dense<0.000000e+00> : vector<16x128xf32>
    %2 = tpu.matmul %0, %1, %cst {dimension_numbers = #tpu.dot_dimension_numbers<[1], [0], [0], [1], [0, 0, 1, 1], [], []>} : vector<16x128xbf16>, vector<128x128xbf16>, vector<16x128xf32> -> vector<16x128xf32>
    %c0_3 = arith.constant 0 : index
    %c0_4 = arith.constant 0 : index
    %3 = vector.load %arg4[%c0_3, %c0_4] : memref<1x128xf32, #tpu.memory_space<vmem>>, vector<1x128xf32>
    %4 = vector.broadcast %3 : vector<1x128xf32> to vector<16x128xf32>
    %5 = arith.addf %2, %4 : vector<16x128xf32>
    %c0_5 = arith.constant 0 : index
    %c0_6 = arith.constant 0 : index
    %6 = vector.load %arg5[%c0_5, %c0_6] : memref<16x128xbf16, #tpu.memory_space<vmem>>, vector<16x128xbf16>
    %7 = arith.extf %6 : vector<16x128xbf16> to vector<16x128xf32>
    %8 = arith.addf %5, %7 : vector<16x128xf32>
    %9 = arith.truncf %8 : vector<16x128xf32> to vector<16x128xbf16>
    %c0_7 = arith.constant 0 : index
    %c0_8 = arith.constant 0 : index
    %10 = vector.load %arg6[%c0_7, %c0_8] : memref<16x128xbf16, #tpu.memory_space<vmem>>, vector<16x128xbf16>
    tpu.vector_store %arg6[%c0_7, %c0_8], %9 {strides = array<i32>} : memref<16x128xbf16, #tpu.memory_space<vmem>>, vector<16x128xbf16>,
    return
  }
  func.func @transform_0(%arg0: i32, %arg1: i32) -> (i32, i32) {
    %c0_i32 = arith.constant 0 : i32
    %c0_i32_0 = arith.constant 0 : i32
    return %arg0, %c0_i32 : i32, i32
  }
  func.func @transform_1(%arg0: i32, %arg1: i32) -> (i32, i32) {
    %c0_i32 = arith.constant 0 : i32
    %c0_i32_0 = arith.constant 0 : i32
    return %c0_i32, %arg1 : i32, i32
  }
  func.func @transform_2(%arg0: i32, %arg1: i32) -> (i32, i32) {
    %c0_i32 = arith.constant 0 : i32
    %c0_i32_0 = arith.constant 0 : i32
    return %c0_i32, %arg1 : i32, i32
  }
  func.func @transform_3(%arg0: i32, %arg1: i32) -> (i32, i32) {
    %c0_i32 = arith.constant 0 : i32
    return %arg0, %arg1 : i32, i32
  }
  func.func @transform_4(%arg0: i32, %arg1: i32) -> (i32, i32) {
    %c0_i32 = arith.constant 0 : i32
    return %arg0, %arg1 : i32, i32
  }
}

module attributes {stable_mosaic.version = 11 : i64} {
  func.func @_ln_matmul_kernel(%arg0: i32, %arg1: i32, %arg2: memref<16x128xbf16, #tpu.memory_space<vmem>>, %arg3: memref<1x128xf32, #tpu.memory_space<vmem>>, %arg4: memref<1x128xf32, #tpu.memory_space<vmem>>, %arg5: memref<128x384xbf16, #tpu.memory_space<vmem>>, %arg6: memref<1x384xf32, #tpu.memory_space<vmem>>, %arg7: memref<16x384xbf16, #tpu.memory_space<vmem>>, %arg8: memref<16x128xbf16, #tpu.memory_space<vmem>>) attributes {dimension_semantics = [#tpu.dimension_semantics<parallel>, #tpu.dimension_semantics<arbitrary>], iteration_bounds = array<i64: 1, 1>, scalar_prefetch = 0 : i64, scratch_operands = 1 : i64, tpu.core_type = #tpu.core_type<tc>, window_params = [{transform_indices = @transform_0, window_bounds = array<i64: 16, 128>}, {pipeline_mode = #tpu.pipeline_mode<synchronous>, transform_indices = @transform_1, window_bounds = array<i64: 1, 128>}, {pipeline_mode = #tpu.pipeline_mode<synchronous>, transform_indices = @transform_2, window_bounds = array<i64: 1, 128>}, {transform_indices = @transform_3, window_bounds = array<i64: 128, 384>}, {transform_indices = @transform_4, window_bounds = array<i64: 1, 384>}, {transform_indices = @transform_5, window_bounds = array<i64: 16, 384>}]} {
    %c0_i32 = arith.constant 0 : i32
    %0 = arith.cmpi eq, %arg1, %c0_i32 : i32
    %1 = arith.extui %0 : i1 to i32
    %c0_i32_0 = arith.constant 0 : i32
    %2 = arith.cmpi ne, %1, %c0_i32_0 : i32
    scf.if %2 {
      %c0_8 = arith.constant 0 : index
      %c0_9 = arith.constant 0 : index
      %11 = vector.load %arg2[%c0_8, %c0_9] : memref<16x128xbf16, #tpu.memory_space<vmem>>, vector<16x128xbf16>
      %12 = arith.extf %11 : vector<16x128xbf16> to vector<16x128xf32>
      %cst_10 = arith.constant dense<0.000000e+00> : vector<16xf32>
      %13 = vector.multi_reduction <add>, %12, %cst_10 [1] : vector<16x128xf32> to vector<16xf32>
      %14 = vector.shape_cast %13 : vector<16xf32> to vector<16x1xf32>
      %cst_11 = arith.constant 1.280000e+02 : f32
      %15 = vector.broadcast %cst_11 : f32 to vector<16x1xf32>
      %16 = arith.divf %14, %15 : vector<16x1xf32>
      %17 = vector.broadcast %16 : vector<16x1xf32> to vector<16x128xf32>
      %18 = arith.subf %12, %17 : vector<16x128xf32>
      %19 = arith.mulf %18, %18 : vector<16x128xf32>
      %cst_12 = arith.constant dense<0.000000e+00> : vector<16xf32>
      %20 = vector.multi_reduction <add>, %19, %cst_12 [1] : vector<16x128xf32> to vector<16xf32>
      %21 = vector.shape_cast %20 : vector<16xf32> to vector<16x1xf32>
      %cst_13 = arith.constant 1.280000e+02 : f32
      %22 = vector.broadcast %cst_13 : f32 to vector<16x1xf32>
      %23 = arith.divf %21, %22 : vector<16x1xf32>
      %cst_14 = arith.constant 9.99999997E-7 : f32
      %24 = vector.broadcast %cst_14 : f32 to vector<16x1xf32>
      %25 = arith.addf %23, %24 : vector<16x1xf32>
      %26 = math.rsqrt %25 : vector<16x1xf32>
      %27 = vector.broadcast %26 : vector<16x1xf32> to vector<16x128xf32>
      %28 = arith.mulf %18, %27 : vector<16x128xf32>
      %c0_15 = arith.constant 0 : index
      %c0_16 = arith.constant 0 : index
      %29 = vector.load %arg3[%c0_15, %c0_16] : memref<1x128xf32, #tpu.memory_space<vmem>>, vector<1x128xf32>
      %30 = vector.broadcast %29 : vector<1x128xf32> to vector<16x128xf32>
      %31 = arith.mulf %28, %30 : vector<16x128xf32>
      %c0_17 = arith.constant 0 : index
      %c0_18 = arith.constant 0 : index
      %32 = vector.load %arg4[%c0_17, %c0_18] : memref<1x128xf32, #tpu.memory_space<vmem>>, vector<1x128xf32>
      %33 = vector.broadcast %32 : vector<1x128xf32> to vector<16x128xf32>
      %34 = arith.addf %31, %33 : vector<16x128xf32>
      %35 = arith.truncf %34 : vector<16x128xf32> to vector<16x128xbf16>
      %c0_19 = arith.constant 0 : index
      %c0_20 = arith.constant 0 : index
      %36 = vector.load %arg8[%c0_19, %c0_20] : memref<16x128xbf16, #tpu.memory_space<vmem>>, vector<16x128xbf16>
      tpu.vector_store %arg8[%c0_19, %c0_20], %35 {strides = array<i32>} : memref<16x128xbf16, #tpu.memory_space<vmem>>, vector<16x128xbf16>,
    } else {
    }
    %c0 = arith.constant 0 : index
    %c0_1 = arith.constant 0 : index
    %3 = vector.load %arg8[%c0, %c0_1] : memref<16x128xbf16, #tpu.memory_space<vmem>>, vector<16x128xbf16>
    %c0_2 = arith.constant 0 : index
    %c0_3 = arith.constant 0 : index
    %4 = vector.load %arg5[%c0_2, %c0_3] : memref<128x384xbf16, #tpu.memory_space<vmem>>, vector<128x384xbf16>
    %cst = arith.constant dense<0.000000e+00> : vector<16x384xf32>
    %5 = tpu.matmul %3, %4, %cst {dimension_numbers = #tpu.dot_dimension_numbers<[1], [0], [0], [1], [0, 0, 1, 1], [], []>} : vector<16x128xbf16>, vector<128x384xbf16>, vector<16x384xf32> -> vector<16x384xf32>
    %c0_4 = arith.constant 0 : index
    %c0_5 = arith.constant 0 : index
    %6 = vector.load %arg6[%c0_4, %c0_5] : memref<1x384xf32, #tpu.memory_space<vmem>>, vector<1x384xf32>
    %7 = vector.broadcast %6 : vector<1x384xf32> to vector<16x384xf32>
    %8 = arith.addf %5, %7 : vector<16x384xf32>
    %9 = arith.truncf %8 : vector<16x384xf32> to vector<16x384xbf16>
    %c0_6 = arith.constant 0 : index
    %c0_7 = arith.constant 0 : index
    %10 = vector.load %arg7[%c0_6, %c0_7] : memref<16x384xbf16, #tpu.memory_space<vmem>>, vector<16x384xbf16>
    tpu.vector_store %arg7[%c0_6, %c0_7], %9 {strides = array<i32>} : memref<16x384xbf16, #tpu.memory_space<vmem>>, vector<16x384xbf16>,
    return
  }
  func.func @transform_0(%arg0: i32, %arg1: i32) -> (i32, i32) {
    %c0_i32 = arith.constant 0 : i32
    %c0_i32_0 = arith.constant 0 : i32
    return %arg0, %c0_i32 : i32, i32
  }
  func.func @transform_1(%arg0: i32, %arg1: i32) -> (i32, i32) {
    %c0_i32 = arith.constant 0 : i32
    %c0_i32_0 = arith.constant 0 : i32
    %c0_i32_1 = arith.constant 0 : i32
    return %c0_i32, %c0_i32_0 : i32, i32
  }
  func.func @transform_2(%arg0: i32, %arg1: i32) -> (i32, i32) {
    %c0_i32 = arith.constant 0 : i32
    %c0_i32_0 = arith.constant 0 : i32
    %c0_i32_1 = arith.constant 0 : i32
    return %c0_i32, %c0_i32_0 : i32, i32
  }
  func.func @transform_3(%arg0: i32, %arg1: i32) -> (i32, i32) {
    %c0_i32 = arith.constant 0 : i32
    %c0_i32_0 = arith.constant 0 : i32
    return %c0_i32, %arg1 : i32, i32
  }
  func.func @transform_4(%arg0: i32, %arg1: i32) -> (i32, i32) {
    %c0_i32 = arith.constant 0 : i32
    %c0_i32_0 = arith.constant 0 : i32
    return %c0_i32, %arg1 : i32, i32
  }
  func.func @transform_5(%arg0: i32, %arg1: i32) -> (i32, i32) {
    %c0_i32 = arith.constant 0 : i32
    return %arg0, %arg1 : i32, i32
  }
}

module attributes {stable_mosaic.version = 11 : i64} {
  func.func @_ln_matmul_kernel(%arg0: i32, %arg1: i32, %arg2: memref<16x128xbf16, #tpu.memory_space<vmem>>, %arg3: memref<1x128xf32, #tpu.memory_space<vmem>>, %arg4: memref<1x128xf32, #tpu.memory_space<vmem>>, %arg5: memref<128x256xbf16, #tpu.memory_space<vmem>>, %arg6: memref<1x256xf32, #tpu.memory_space<vmem>>, %arg7: memref<16x256xbf16, #tpu.memory_space<vmem>>, %arg8: memref<16x128xbf16, #tpu.memory_space<vmem>>) attributes {dimension_semantics = [#tpu.dimension_semantics<parallel>, #tpu.dimension_semantics<arbitrary>], iteration_bounds = array<i64: 1, 1>, scalar_prefetch = 0 : i64, scratch_operands = 1 : i64, tpu.core_type = #tpu.core_type<tc>, window_params = [{transform_indices = @transform_0, window_bounds = array<i64: 16, 128>}, {pipeline_mode = #tpu.pipeline_mode<synchronous>, transform_indices = @transform_1, window_bounds = array<i64: 1, 128>}, {pipeline_mode = #tpu.pipeline_mode<synchronous>, transform_indices = @transform_2, window_bounds = array<i64: 1, 128>}, {transform_indices = @transform_3, window_bounds = array<i64: 128, 256>}, {transform_indices = @transform_4, window_bounds = array<i64: 1, 256>}, {transform_indices = @transform_5, window_bounds = array<i64: 16, 256>}]} {
    %c0_i32 = arith.constant 0 : i32
    %0 = arith.cmpi eq, %arg1, %c0_i32 : i32
    %1 = arith.extui %0 : i1 to i32
    %c0_i32_0 = arith.constant 0 : i32
    %2 = arith.cmpi ne, %1, %c0_i32_0 : i32
    scf.if %2 {
      %c0_12 = arith.constant 0 : index
      %c0_13 = arith.constant 0 : index
      %24 = vector.load %arg2[%c0_12, %c0_13] : memref<16x128xbf16, #tpu.memory_space<vmem>>, vector<16x128xbf16>
      %25 = arith.extf %24 : vector<16x128xbf16> to vector<16x128xf32>
      %cst_14 = arith.constant dense<0.000000e+00> : vector<16xf32>
      %26 = vector.multi_reduction <add>, %25, %cst_14 [1] : vector<16x128xf32> to vector<16xf32>
      %27 = vector.shape_cast %26 : vector<16xf32> to vector<16x1xf32>
      %cst_15 = arith.constant 1.280000e+02 : f32
      %28 = vector.broadcast %cst_15 : f32 to vector<16x1xf32>
      %29 = arith.divf %27, %28 : vector<16x1xf32>
      %30 = vector.broadcast %29 : vector<16x1xf32> to vector<16x128xf32>
      %31 = arith.subf %25, %30 : vector<16x128xf32>
      %32 = arith.mulf %31, %31 : vector<16x128xf32>
      %cst_16 = arith.constant dense<0.000000e+00> : vector<16xf32>
      %33 = vector.multi_reduction <add>, %32, %cst_16 [1] : vector<16x128xf32> to vector<16xf32>
      %34 = vector.shape_cast %33 : vector<16xf32> to vector<16x1xf32>
      %cst_17 = arith.constant 1.280000e+02 : f32
      %35 = vector.broadcast %cst_17 : f32 to vector<16x1xf32>
      %36 = arith.divf %34, %35 : vector<16x1xf32>
      %cst_18 = arith.constant 9.99999997E-7 : f32
      %37 = vector.broadcast %cst_18 : f32 to vector<16x1xf32>
      %38 = arith.addf %36, %37 : vector<16x1xf32>
      %39 = math.rsqrt %38 : vector<16x1xf32>
      %40 = vector.broadcast %39 : vector<16x1xf32> to vector<16x128xf32>
      %41 = arith.mulf %31, %40 : vector<16x128xf32>
      %c0_19 = arith.constant 0 : index
      %c0_20 = arith.constant 0 : index
      %42 = vector.load %arg3[%c0_19, %c0_20] : memref<1x128xf32, #tpu.memory_space<vmem>>, vector<1x128xf32>
      %43 = vector.broadcast %42 : vector<1x128xf32> to vector<16x128xf32>
      %44 = arith.mulf %41, %43 : vector<16x128xf32>
      %c0_21 = arith.constant 0 : index
      %c0_22 = arith.constant 0 : index
      %45 = vector.load %arg4[%c0_21, %c0_22] : memref<1x128xf32, #tpu.memory_space<vmem>>, vector<1x128xf32>
      %46 = vector.broadcast %45 : vector<1x128xf32> to vector<16x128xf32>
      %47 = arith.addf %44, %46 : vector<16x128xf32>
      %48 = arith.truncf %47 : vector<16x128xf32> to vector<16x128xbf16>
      %c0_23 = arith.constant 0 : index
      %c0_24 = arith.constant 0 : index
      %49 = vector.load %arg8[%c0_23, %c0_24] : memref<16x128xbf16, #tpu.memory_space<vmem>>, vector<16x128xbf16>
      tpu.vector_store %arg8[%c0_23, %c0_24], %48 {strides = array<i32>} : memref<16x128xbf16, #tpu.memory_space<vmem>>, vector<16x128xbf16>,
    } else {
    }
    %c0 = arith.constant 0 : index
    %c0_1 = arith.constant 0 : index
    %3 = vector.load %arg8[%c0, %c0_1] : memref<16x128xbf16, #tpu.memory_space<vmem>>, vector<16x128xbf16>
    %c0_2 = arith.constant 0 : index
    %c0_3 = arith.constant 0 : index
    %4 = vector.load %arg5[%c0_2, %c0_3] : memref<128x256xbf16, #tpu.memory_space<vmem>>, vector<128x256xbf16>
    %cst = arith.constant dense<0.000000e+00> : vector<16x256xf32>
    %5 = tpu.matmul %3, %4, %cst {dimension_numbers = #tpu.dot_dimension_numbers<[1], [0], [0], [1], [0, 0, 1, 1], [], []>} : vector<16x128xbf16>, vector<128x256xbf16>, vector<16x256xf32> -> vector<16x256xf32>
    %c0_4 = arith.constant 0 : index
    %c0_5 = arith.constant 0 : index
    %6 = vector.load %arg6[%c0_4, %c0_5] : memref<1x256xf32, #tpu.memory_space<vmem>>, vector<1x256xf32>
    %7 = vector.broadcast %6 : vector<1x256xf32> to vector<16x256xf32>
    %8 = arith.addf %5, %7 : vector<16x256xf32>
    %cst_6 = arith.constant 5.000000e-01 : f32
    %9 = vector.broadcast %cst_6 : f32 to vector<16x256xf32>
    %10 = arith.mulf %9, %8 : vector<16x256xf32>
    %cst_7 = arith.constant 4.471500e-02 : f32
    %11 = vector.broadcast %cst_7 : f32 to vector<16x256xf32>
    %12 = arith.mulf %11, %8 : vector<16x256xf32>
    %13 = arith.mulf %12, %8 : vector<16x256xf32>
    %14 = arith.mulf %13, %8 : vector<16x256xf32>
    %15 = arith.addf %8, %14 : vector<16x256xf32>
    %cst_8 = arith.constant 0.797884583 : f32
    %16 = vector.broadcast %cst_8 : f32 to vector<16x256xf32>
    %17 = arith.mulf %16, %15 : vector<16x256xf32>
    %18 = math.tanh %17 : vector<16x256xf32>
    %cst_9 = arith.constant 1.000000e+00 : f32
    %19 = vector.broadcast %cst_9 : f32 to vector<16x256xf32>
    %20 = arith.addf %19, %18 : vector<16x256xf32>
    %21 = arith.mulf %10, %20 : vector<16x256xf32>
    %22 = arith.truncf %21 : vector<16x256xf32> to vector<16x256xbf16>
    %c0_10 = arith.constant 0 : index
    %c0_11 = arith.constant 0 : index
    %23 = vector.load %arg7[%c0_10, %c0_11] : memref<16x256xbf16, #tpu.memory_space<vmem>>, vector<16x256xbf16>
    tpu.vector_store %arg7[%c0_10, %c0_11], %22 {strides = array<i32>} : memref<16x256xbf16, #tpu.memory_space<vmem>>, vector<16x256xbf16>,
    return
  }
  func.func @transform_0(%arg0: i32, %arg1: i32) -> (i32, i32) {
    %c0_i32 = arith.constant 0 : i32
    %c0_i32_0 = arith.constant 0 : i32
    return %arg0, %c0_i32 : i32, i32
  }
  func.func @transform_1(%arg0: i32, %arg1: i32) -> (i32, i32) {
    %c0_i32 = arith.constant 0 : i32
    %c0_i32_0 = arith.constant 0 : i32
    %c0_i32_1 = arith.constant 0 : i32
    return %c0_i32, %c0_i32_0 : i32, i32
  }
  func.func @transform_2(%arg0: i32, %arg1: i32) -> (i32, i32) {
    %c0_i32 = arith.constant 0 : i32
    %c0_i32_0 = arith.constant 0 : i32
    %c0_i32_1 = arith.constant 0 : i32
    return %c0_i32, %c0_i32_0 : i32, i32
  }
  func.func @transform_3(%arg0: i32, %arg1: i32) -> (i32, i32) {
    %c0_i32 = arith.constant 0 : i32
    %c0_i32_0 = arith.constant 0 : i32
    return %c0_i32, %arg1 : i32, i32
  }
  func.func @transform_4(%arg0: i32, %arg1: i32) -> (i32, i32) {
    %c0_i32 = arith.constant 0 : i32
    %c0_i32_0 = arith.constant 0 : i32
    return %c0_i32, %arg1 : i32, i32
  }
  func.func @transform_5(%arg0: i32, %arg1: i32) -> (i32, i32) {
    %c0_i32 = arith.constant 0 : i32
    return %arg0, %arg1 : i32, i32
  }
}

module attributes {stable_mosaic.version = 11 : i64} {
  func.func @_matmul_kernel(%arg0: i32, %arg1: i32, %arg2: memref<16x256xbf16, #tpu.memory_space<vmem>>, %arg3: memref<256x128xbf16, #tpu.memory_space<vmem>>, %arg4: memref<1x128xf32, #tpu.memory_space<vmem>>, %arg5: memref<16x128xbf16, #tpu.memory_space<vmem>>, %arg6: memref<16x128xbf16, #tpu.memory_space<vmem>>) attributes {dimension_semantics = [#tpu.dimension_semantics<parallel>, #tpu.dimension_semantics<parallel>], iteration_bounds = array<i64: 1, 1>, scalar_prefetch = 0 : i64, scratch_operands = 0 : i64, tpu.core_type = #tpu.core_type<tc>, window_params = [{transform_indices = @transform_0, window_bounds = array<i64: 16, 256>}, {transform_indices = @transform_1, window_bounds = array<i64: 256, 128>}, {transform_indices = @transform_2, window_bounds = array<i64: 1, 128>}, {transform_indices = @transform_3, window_bounds = array<i64: 16, 128>}, {transform_indices = @transform_4, window_bounds = array<i64: 16, 128>}]} {
    %c0 = arith.constant 0 : index
    %c0_0 = arith.constant 0 : index
    %0 = vector.load %arg2[%c0, %c0_0] : memref<16x256xbf16, #tpu.memory_space<vmem>>, vector<16x256xbf16>
    %c0_1 = arith.constant 0 : index
    %c0_2 = arith.constant 0 : index
    %1 = vector.load %arg3[%c0_1, %c0_2] : memref<256x128xbf16, #tpu.memory_space<vmem>>, vector<256x128xbf16>
    %cst = arith.constant dense<0.000000e+00> : vector<16x128xf32>
    %2 = tpu.matmul %0, %1, %cst {dimension_numbers = #tpu.dot_dimension_numbers<[1], [0], [0], [1], [0, 0, 1, 1], [], []>} : vector<16x256xbf16>, vector<256x128xbf16>, vector<16x128xf32> -> vector<16x128xf32>
    %c0_3 = arith.constant 0 : index
    %c0_4 = arith.constant 0 : index
    %3 = vector.load %arg4[%c0_3, %c0_4] : memref<1x128xf32, #tpu.memory_space<vmem>>, vector<1x128xf32>
    %4 = vector.broadcast %3 : vector<1x128xf32> to vector<16x128xf32>
    %5 = arith.addf %2, %4 : vector<16x128xf32>
    %c0_5 = arith.constant 0 : index
    %c0_6 = arith.constant 0 : index
    %6 = vector.load %arg5[%c0_5, %c0_6] : memref<16x128xbf16, #tpu.memory_space<vmem>>, vector<16x128xbf16>
    %7 = arith.extf %6 : vector<16x128xbf16> to vector<16x128xf32>
    %8 = arith.addf %5, %7 : vector<16x128xf32>
    %9 = arith.truncf %8 : vector<16x128xf32> to vector<16x128xbf16>
    %c0_7 = arith.constant 0 : index
    %c0_8 = arith.constant 0 : index
    %10 = vector.load %arg6[%c0_7, %c0_8] : memref<16x128xbf16, #tpu.memory_space<vmem>>, vector<16x128xbf16>
    tpu.vector_store %arg6[%c0_7, %c0_8], %9 {strides = array<i32>} : memref<16x128xbf16, #tpu.memory_space<vmem>>, vector<16x128xbf16>,
    return
  }
  func.func @transform_0(%arg0: i32, %arg1: i32) -> (i32, i32) {
    %c0_i32 = arith.constant 0 : i32
    %c0_i32_0 = arith.constant 0 : i32
    return %arg0, %c0_i32 : i32, i32
  }
  func.func @transform_1(%arg0: i32, %arg1: i32) -> (i32, i32) {
    %c0_i32 = arith.constant 0 : i32
    %c0_i32_0 = arith.constant 0 : i32
    return %c0_i32, %arg1 : i32, i32
  }
  func.func @transform_2(%arg0: i32, %arg1: i32) -> (i32, i32) {
    %c0_i32 = arith.constant 0 : i32
    %c0_i32_0 = arith.constant 0 : i32
    return %c0_i32, %arg1 : i32, i32
  }
  func.func @transform_3(%arg0: i32, %arg1: i32) -> (i32, i32) {
    %c0_i32 = arith.constant 0 : i32
    return %arg0, %arg1 : i32, i32
  }
  func.func @transform_4(%arg0: i32, %arg1: i32) -> (i32, i32) {
    %c0_i32 = arith.constant 0 : i32
    return %arg0, %arg1 : i32, i32
  }
}

module attributes {stable_mosaic.version = 11 : i64} {
  func.func @_ln_matmul_kernel(%arg0: i32, %arg1: i32, %arg2: memref<8x128xbf16, #tpu.memory_space<vmem>>, %arg3: memref<1x128xf32, #tpu.memory_space<vmem>>, %arg4: memref<1x128xf32, #tpu.memory_space<vmem>>, %arg5: memref<128x128xbf16, #tpu.memory_space<vmem>>, %arg6: memref<1x128xf32, #tpu.memory_space<vmem>>, %arg7: memref<8x128xf32, #tpu.memory_space<vmem>>, %arg8: memref<8x128xbf16, #tpu.memory_space<vmem>>) attributes {dimension_semantics = [#tpu.dimension_semantics<parallel>, #tpu.dimension_semantics<arbitrary>], iteration_bounds = array<i64: 1, 1>, scalar_prefetch = 0 : i64, scratch_operands = 1 : i64, tpu.core_type = #tpu.core_type<tc>, window_params = [{transform_indices = @transform_0, window_bounds = array<i64: 8, 128>}, {pipeline_mode = #tpu.pipeline_mode<synchronous>, transform_indices = @transform_1, window_bounds = array<i64: 1, 128>}, {pipeline_mode = #tpu.pipeline_mode<synchronous>, transform_indices = @transform_2, window_bounds = array<i64: 1, 128>}, {transform_indices = @transform_3, window_bounds = array<i64: 128, 128>}, {transform_indices = @transform_4, window_bounds = array<i64: 1, 128>}, {transform_indices = @transform_5, window_bounds = array<i64: 8, 128>}]} {
    %c0_i32 = arith.constant 0 : i32
    %0 = arith.cmpi eq, %arg1, %c0_i32 : i32
    %1 = arith.extui %0 : i1 to i32
    %c0_i32_0 = arith.constant 0 : i32
    %2 = arith.cmpi ne, %1, %c0_i32_0 : i32
    scf.if %2 {
      %c0_8 = arith.constant 0 : index
      %c0_9 = arith.constant 0 : index
      %10 = vector.load %arg2[%c0_8, %c0_9] : memref<8x128xbf16, #tpu.memory_space<vmem>>, vector<8x128xbf16>
      %11 = arith.extf %10 : vector<8x128xbf16> to vector<8x128xf32>
      %cst_10 = arith.constant dense<0.000000e+00> : vector<8xf32>
      %12 = vector.multi_reduction <add>, %11, %cst_10 [1] : vector<8x128xf32> to vector<8xf32>
      %13 = vector.shape_cast %12 : vector<8xf32> to vector<8x1xf32>
      %cst_11 = arith.constant 1.280000e+02 : f32
      %14 = vector.broadcast %cst_11 : f32 to vector<8x1xf32>
      %15 = arith.divf %13, %14 : vector<8x1xf32>
      %16 = vector.broadcast %15 : vector<8x1xf32> to vector<8x128xf32>
      %17 = arith.subf %11, %16 : vector<8x128xf32>
      %18 = arith.mulf %17, %17 : vector<8x128xf32>
      %cst_12 = arith.constant dense<0.000000e+00> : vector<8xf32>
      %19 = vector.multi_reduction <add>, %18, %cst_12 [1] : vector<8x128xf32> to vector<8xf32>
      %20 = vector.shape_cast %19 : vector<8xf32> to vector<8x1xf32>
      %cst_13 = arith.constant 1.280000e+02 : f32
      %21 = vector.broadcast %cst_13 : f32 to vector<8x1xf32>
      %22 = arith.divf %20, %21 : vector<8x1xf32>
      %cst_14 = arith.constant 9.99999997E-7 : f32
      %23 = vector.broadcast %cst_14 : f32 to vector<8x1xf32>
      %24 = arith.addf %22, %23 : vector<8x1xf32>
      %25 = math.rsqrt %24 : vector<8x1xf32>
      %26 = vector.broadcast %25 : vector<8x1xf32> to vector<8x128xf32>
      %27 = arith.mulf %17, %26 : vector<8x128xf32>
      %c0_15 = arith.constant 0 : index
      %c0_16 = arith.constant 0 : index
      %28 = vector.load %arg3[%c0_15, %c0_16] : memref<1x128xf32, #tpu.memory_space<vmem>>, vector<1x128xf32>
      %29 = vector.broadcast %28 : vector<1x128xf32> to vector<8x128xf32>
      %30 = arith.mulf %27, %29 : vector<8x128xf32>
      %c0_17 = arith.constant 0 : index
      %c0_18 = arith.constant 0 : index
      %31 = vector.load %arg4[%c0_17, %c0_18] : memref<1x128xf32, #tpu.memory_space<vmem>>, vector<1x128xf32>
      %32 = vector.broadcast %31 : vector<1x128xf32> to vector<8x128xf32>
      %33 = arith.addf %30, %32 : vector<8x128xf32>
      %34 = arith.truncf %33 : vector<8x128xf32> to vector<8x128xbf16>
      %c0_19 = arith.constant 0 : index
      %c0_20 = arith.constant 0 : index
      %35 = vector.load %arg8[%c0_19, %c0_20] : memref<8x128xbf16, #tpu.memory_space<vmem>>, vector<8x128xbf16>
      tpu.vector_store %arg8[%c0_19, %c0_20], %34 {strides = array<i32>} : memref<8x128xbf16, #tpu.memory_space<vmem>>, vector<8x128xbf16>,
    } else {
    }
    %c0 = arith.constant 0 : index
    %c0_1 = arith.constant 0 : index
    %3 = vector.load %arg8[%c0, %c0_1] : memref<8x128xbf16, #tpu.memory_space<vmem>>, vector<8x128xbf16>
    %c0_2 = arith.constant 0 : index
    %c0_3 = arith.constant 0 : index
    %4 = vector.load %arg5[%c0_2, %c0_3] : memref<128x128xbf16, #tpu.memory_space<vmem>>, vector<128x128xbf16>
    %cst = arith.constant dense<0.000000e+00> : vector<8x128xf32>
    %5 = tpu.matmul %3, %4, %cst {dimension_numbers = #tpu.dot_dimension_numbers<[1], [0], [0], [1], [0, 0, 1, 1], [], []>} : vector<8x128xbf16>, vector<128x128xbf16>, vector<8x128xf32> -> vector<8x128xf32>
    %c0_4 = arith.constant 0 : index
    %c0_5 = arith.constant 0 : index
    %6 = vector.load %arg6[%c0_4, %c0_5] : memref<1x128xf32, #tpu.memory_space<vmem>>, vector<1x128xf32>
    %7 = vector.broadcast %6 : vector<1x128xf32> to vector<8x128xf32>
    %8 = arith.addf %5, %7 : vector<8x128xf32>
    %c0_6 = arith.constant 0 : index
    %c0_7 = arith.constant 0 : index
    %9 = vector.load %arg7[%c0_6, %c0_7] : memref<8x128xf32, #tpu.memory_space<vmem>>, vector<8x128xf32>
    tpu.vector_store %arg7[%c0_6, %c0_7], %8 {strides = array<i32>} : memref<8x128xf32, #tpu.memory_space<vmem>>, vector<8x128xf32>,
    return
  }
  func.func @transform_0(%arg0: i32, %arg1: i32) -> (i32, i32) {
    %c0_i32 = arith.constant 0 : i32
    %c0_i32_0 = arith.constant 0 : i32
    return %arg0, %c0_i32 : i32, i32
  }
  func.func @transform_1(%arg0: i32, %arg1: i32) -> (i32, i32) {
    %c0_i32 = arith.constant 0 : i32
    %c0_i32_0 = arith.constant 0 : i32
    %c0_i32_1 = arith.constant 0 : i32
    return %c0_i32, %c0_i32_0 : i32, i32
  }
  func.func @transform_2(%arg0: i32, %arg1: i32) -> (i32, i32) {
    %c0_i32 = arith.constant 0 : i32
    %c0_i32_0 = arith.constant 0 : i32
    %c0_i32_1 = arith.constant 0 : i32
    return %c0_i32, %c0_i32_0 : i32, i32
  }
  func.func @transform_3(%arg0: i32, %arg1: i32) -> (i32, i32) {
    %c0_i32 = arith.constant 0 : i32
    %c0_i32_0 = arith.constant 0 : i32
    return %c0_i32, %arg1 : i32, i32
  }
  func.func @transform_4(%arg0: i32, %arg1: i32) -> (i32, i32) {
    %c0_i32 = arith.constant 0 : i32
    %c0_i32_0 = arith.constant 0 : i32
    return %c0_i32, %arg1 : i32, i32
  }
  func.func @transform_5(%arg0: i32, %arg1: i32) -> (i32, i32) {
    %c0_i32 = arith.constant 0 : i32
    return %arg0, %arg1 : i32, i32
  }
}

</mosaic_0001>

<llo_original>
// kernel: vit_forward.15
$region0: #{vit_forward.15}
  #allocation0 [shape = 'u32[]', space=smem, size = 0x4, offset = 0x4, fixed_abs, tag = 'smem constant byte address 0x4 - core index']
  #allocation1 [shape = 'u32[144,128]{1,0:T(1,128)}', space=vmem, size = 0x12000, scoped, tag = 'internal scratch']
  %s0 = inlined_call_operand.vmem [shape: bf16[16,128], index: 0, kind: input, shape index: {}]
  %s1 = inlined_call_operand.vmem [shape: bf16[128,128], index: 1, kind: input, shape index: {}]
  %s2 = inlined_call_operand.vmem [shape: f32[1,128], index: 2, kind: input, shape index: {}]
  %s3 = inlined_call_operand.vmem [shape: bf16[16,128], index: 3, kind: input, shape index: {}]
  %s4 = inlined_call_operand.vmem [shape: bf16[16,128], index: 4, kind: output, shape index: {}]
  %s5 = sld [smem:[#allocation0]]
  $region26: #{vit_forward.15} parent=0
    _
  %s7 = ssub.s32 1, %s5
  %s8 = scalar_select 0, %s7, %s5
  // Predicated region
  $region2: #{vit_forward.15} parent=0 // pred_check
    _
  $region3: #{vit_forward.15} parent=0 // pred_check_branch
    %10 = sbr.rel (0) target = $region5
  $region4: #{vit_forward.15} parent=0 // pred_region
    _
  $region5: #{vit_forward.15} parent=0 // pred_fallthru
    _
  // Predicated region
  $region6: #{vit_forward.15} parent=0 // pred_check
    _
  $region7: #{vit_forward.15} parent=0 // pred_check_branch
    %12 = sbr.rel (0) target = $region9
  $region8: #{vit_forward.15} parent=0 // pred_region
    _
  $region9: #{vit_forward.15} parent=0 // pred_fallthru
    _
  // Predicated region
  $region10: #{vit_forward.15} parent=0 // pred_check
    _
  $region11: #{vit_forward.15} parent=0 // pred_check_branch
    %14 = sbr.rel (0) target = $region13
  $region12: #{vit_forward.15} parent=0 // pred_region
    _
  $region13: #{vit_forward.15} parent=0 // pred_fallthru
    _
  // Predicated region
  $region14: #{vit_forward.15} parent=0 // pred_check
    _
  $region15: #{vit_forward.15} parent=0 // pred_check_branch
    %16 = sbr.rel (0) target = $region17
  $region16: #{vit_forward.15} parent=0 // pred_region
    _
  $region17: #{vit_forward.15} parent=0 // pred_fallthru
    _
  %v18 = vld [vmem:[%s0] sm:$0xf]
  %v19 = vld [vmem:[%s0 + $0x4] sm:$0xf]
  %v20 = vld [vmem:[%s1] sm:$0xf]
  %v21 = vld [vmem:[%s1 + $0x4] sm:$0xf]
  %v22 = vld [vmem:[%s1 + $0x8] sm:$0xf]
  %v23 = vld [vmem:[%s1 + $0xc] sm:$0xf]
  %v24 = vld [vmem:[%s1 + $0x10] sm:$0xf]
  %v25 = vld [vmem:[%s1 + $0x14] sm:$0xf]
  %v26 = vld [vmem:[%s1 + $0x18] sm:$0xf]
  %v27 = vld [vmem:[%s1 + $0x1c] sm:$0xf]
  %v28 = vld [vmem:[%s1 + $0x20] sm:$0xf]
  %v29 = vld [vmem:[%s1 + $0x24] sm:$0xf]
  %v30 = vld [vmem:[%s1 + $0x28] sm:$0xf]
  %v31 = vld [vmem:[%s1 + $0x2c] sm:$0xf]
  %v32 = vld [vmem:[%s1 + $0x30] sm:$0xf]
  %v33 = vld [vmem:[%s1 + $0x34] sm:$0xf]
  %v34 = vld [vmem:[%s1 + $0x38] sm:$0xf]
  %v35 = vld [vmem:[%s1 + $0x3c] sm:$0xf]
  %v36 = vld [vmem:[%s2] sm:$0x1]
  %v38 = vlaneseq
  %v39 = vshrl.u32 %v38, 7
  %v40 = vsub.s32 0, %v39
  %v41 = vrot.slane %v36, %v40
  %v45 = vunpack.c.l.b16 %v18
  %v46 = vunpack.c.l.b16 %v19
  %v47 = vpack.c.b16 %v46, %v45
  %v65 = vunpack.c.l.b16 %v20
  %v66 = vunpack.c.l.b16 %v21
  %v67 = vunpack.c.l.b16 %v22
  %v68 = vunpack.c.l.b16 %v23
  %v69 = vunpack.c.l.b16 %v24
  %v70 = vunpack.c.l.b16 %v25
  %v71 = vunpack.c.l.b16 %v26
  %v72 = vunpack.c.l.b16 %v27
  %v73 = vunpack.c.l.b16 %v28
  %v74 = vunpack.c.l.b16 %v29
  %v75 = vunpack.c.l.b16 %v30
  %v76 = vunpack.c.l.b16 %v31
  %v77 = vunpack.c.l.b16 %v32
  %v78 = vunpack.c.l.b16 %v33
  %v79 = vunpack.c.l.b16 %v34
  %v80 = vunpack.c.l.b16 %v35
  %v81 = vpack.c.b16 %v66, %v65
  %v82 = vpack.c.b16 %v68, %v67
  %v83 = vpack.c.b16 %v70, %v69
  %v84 = vpack.c.b16 %v72, %v71
  %v85 = vpack.c.b16 %v74, %v73
  %v86 = vpack.c.b16 %v76, %v75
  %v87 = vpack.c.b16 %v78, %v77
  %v88 = vpack.c.b16 %v80, %v79
  %97 = vmatprep.subr.bf16.mxu0 0
  %98 = vmatpush1.bf16.msra.mxu0 %v81
  %99 = vmatprep.subr.bf16.mxu0 0
  %100 = vmatpush1.bf16.msra.mxu0 %v82
  %101 = vmatprep.subr.bf16.mxu0 0
  %102 = vmatpush1.bf16.msra.mxu0 %v83
  %103 = vmatprep.subr.bf16.mxu0 0
  %104 = vmatpush1.bf16.msra.mxu0 %v84
  %105 = vmatprep.subr.bf16.mxu0 0
  %106 = vmatpush1.bf16.msra.mxu0 %v85
  %107 = vmatprep.subr.bf16.mxu0 0
  %108 = vmatpush1.bf16.msra.mxu0 %v86
  %109 = vmatprep.subr.bf16.mxu0 0
  %110 = vmatpush1.bf16.msra.mxu0 %v87
  %111 = vmatprep.subr.bf16.mxu0 0
  %112 = vmatpush1.bf16.msra.mxu0 %v88
  %113 = vmatprep.subr.bf16.mxu0 0
  %114 = vmatpush1.bf16.msra.mxu0 0
  %115 = vmatprep.subr.bf16.mxu0 0
  %116 = vmatpush1.bf16.msra.mxu0 0
  %117 = vmatprep.subr.bf16.mxu0 0
  %118 = vmatpush1.bf16.msra.mxu0 0
  %119 = vmatprep.subr.bf16.mxu0 0
  %120 = vmatpush1.bf16.msra.mxu0 0
  %121 = vmatprep.subr.bf16.mxu0 0
  %122 = vmatpush1.bf16.msra.mxu0 0
  %123 = vmatprep.subr.bf16.mxu0 0
  %124 = vmatpush1.bf16.msra.mxu0 0
  %125 = vmatprep.subr.bf16.mxu0 0
  %126 = vmatpush1.bf16.msra.mxu0 0
  %127 = vmatprep.subr.bf16.mxu0 0
  %128 = vmatpush1.bf16.msra.mxu0 0
  %129 = vmatprep.mubr.bf16.mxu0 0
  %130 = vmatmul.mubr.bf16.gmra.mrb[0].mxu0 %v47
  %v131 = vpop.f32.mrb[0].mxu0
  %v132 = vadd.f32 %v41, %v131
  %v133 = vpop.f32.mrb[0].mxu0
  %v134 = vpop.f32.mrb[0].mxu0
  %v135 = vadd.f32 %v41, %v134
  %v136 = vpop.f32.mrb[0].mxu0
  %137 = vdwg.mxu0
  %v138 = vld [vmem:[%s3] sm:$0xf]
  %v139 = vld [vmem:[%s3 + $0x4] sm:$0xf]
  %v140 = vunpack.c.l.bf16 %v138
  %v141 = vunpack.c.l.bf16 %v139
  %v142 = vadd.f32 %v132, %v140
  %v143 = vadd.f32 %v135, %v141
  %v144 = vpack.c.bf16 %v143, %v142
  %v146 = vunpack.c.l.b16 %v144
  %v147 = vunpack.c.h.b16 %v144
  %v148 = vpack.c.b16 %v146, %v146
  %v149 = vpack.c.b16 %v147, %v147
  %152 = vst [vmem:[%s4] sm:$0xf] %v148
  %153 = vst [vmem:[%s4 + $0x4] sm:$0xf] %v149
  // Predicated region
  $region18: #{vit_forward.15} parent=0 // pred_check
    _
  $region19: #{vit_forward.15} parent=0 // pred_check_branch
    %155 = sbr.rel (0) target = $region21
  $region20: #{vit_forward.15} parent=0 // pred_region
    _
  $region21: #{vit_forward.15} parent=0 // pred_fallthru
    _
  // Predicated region
  $region22: #{vit_forward.15} parent=0 // pred_check
    _
  $region23: #{vit_forward.15} parent=0 // pred_check_branch
    %157 = sbr.rel (0) target = $region25
  $region24: #{vit_forward.15} parent=0 // pred_region
    _
  $region25: #{vit_forward.15} parent=0 // pred_fallthru
    _

// kernel: vit_forward.14
$region0: #{vit_forward.14}
  #allocation0 [shape = 'u32[]', space=smem, size = 0x4, offset = 0x4, fixed_abs, tag = 'smem constant byte address 0x4 - core index']
  #allocation1 [shape = 'u32[144,128]{1,0:T(1,128)}', space=vmem, size = 0x12000, scoped, tag = 'internal scratch']
  %s0 = inlined_call_operand.vmem [shape: bf16[2,8,384], index: 0, kind: input, shape index: {}]
  %s1 = inlined_call_operand.vmem [shape: bf16[2,8,128], index: 1, kind: output, shape index: {}]
  %s2 = sld [smem:[#allocation0]]
  $region37: #{vit_forward.14} parent=0
    _
  %s4 = ssub.s32 1, %s2
  %s5 = scalar_select 0, %s4, %s2
  loop: start=0, step=1, limit=4
  $region2: #{vit_forward.14} parent=0 // loop_pre_header
    _
  $region3: #{vit_forward.14} parent=0 // loop_header
    %s7 = sphi 0, %s11
    %p8 = scmp.ge.s32.totalorder %s7, 4
    %s14 = sphi 0, %s26
    %s15 = sphi 0, %s22
    %s16 = sphi 0, %s14
    %s17 = sphi 0, %s15
    %s18 = sphi 0, %s16
    %s19 = sphi 0, %s17
    %s31 = sphi 0, %s33
    %s34 = sphi 0, %s31
    %s35 = sphi 0, %s34
    %s51 = sphi 0, %s35
    %s59 = sphi 0, %s61
    %s62 = sphi 0, %s59
    %s63 = sphi 0, %s62
    %s79 = sphi 0, %s63
  $region4: #{vit_forward.14} parent=0 // loop_header_branch
    %10 = sbr.rel (%p8) target = $region8
  $region5: #{vit_forward.14} parent=0 // loop_body
    %s12 = ssub.s32 %s7, 1
    %s13 = ssub.s32 %s7, 2
    %s20 = sadd.s32 1, %s15
    %p21 = scmp.ge.s32.totalorder %s20, 1
    %s22 = scalar_select %p21, 0, %s20
    %s23 = sadd.s32 1, %s14
    %s24 = scalar_select %p21, %s23, %s14
    %p25 = scmp.ge.s32.totalorder %s24, 2
    %s26 = scalar_select %p25, 0, %s24
    %s27 = ssub.s32 %s14, %s26
    %s28 = ssub.s32 %s15, %s22
    %s29 = sor.u32 %s27, %s28
    %p30 = scmp.eq.s32.totalorder %s29, 0
    %s32 = sadd.s32 %s31, 1
    %s33 = scalar_select %p30, %s31, %s32
    %p36 = pneg %p30
    %p37 = scmp.eq.s32.totalorder %s7, 1
    %p38 = por %p36, %p37
    %p39 = scmp.ne.s32.totalorder %s31, %s34
    %p40 = scmp.eq.s32.totalorder %s7, 0
    %p41 = por %p39, %p40
    %p42 = scmp.ne.s32.totalorder %s31, %s34
    %p43 = scmp.eq.s32.totalorder %s12, 1
    %p44 = por %p42, %p43
    %p45 = scmp.ne.s32.totalorder %s34, %s35
    %p46 = scmp.eq.s32.totalorder %s12, 0
    %p47 = por %p45, %p46
    %p48 = scmp.ne.s32.totalorder %s34, %s35
    %p49 = scmp.eq.s32.totalorder %s13, 1
    %p50 = por %p48, %p49
    %p52 = scmp.ne.s32.totalorder %s35, %s51
    %p53 = scmp.eq.s32.totalorder %s13, 0
    %p54 = por %p52, %p53
    %s55 = ssub.s32 %s14, %s26
    %s56 = ssub.s32 %s15, %s22
    %s57 = sor.u32 %s55, %s56
    %p58 = scmp.eq.s32.totalorder %s57, 0
    %s60 = sadd.s32 %s59, 1
    %s61 = scalar_select %p58, %s59, %s60
    %p64 = pneg %p58
    %p65 = scmp.eq.s32.totalorder %s7, 1
    %p66 = por %p64, %p65
    %p67 = scmp.ne.s32.totalorder %s59, %s62
    %p68 = scmp.eq.s32.totalorder %s7, 0
    %p69 = por %p67, %p68
    %p70 = scmp.ne.s32.totalorder %s59, %s62
    %p71 = scmp.eq.s32.totalorder %s12, 1
    %p72 = por %p70, %p71
    %p73 = scmp.ne.s32.totalorder %s62, %s63
    %p74 = scmp.eq.s32.totalorder %s12, 0
    %p75 = por %p73, %p74
    %p76 = scmp.ne.s32.totalorder %s62, %s63
    %p77 = scmp.eq.s32.totalorder %s13, 1
    %p78 = por %p76, %p77
    %p80 = scmp.ne.s32.totalorder %s63, %s79
    %p81 = scmp.eq.s32.totalorder %s13, 0
    %p82 = por %p80, %p81
    %p83 = scmp.le.s32.totalorder 1, %s7
    %p84 = scmp.lt.s32.totalorder %s7, 3
    %p85 = pnand %p83, %p84
    %p86 = pneg %p85
    // Predicated region
    $region9: #{vit_forward.14} parent=5 // pred_check
      _
    $region10: #{vit_forward.14} parent=5 // pred_check_branch
      %88 = sbr.rel (%p85) target = $region12
    $region11: #{vit_forward.14} parent=5 // pred_region
      %s89 = ssub.s32 %s7, 1
    $region12: #{vit_forward.14} parent=5 // pred_fallthru
      _
    %p90 = scmp.lt.s32.totalorder %s7, 2
    // Predicated region
    $region13: #{vit_forward.14} parent=5 // pred_check
      %p91 = pneg %p90
    $region14: #{vit_forward.14} parent=5 // pred_check_branch
      %93 = sbr.rel (%p91) target = $region16
    $region15: #{vit_forward.14} parent=5 // pred_region
      // Predicated region
      $region17: #{vit_forward.14} parent=15 // pred_check
        %p94 = pneg %p41
      $region18: #{vit_forward.14} parent=15 // pred_check_branch
        %96 = sbr.rel (%p94) target = $region20
      $region19: #{vit_forward.14} parent=15 // pred_region
        %s97 = smul.u32 3, %s15
        %p98 = scmp.lt.s32.totalorder %s14, 1
        %s99 = scalar_select %p98, %s14, 1
        %p100 = scmp.lt.s32.totalorder %s97, 2
        %s101 = scalar_select %p100, %s97, 2
        %s102 = smul.addr %s99, 3
        %s103 = sadd.s32 %s101, %s102
        %s104 = smul.addr %s103, 4
        %s105 = scalar_lea.vmem %s0, %s104
        %s106 = smul.u32 3, %s15
      $region20: #{vit_forward.14} parent=15 // pred_fallthru
        _
    $region16: #{vit_forward.14} parent=5 // pred_fallthru
      _
    %p107 = scmp.le.s32.totalorder 1, %s7
    %p108 = scmp.lt.s32.totalorder %s7, 3
    %p109 = pnand %p107, %p108
    %p110 = pneg %p109
    // Predicated region
    $region21: #{vit_forward.14} parent=5 // pred_check
      _
    $region22: #{vit_forward.14} parent=5 // pred_check_branch
      %112 = sbr.rel (%p109) target = $region24
    $region23: #{vit_forward.14} parent=5 // pred_region
      %s113 = ssub.s32 %s7, 1
      %s114 = smul.u32 3, %s17
      %p115 = scmp.lt.s32.totalorder %s16, 1
      %s116 = scalar_select %p115, %s16, 1
      %p117 = scmp.lt.s32.totalorder %s114, 2
      %s118 = scalar_select %p117, %s114, 2
      %s119 = smul.addr %s116, 3
      %s120 = sadd.s32 %s118, %s119
      %s121 = smul.addr %s120, 4
      %s122 = scalar_lea.vmem %s0, %s121
      %p123 = pneg %p47
      %p124 = pneg %p44
      %p125 = pneg %p75
      %p126 = pneg %p72
      %p127 = scmp.lt.s32.totalorder %s16, 1
      %s128 = scalar_select %p127, %s16, 1
      %p129 = scmp.lt.s32.totalorder %s17, 0
      %s130 = scalar_select %p129, %s17, 0
      %s131 = sadd.s32 %s130, %s128
      %s132 = smul.addr %s131, 4
      %s133 = scalar_lea.vmem %s1, %s132
      %s134 = smul.u32 3, %s17
      %p135 = scmp.lt.s32.totalorder %s16, 1
      %s136 = scalar_select %p135, %s16, 1
      %p137 = scmp.lt.s32.totalorder %s134, 2
      %s138 = scalar_select %p137, %s134, 2
      %s139 = smul.addr %s136, 3
      %s140 = sadd.s32 %s138, %s139
      %s141 = smul.addr %s140, 4
      %s142 = scalar_lea.vmem %s0, %s141
      %s143 = smul.u32 3, %s17
      %p144 = scmp.lt.s32.totalorder %s16, 1
      %s145 = scalar_select %p144, %s16, 1
      %p146 = scmp.lt.s32.totalorder %s17, 0
      %s147 = scalar_select %p146, %s17, 0
      %s148 = sadd.s32 %s147, %s145
      %s149 = smul.addr %s148, 4
      %s150 = scalar_lea.vmem %s1, %s149
      %v152 = vld [vmem:[%s142] sm:$0xff]
      %v153 = vld [vmem:[%s142 + $0x8] sm:$0xf]
      %v154 = vlaneseq
      %v155 = vand.u32 %v154, 127
      %vm156 = vcmp.lt.s32.totalorder %v155, 5
      %v158 = vunpack.c.h.b16 %v152
      %v159 = vpack.c.b16 %v158, %v158
      %vm160 = vcmask 261120
      %v162 = vsel %vm160, %v152, 0
      %v165 = vsel %vm160, %v159, 0
      %167 = vmatprep.subr.bf16.mxu0 0
      %168 = vmatpush1.bf16.xpose.msra.mxu0 %v165
      %169 = vmatprep.subr.bf16.mxu0 0
      %170 = vmatpush1.bf16.xpose.msra.mxu0 0
      %171 = vmatprep.subr.bf16.mxu0 0
      %172 = vmatpush1.bf16.xpose.msra.mxu0 0
      %173 = vmatprep.subr.bf16.mxu0 0
      %174 = vmatpush1.bf16.xpose.msra.mxu0 0
      %175 = vmatprep.subr.bf16.mxu0 0
      %176 = vmatpush1.bf16.xpose.msra.mxu0 0
      %177 = vmatprep.subr.bf16.mxu0 0
      %178 = vmatpush1.bf16.xpose.msra.mxu0 0
      %179 = vmatprep.subr.bf16.mxu0 0
      %180 = vmatpush1.bf16.xpose.msra.mxu0 0
      %181 = vmatprep.subr.bf16.mxu0 0
      %182 = vmatpush1.bf16.xpose.msra.mxu0 0
      %183 = vmatprep.subr.bf16.mxu0 0
      %184 = vmatpush1.bf16.xpose.msra.mxu0 0
      %185 = vmatprep.subr.bf16.mxu0 0
      %186 = vmatpush1.bf16.xpose.msra.mxu0 0
      %187 = vmatprep.subr.bf16.mxu0 0
      %188 = vmatpush1.bf16.xpose.msra.mxu0 0
      %189 = vmatprep.subr.bf16.mxu0 0
      %190 = vmatpush1.bf16.xpose.msra.mxu0 0
      %191 = vmatprep.subr.bf16.mxu0 0
      %192 = vmatpush1.bf16.xpose.msra.mxu0 0
      %193 = vmatprep.subr.bf16.mxu0 0
      %194 = vmatpush1.bf16.xpose.msra.mxu0 0
      %195 = vmatprep.subr.bf16.mxu0 0
      %196 = vmatpush1.bf16.xpose.msra.mxu0 0
      %197 = vmatprep.subr.bf16.mxu0 0
      %198 = vmatpush1.bf16.xpose.msra.mxu0 0
      %199 = vmatprep.mubr.bf16.mxu0 0
      %200 = vmatmul.mubr.bf16.gmra.mrb[0].mxu0 %v162
      %v201 = vpop.f32.mrb[0].mxu0
      %v202 = vadd.f32 0.0, %v201
      %v203 = vpop.f32.mrb[0].mxu0
      %v204 = vpop.f32.mrb[0].mxu0
      %v205 = vpop.f32.mrb[0].mxu0
      %206 = vdwg.mxu0
      %v207 = vmul.f32 %v202, 0.17677669
      %v208 = vsel %vm156, %v207, -1e+30
      %vm209 = vcmask 64512
      %v210 = vsel %vm209, %v208, -inf
      %211 = vmax.xlane.f32.xlu0 %v210
      %v212 = vpop.xlane.xlu0 %211
      %v213 = vsub.f32 %v208, %v212
      %v214 = vmul.f32 %v213, 1.442695
      %v215 = vpow.pop %v214
      %v216 = vsel %vm209, %v215, 0.0
      %217 = vadd.xlane.f32.xlu0 %v216
      %v218 = vpop.xlane.xlu0 %217
      %v219 = vrcp.pop %v218
      %v220 = vmul.f32 %v215, %v219
      %v221 = vpack.c.bf16 %v220, %v220
      %v223 = vsel %vm209, %v221, 0
      %vm225 = vcmask 1043456
      %v227 = vsel %vm225, %v153, 0
      %229 = vmatprep.subr.bf16.mxu0 0
      %230 = vmatpush1.bf16.msra.mxu0 %v227
      %231 = vmatprep.subr.bf16.mxu0 0
      %232 = vmatpush1.bf16.msra.mxu0 0
      %233 = vmatprep.subr.bf16.mxu0 0
      %234 = vmatpush1.bf16.msra.mxu0 0
      %235 = vmatprep.subr.bf16.mxu0 0
      %236 = vmatpush1.bf16.msra.mxu0 0
      %237 = vmatprep.subr.bf16.mxu0 0
      %238 = vmatpush1.bf16.msra.mxu0 0
      %239 = vmatprep.subr.bf16.mxu0 0
      %240 = vmatpush1.bf16.msra.mxu0 0
      %241 = vmatprep.subr.bf16.mxu0 0
      %242 = vmatpush1.bf16.msra.mxu0 0
      %243 = vmatprep.subr.bf16.mxu0 0
      %244 = vmatpush1.bf16.msra.mxu0 0
      %245 = vmatprep.subr.bf16.mxu0 0
      %246 = vmatpush1.bf16.msra.mxu0 0
      %247 = vmatprep.subr.bf16.mxu0 0
      %248 = vmatpush1.bf16.msra.mxu0 0
      %249 = vmatprep.subr.bf16.mxu0 0
      %250 = vmatpush1.bf16.msra.mxu0 0
      %251 = vmatprep.subr.bf16.mxu0 0
      %252 = vmatpush1.bf16.msra.mxu0 0
      %253 = vmatprep.subr.bf16.mxu0 0
      %254 = vmatpush1.bf16.msra.mxu0 0
      %255 = vmatprep.subr.bf16.mxu0 0
      %256 = vmatpush1.bf16.msra.mxu0 0
      %257 = vmatprep.subr.bf16.mxu0 0
      %258 = vmatpush1.bf16.msra.mxu0 0
      %259 = vmatprep.subr.bf16.mxu0 0
      %260 = vmatpush1.bf16.msra.mxu0 0
      %261 = vmatprep.mubr.bf16.mxu0 0
      %262 = vmatmul.mubr.bf16.gmra.mrb[0].mxu0 %v223
      %v263 = vpop.f32.mrb[0].mxu0
      %v264 = vadd.f32 0.0, %v263
      %v265 = vpop.f32.mrb[0].mxu0
      %v266 = vpop.f32.mrb[0].mxu0
      %v267 = vpop.f32.mrb[0].mxu0
      %268 = vdwg.mxu0
      %v269 = vunpack.c.l.b16 %v152
      %v270 = vpack.c.b16 %v269, %v269
      %271 = vrot.lane.b32.xlu0 %v270, 96
      %v272 = vpop.permute.xlu0 %271
      %273 = vrot.lane.b32.xlu0 %v159, 96
      %v274 = vpop.permute.xlu0 %273
      %v276 = vsel %vm160, %v272, 0
      %v279 = vsel %vm160, %v274, 0
      %281 = vmatprep.subr.bf16.mxu0 0
      %282 = vmatpush1.bf16.xpose.msra.mxu0 %v279
      %283 = vmatprep.subr.bf16.mxu0 0
      %284 = vmatpush1.bf16.xpose.msra.mxu0 0
      %285 = vmatprep.subr.bf16.mxu0 0
      %286 = vmatpush1.bf16.xpose.msra.mxu0 0
      %287 = vmatprep.subr.bf16.mxu0 0
      %288 = vmatpush1.bf16.xpose.msra.mxu0 0
      %289 = vmatprep.subr.bf16.mxu0 0
      %290 = vmatpush1.bf16.xpose.msra.mxu0 0
      %291 = vmatprep.subr.bf16.mxu0 0
      %292 = vmatpush1.bf16.xpose.msra.mxu0 0
      %293 = vmatprep.subr.bf16.mxu0 0
      %294 = vmatpush1.bf16.xpose.msra.mxu0 0
      %295 = vmatprep.subr.bf16.mxu0 0
      %296 = vmatpush1.bf16.xpose.msra.mxu0 0
      %297 = vmatprep.subr.bf16.mxu0 0
      %298 = vmatpush1.bf16.xpose.msra.mxu0 0
      %299 = vmatprep.subr.bf16.mxu0 0
      %300 = vmatpush1.bf16.xpose.msra.mxu0 0
      %301 = vmatprep.subr.bf16.mxu0 0
      %302 = vmatpush1.bf16.xpose.msra.mxu0 0
      %303 = vmatprep.subr.bf16.mxu0 0
      %304 = vmatpush1.bf16.xpose.msra.mxu0 0
      %305 = vmatprep.subr.bf16.mxu0 0
      %306 = vmatpush1.bf16.xpose.msra.mxu0 0
      %307 = vmatprep.subr.bf16.mxu0 0
      %308 = vmatpush1.bf16.xpose.msra.mxu0 0
      %309 = vmatprep.subr.bf16.mxu0 0
      %310 = vmatpush1.bf16.xpose.msra.mxu0 0
      %311 = vmatprep.subr.bf16.mxu0 0
      %312 = vmatpush1.bf16.xpose.msra.mxu0 0
      %313 = vmatprep.mubr.bf16.mxu0 0
      %314 = vmatmul.mubr.bf16.gmra.mrb[0].mxu0 %v276
      %v315 = vpop.f32.mrb[0].mxu0
      %v316 = vadd.f32 0.0, %v315
      %v317 = vpop.f32.mrb[0].mxu0
      %v318 = vpop.f32.mrb[0].mxu0
      %v319 = vpop.f32.mrb[0].mxu0
      %320 = vdwg.mxu0
      %v321 = vmul.f32 %v316, 0.17677669
      %v322 = vsel %vm156, %v321, -1e+30
      %v323 = vsel %vm209, %v322, -inf
      %324 = vmax.xlane.f32.xlu0 %v323
      %v325 = vpop.xlane.xlu0 %324
      %v326 = vsub.f32 %v322, %v325
      %v327 = vmul.f32 %v326, 1.442695
      %v328 = vpow.pop %v327
      %v329 = vsel %vm209, %v328, 0.0
      %330 = vadd.xlane.f32.xlu0 %v329
      %v331 = vpop.xlane.xlu0 %330
      %v332 = vrcp.pop %v331
      %v333 = vmul.f32 %v328, %v332
      %v334 = vpack.c.bf16 %v333, %v333
      %v336 = vunpack.c.l.b16 %v153
      %v337 = vpack.c.b16 %v336, %v336
      %338 = vrot.lane.b32.xlu0 %v337, 96
      %v339 = vpop.permute.xlu0 %338
      %v341 = vsel %vm209, %v334, 0
      %v344 = vsel %vm225, %v339, 0
      %346 = vmatprep.subr.bf16.mxu0 0
      %347 = vmatpush1.bf16.msra.mxu0 %v344
      %348 = vmatprep.subr.bf16.mxu0 0
      %349 = vmatpush1.bf16.msra.mxu0 0
      %350 = vmatprep.subr.bf16.mxu0 0
      %351 = vmatpush1.bf16.msra.mxu0 0
      %352 = vmatprep.subr.bf16.mxu0 0
      %353 = vmatpush1.bf16.msra.mxu0 0
      %354 = vmatprep.subr.bf16.mxu0 0
      %355 = vmatpush1.bf16.msra.mxu0 0
      %356 = vmatprep.subr.bf16.mxu0 0
      %357 = vmatpush1.bf16.msra.mxu0 0
      %358 = vmatprep.subr.bf16.mxu0 0
      %359 = vmatpush1.bf16.msra.mxu0 0
      %360 = vmatprep.subr.bf16.mxu0 0
      %361 = vmatpush1.bf16.msra.mxu0 0
      %362 = vmatprep.subr.bf16.mxu0 0
      %363 = vmatpush1.bf16.msra.mxu0 0
      %364 = vmatprep.subr.bf16.mxu0 0
      %365 = vmatpush1.bf16.msra.mxu0 0
      %366 = vmatprep.subr.bf16.mxu0 0
      %367 = vmatpush1.bf16.msra.mxu0 0
      %368 = vmatprep.subr.bf16.mxu0 0
      %369 = vmatpush1.bf16.msra.mxu0 0
      %370 = vmatprep.subr.bf16.mxu0 0
      %371 = vmatpush1.bf16.msra.mxu0 0
      %372 = vmatprep.subr.bf16.mxu0 0
      %373 = vmatpush1.bf16.msra.mxu0 0
      %374 = vmatprep.subr.bf16.mxu0 0
      %375 = vmatpush1.bf16.msra.mxu0 0
      %376 = vmatprep.subr.bf16.mxu0 0
      %377 = vmatpush1.bf16.msra.mxu0 0
      %378 = vmatprep.mubr.bf16.mxu0 0
      %379 = vmatmul.mubr.bf16.gmra.mrb[0].mxu0 %v341
      %v380 = vpop.f32.mrb[0].mxu0
      %v381 = vadd.f32 0.0, %v380
      %v382 = vpop.f32.mrb[0].mxu0
      %v383 = vpop.f32.mrb[0].mxu0
      %v384 = vpop.f32.mrb[0].mxu0
      %385 = vdwg.mxu0
      %387 = vrot.lane.b32.xlu0 %v381, 32
      %v388 = vpop.permute.xlu0 %387
      %v390 = vsel %vm160, %v264, %v388
      %v391 = vpack.c.bf16 %v390, %v390
      %vm392 = vcmask 519168
      %393 = vst.msk [vmem:[%s150] sm:$0xf] %vm392, %v391
      %394 = vrot.lane.b32.xlu0 %v270, 64
      %v395 = vpop.permute.xlu0 %394
      %396 = vrot.lane.b32.xlu0 %v159, 64
      %v397 = vpop.permute.xlu0 %396
      %v399 = vsel %vm160, %v395, 0
      %v402 = vsel %vm160, %v397, 0
      %404 = vmatprep.subr.bf16.mxu0 0
      %405 = vmatpush1.bf16.xpose.msra.mxu0 %v402
      %406 = vmatprep.subr.bf16.mxu0 0
      %407 = vmatpush1.bf16.xpose.msra.mxu0 0
      %408 = vmatprep.subr.bf16.mxu0 0
      %409 = vmatpush1.bf16.xpose.msra.mxu0 0
      %410 = vmatprep.subr.bf16.mxu0 0
      %411 = vmatpush1.bf16.xpose.msra.mxu0 0
      %412 = vmatprep.subr.bf16.mxu0 0
      %413 = vmatpush1.bf16.xpose.msra.mxu0 0
      %414 = vmatprep.subr.bf16.mxu0 0
      %415 = vmatpush1.bf16.xpose.msra.mxu0 0
      %416 = vmatprep.subr.bf16.mxu0 0
      %417 = vmatpush1.bf16.xpose.msra.mxu0 0
      %418 = vmatprep.subr.bf16.mxu0 0
      %419 = vmatpush1.bf16.xpose.msra.mxu0 0
      %420 = vmatprep.subr.bf16.mxu0 0
      %421 = vmatpush1.bf16.xpose.msra.mxu0 0
      %422 = vmatprep.subr.bf16.mxu0 0
      %423 = vmatpush1.bf16.xpose.msra.mxu0 0
      %424 = vmatprep.subr.bf16.mxu0 0
      %425 = vmatpush1.bf16.xpose.msra.mxu0 0
      %426 = vmatprep.subr.bf16.mxu0 0
      %427 = vmatpush1.bf16.xpose.msra.mxu0 0
      %428 = vmatprep.subr.bf16.mxu0 0
      %429 = vmatpush1.bf16.xpose.msra.mxu0 0
      %430 = vmatprep.subr.bf16.mxu0 0
      %431 = vmatpush1.bf16.xpose.msra.mxu0 0
      %432 = vmatprep.subr.bf16.mxu0 0
      %433 = vmatpush1.bf16.xpose.msra.mxu0 0
      %434 = vmatprep.subr.bf16.mxu0 0
      %435 = vmatpush1.bf16.xpose.msra.mxu0 0
      %436 = vmatprep.mubr.bf16.mxu0 0
      %437 = vmatmul.mubr.bf16.gmra.mrb[0].mxu0 %v399
      %v438 = vpop.f32.mrb[0].mxu0
      %v439 = vadd.f32 0.0, %v438
      %v440 = vpop.f32.mrb[0].mxu0
      %v441 = vpop.f32.mrb[0].mxu0
      %v442 = vpop.f32.mrb[0].mxu0
      %443 = vdwg.mxu0
      %v444 = vmul.f32 %v439, 0.17677669
      %v445 = vsel %vm156, %v444, -1e+30
      %v446 = vsel %vm209, %v445, -inf
      %447 = vmax.xlane.f32.xlu0 %v446
      %v448 = vpop.xlane.xlu0 %447
      %v449 = vsub.f32 %v445, %v448
      %v450 = vmul.f32 %v449, 1.442695
      %v451 = vpow.pop %v450
      %v452 = vsel %vm209, %v451, 0.0
      %453 = vadd.xlane.f32.xlu0 %v452
      %v454 = vpop.xlane.xlu0 %453
      %v455 = vrcp.pop %v454
      %v456 = vmul.f32 %v451, %v455
      %v457 = vpack.c.bf16 %v456, %v456
      %458 = vrot.lane.b32.xlu0 %v337, 64
      %v459 = vpop.permute.xlu0 %458
      %v461 = vsel %vm209, %v457, 0
      %v464 = vsel %vm225, %v459, 0
      %466 = vmatprep.subr.bf16.mxu0 0
      %467 = vmatpush1.bf16.msra.mxu0 %v464
      %468 = vmatprep.subr.bf16.mxu0 0
      %469 = vmatpush1.bf16.msra.mxu0 0
      %470 = vmatprep.subr.bf16.mxu0 0
      %471 = vmatpush1.bf16.msra.mxu0 0
      %472 = vmatprep.subr.bf16.mxu0 0
      %473 = vmatpush1.bf16.msra.mxu0 0
      %474 = vmatprep.subr.bf16.mxu0 0
      %475 = vmatpush1.bf16.msra.mxu0 0
      %476 = vmatprep.subr.bf16.mxu0 0
      %477 = vmatpush1.bf16.msra.mxu0 0
      %478 = vmatprep.subr.bf16.mxu0 0
      %479 = vmatpush1.bf16.msra.mxu0 0
      %480 = vmatprep.subr.bf16.mxu0 0
      %481 = vmatpush1.bf16.msra.mxu0 0
      %482 = vmatprep.subr.bf16.mxu0 0
      %483 = vmatpush1.bf16.msra.mxu0 0
      %484 = vmatprep.subr.bf16.mxu0 0
      %485 = vmatpush1.bf16.msra.mxu0 0
      %486 = vmatprep.subr.bf16.mxu0 0
      %487 = vmatpush1.bf16.msra.mxu0 0
      %488 = vmatprep.subr.bf16.mxu0 0
      %489 = vmatpush1.bf16.msra.mxu0 0
      %490 = vmatprep.subr.bf16.mxu0 0
      %491 = vmatpush1.bf16.msra.mxu0 0
      %492 = vmatprep.subr.bf16.mxu0 0
      %493 = vmatpush1.bf16.msra.mxu0 0
      %494 = vmatprep.subr.bf16.mxu0 0
      %495 = vmatpush1.bf16.msra.mxu0 0
      %496 = vmatprep.subr.bf16.mxu0 0
      %497 = vmatpush1.bf16.msra.mxu0 0
      %498 = vmatprep.mubr.bf16.mxu0 0
      %499 = vmatmul.mubr.bf16.gmra.mrb[0].mxu0 %v461
      %v500 = vpop.f32.mrb[0].mxu0
      %v501 = vadd.f32 0.0, %v500
      %v502 = vpop.f32.mrb[0].mxu0
      %v503 = vpop.f32.mrb[0].mxu0
      %v504 = vpop.f32.mrb[0].mxu0
      %505 = vdwg.mxu0
      %506 = vrot.lane.b32.xlu0 %v270, 32
      %v507 = vpop.permute.xlu0 %506
      %508 = vrot.lane.b32.xlu0 %v159, 32
      %v509 = vpop.permute.xlu0 %508
      %v511 = vsel %vm160, %v507, 0
      %v514 = vsel %vm160, %v509, 0
      %516 = vmatprep.subr.bf16.mxu0 0
      %517 = vmatpush1.bf16.xpose.msra.mxu0 %v514
      %518 = vmatprep.subr.bf16.mxu0 0
      %519 = vmatpush1.bf16.xpose.msra.mxu0 0
      %520 = vmatprep.subr.bf16.mxu0 0
      %521 = vmatpush1.bf16.xpose.msra.mxu0 0
      %522 = vmatprep.subr.bf16.mxu0 0
      %523 = vmatpush1.bf16.xpose.msra.mxu0 0
      %524 = vmatprep.subr.bf16.mxu0 0
      %525 = vmatpush1.bf16.xpose.msra.mxu0 0
      %526 = vmatprep.subr.bf16.mxu0 0
      %527 = vmatpush1.bf16.xpose.msra.mxu0 0
      %528 = vmatprep.subr.bf16.mxu0 0
      %529 = vmatpush1.bf16.xpose.msra.mxu0 0
      %530 = vmatprep.subr.bf16.mxu0 0
      %531 = vmatpush1.bf16.xpose.msra.mxu0 0
      %532 = vmatprep.subr.bf16.mxu0 0
      %533 = vmatpush1.bf16.xpose.msra.mxu0 0
      %534 = vmatprep.subr.bf16.mxu0 0
      %535 = vmatpush1.bf16.xpose.msra.mxu0 0
      %536 = vmatprep.subr.bf16.mxu0 0
      %537 = vmatpush1.bf16.xpose.msra.mxu0 0
      %538 = vmatprep.subr.bf16.mxu0 0
      %539 = vmatpush1.bf16.xpose.msra.mxu0 0
      %540 = vmatprep.subr.bf16.mxu0 0
      %541 = vmatpush1.bf16.xpose.msra.mxu0 0
      %542 = vmatprep.subr.bf16.mxu0 0
      %543 = vmatpush1.bf16.xpose.msra.mxu0 0
      %544 = vmatprep.subr.bf16.mxu0 0
      %545 = vmatpush1.bf16.xpose.msra.mxu0 0
      %546 = vmatprep.subr.bf16.mxu0 0
      %547 = vmatpush1.bf16.xpose.msra.mxu0 0
      %548 = vmatprep.mubr.bf16.mxu0 0
      %549 = vmatmul.mubr.bf16.gmra.mrb[0].mxu0 %v511
      %v550 = vpop.f32.mrb[0].mxu0
      %v551 = vadd.f32 0.0, %v550
      %v552 = vpop.f32.mrb[0].mxu0
      %v553 = vpop.f32.mrb[0].mxu0
      %v554 = vpop.f32.mrb[0].mxu0
      %555 = vdwg.mxu0
      %v556 = vmul.f32 %v551, 0.17677669
      %v557 = vsel %vm156, %v556, -1e+30
      %v558 = vsel %vm209, %v557, -inf
      %559 = vmax.xlane.f32.xlu0 %v558
      %v560 = vpop.xlane.xlu0 %559
      %v561 = vsub.f32 %v557, %v560
      %v562 = vmul.f32 %v561, 1.442695
      %v563 = vpow.pop %v562
      %v564 = vsel %vm209, %v563, 0.0
      %565 = vadd.xlane.f32.xlu0 %v564
      %v566 = vpop.xlane.xlu0 %565
      %v567 = vrcp.pop %v566
      %v568 = vmul.f32 %v563, %v567
      %v569 = vpack.c.bf16 %v568, %v568
      %570 = vrot.lane.b32.xlu0 %v337, 32
      %v571 = vpop.permute.xlu0 %570
      %v573 = vsel %vm209, %v569, 0
      %v576 = vsel %vm225, %v571, 0
      %578 = vmatprep.subr.bf16.mxu0 0
      %579 = vmatpush1.bf16.msra.mxu0 %v576
      %580 = vmatprep.subr.bf16.mxu0 0
      %581 = vmatpush1.bf16.msra.mxu0 0
      %582 = vmatprep.subr.bf16.mxu0 0
      %583 = vmatpush1.bf16.msra.mxu0 0
      %584 = vmatprep.subr.bf16.mxu0 0
      %585 = vmatpush1.bf16.msra.mxu0 0
      %586 = vmatprep.subr.bf16.mxu0 0
      %587 = vmatpush1.bf16.msra.mxu0 0
      %588 = vmatprep.subr.bf16.mxu0 0
      %589 = vmatpush1.bf16.msra.mxu0 0
      %590 = vmatprep.subr.bf16.mxu0 0
      %591 = vmatpush1.bf16.msra.mxu0 0
      %592 = vmatprep.subr.bf16.mxu0 0
      %593 = vmatpush1.bf16.msra.mxu0 0
      %594 = vmatprep.subr.bf16.mxu0 0
      %595 = vmatpush1.bf16.msra.mxu0 0
      %596 = vmatprep.subr.bf16.mxu0 0
      %597 = vmatpush1.bf16.msra.mxu0 0
      %598 = vmatprep.subr.bf16.mxu0 0
      %599 = vmatpush1.bf16.msra.mxu0 0
      %600 = vmatprep.subr.bf16.mxu0 0
      %601 = vmatpush1.bf16.msra.mxu0 0
      %602 = vmatprep.subr.bf16.mxu0 0
      %603 = vmatpush1.bf16.msra.mxu0 0
      %604 = vmatprep.subr.bf16.mxu0 0
      %605 = vmatpush1.bf16.msra.mxu0 0
      %606 = vmatprep.subr.bf16.mxu0 0
      %607 = vmatpush1.bf16.msra.mxu0 0
      %608 = vmatprep.subr.bf16.mxu0 0
      %609 = vmatpush1.bf16.msra.mxu0 0
      %610 = vmatprep.mubr.bf16.mxu0 0
      %611 = vmatmul.mubr.bf16.gmra.mrb[0].mxu0 %v573
      %v612 = vpop.f32.mrb[0].mxu0
      %v613 = vadd.f32 0.0, %v612
      %v614 = vpop.f32.mrb[0].mxu0
      %v615 = vpop.f32.mrb[0].mxu0
      %v616 = vpop.f32.mrb[0].mxu0
      %617 = vdwg.mxu0
      %619 = vrot.lane.b32.xlu0 %v613, 32
      %v620 = vpop.permute.xlu0 %619
      %v622 = vsel %vm160, %v501, %v620
      %v623 = vpack.c.bf16 %v622, %v622
      %v625 = vunpack.c.l.b16 %v623
      %v626 = vpack.c.b16 %v625, %v625
      %627 = vrot.lane.b32.xlu0 %v626, 64
      %v628 = vpop.permute.xlu0 %627
      %vm630 = vcmask 1043968
      %631 = vst.msk [vmem:[%s150] sm:$0xf] %vm630, %v628
      %p632 = scmp.lt.s32.totalorder %s16, 1
      %s633 = scalar_select %p632, %s16, 1
      %p634 = scmp.lt.s32.totalorder %s17, 0
      %s635 = scalar_select %p634, %s17, 0
      %s636 = sadd.s32 %s635, %s633
      %s637 = smul.addr %s636, 4
      %s638 = scalar_lea.vmem %s1, %s637
      // Predicated region
      $region25: #{vit_forward.14} parent=23 // pred_check
        %p639 = pneg %p72
      $region26: #{vit_forward.14} parent=23 // pred_check_branch
        %641 = sbr.rel (%p639) target = $region28
      $region27: #{vit_forward.14} parent=23 // pred_region
        _
      $region28: #{vit_forward.14} parent=23 // pred_fallthru
        _
    $region24: #{vit_forward.14} parent=5 // pred_fallthru
      _
    %p642 = scmp.le.s32.totalorder 2, %s7
    // Predicated region
    $region29: #{vit_forward.14} parent=5 // pred_check
      %p643 = pneg %p642
    $region30: #{vit_forward.14} parent=5 // pred_check_branch
      %645 = sbr.rel (%p643) target = $region32
    $region31: #{vit_forward.14} parent=5 // pred_region
      %s646 = ssub.s32 %s7, 2
      // Predicated region
      $region33: #{vit_forward.14} parent=31 // pred_check
        %p647 = pneg %p78
      $region34: #{vit_forward.14} parent=31 // pred_check_branch
        %649 = sbr.rel (%p647) target = $region36
      $region35: #{vit_forward.14} parent=31 // pred_region
        %p650 = scmp.lt.s32.totalorder %s18, 1
        %s651 = scalar_select %p650, %s18, 1
        %p652 = scmp.lt.s32.totalorder %s19, 0
        %s653 = scalar_select %p652, %s19, 0
        %s654 = sadd.s32 %s653, %s651
        %s655 = smul.addr %s654, 4
        %s656 = scalar_lea.vmem %s1, %s655
      $region36: #{vit_forward.14} parent=31 // pred_fallthru
        _
    $region32: #{vit_forward.14} parent=5 // pred_fallthru
      _
  $region6: #{vit_forward.14} parent=0 // loop_footer
    %s11 = sadd.s32 1, %s7
  $region7: #{vit_forward.14} parent=0 // loop_footer_branch
    %6 = sbr.rel target = $region3
  $region8: #{vit_forward.14} parent=0 // loop_exit
    _

// kernel: vit_forward.13
$region0: #{vit_forward.13}
  #allocation0 [shape = 'u32[]', space=smem, size = 0x4, offset = 0x4, fixed_abs, tag = 'smem constant byte address 0x4 - core index']
  #allocation1 [shape = 'u32[144,128]{1,0:T(1,128)}', space=vmem, size = 0x12000, scoped, tag = 'internal scratch']
  #allocation2 [shape = 'bf16[16,128]{1,0:T(16,128)(2,1)}', space=vmem, size = 0x1000, scoped, tag = 'scratch operand']
  %s0 = inlined_call_operand.vmem [shape: bf16[16,128], index: 0, kind: input, shape index: {}]
  %s1 = inlined_call_operand.vmem [shape: f32[1,128], index: 1, kind: input, shape index: {}]
  %s2 = inlined_call_operand.vmem [shape: f32[1,128], index: 2, kind: input, shape index: {}]
  %s3 = inlined_call_operand.vmem [shape: bf16[128,384], index: 3, kind: input, shape index: {}]
  %s4 = inlined_call_operand.vmem [shape: f32[1,384], index: 4, kind: input, shape index: {}]
  %s5 = inlined_call_operand.vmem [shape: bf16[16,384], index: 5, kind: output, shape index: {}]
  %s6 = sld [smem:[#allocation0]]
  $region34: #{vit_forward.13} parent=0
    _
  %s8 = ssub.s32 1, %s6
  %s9 = scalar_select 0, %s8, %s6
  // Predicated region
  $region2: #{vit_forward.13} parent=0 // pred_check
    _
  $region3: #{vit_forward.13} parent=0 // pred_check_branch
    %11 = sbr.rel (0) target = $region5
  $region4: #{vit_forward.13} parent=0 // pred_region
    _
  $region5: #{vit_forward.13} parent=0 // pred_fallthru
    _
  // Predicated region
  $region6: #{vit_forward.13} parent=0 // pred_check
    _
  $region7: #{vit_forward.13} parent=0 // pred_check_branch
    %13 = sbr.rel (0) target = $region9
  $region8: #{vit_forward.13} parent=0 // pred_region
    _
  $region9: #{vit_forward.13} parent=0 // pred_fallthru
    _
  // Predicated region
  $region10: #{vit_forward.13} parent=0 // pred_check
    _
  $region11: #{vit_forward.13} parent=0 // pred_check_branch
    %15 = sbr.rel (0) target = $region13
  $region12: #{vit_forward.13} parent=0 // pred_region
    _
  $region13: #{vit_forward.13} parent=0 // pred_fallthru
    _
  // Predicated region
  $region14: #{vit_forward.13} parent=0 // pred_check
    _
  $region15: #{vit_forward.13} parent=0 // pred_check_branch
    %17 = sbr.rel (0) target = $region17
  $region16: #{vit_forward.13} parent=0 // pred_region
    _
  $region17: #{vit_forward.13} parent=0 // pred_fallthru
    _
  // Predicated region
  $region18: #{vit_forward.13} parent=0 // pred_check
    _
  $region19: #{vit_forward.13} parent=0 // pred_check_branch
    %19 = sbr.rel (0) target = $region21
  $region20: #{vit_forward.13} parent=0 // pred_region
    _
  $region21: #{vit_forward.13} parent=0 // pred_fallthru
    _
  %p21 = scmp.eq.s32.totalorder 0, 0
  // Predicated region
  $region22: #{vit_forward.13} parent=0 // pred_check
    %p22 = pneg %p21
  $region23: #{vit_forward.13} parent=0 // pred_check_branch
    %24 = sbr.rel (%p22) target = $region25
  $region24: #{vit_forward.13} parent=0 // pred_region
    %v25 = vld [vmem:[%s0] sm:$0xf]
    %v26 = vld [vmem:[%s0 + $0x4] sm:$0xf]
    %v27 = vunpack.c.l.bf16 %v25
    %v28 = vunpack.c.l.bf16 %v26
    %29 = vadd.xlane.f32.xlu0 %v27
    %v30 = vpop.xlane.xlu0 %29
    %31 = vadd.xlane.f32.xlu0 %v28
    %v32 = vpop.xlane.xlu0 %31
    %v33 = vrcp.pop 128.0
    %v34 = vmul.f32 %v30, %v33
    %v35 = vmul.f32 %v32, %v33
    %v36 = vsub.f32 %v27, %v34
    %v37 = vsub.f32 %v28, %v35
    %v38 = vmul.f32 %v36, %v36
    %v39 = vmul.f32 %v37, %v37
    %40 = vadd.xlane.f32.xlu0 %v38
    %v41 = vpop.xlane.xlu0 %40
    %42 = vadd.xlane.f32.xlu0 %v39
    %v43 = vpop.xlane.xlu0 %42
    %v44 = vmul.f32 %v41, %v33
    %v45 = vmul.f32 %v43, %v33
    %v46 = vadd.f32 %v44, 1e-06
    %v47 = vadd.f32 %v45, 1e-06
    %v48 = vrsqrt.pop %v46
    %v49 = vrsqrt.pop %v47
    %v50 = vmul.f32 %v36, %v48
    %v51 = vmul.f32 %v37, %v49
    %v52 = vld [vmem:[%s1] sm:$0x1]
    %v54 = vlaneseq
    %v55 = vshrl.u32 %v54, 7
    %v56 = vsub.s32 0, %v55
    %v57 = vrot.slane %v52, %v56
    %v59 = vmul.f32 %v50, %v57
    %v60 = vmul.f32 %v51, %v57
    %v61 = vld [vmem:[%s2] sm:$0x1]
    %v63 = vlaneseq
    %v64 = vshrl.u32 %v63, 7
    %v65 = vsub.s32 0, %v64
    %v66 = vrot.slane %v61, %v65
    %v68 = vadd.f32 %v59, %v66
    %v69 = vadd.f32 %v60, %v66
    %v70 = vpack.c.bf16 %v69, %v68
    %71 = vst [vmem:[#allocation2] sm:$0xff] %v70
  $region25: #{vit_forward.13} parent=0 // pred_fallthru
    _
  %v72 = vld [vmem:[#allocation2] sm:$0xff]
  %v73 = vld [vmem:[%s3] sm:$0xff]
  %v74 = vld [vmem:[%s3 + $0x8] sm:$0xf]
  %v75 = vld [vmem:[%s3 + $0xc] sm:$0xff]
  %v76 = vld [vmem:[%s3 + $0x14] sm:$0xf]
  %v77 = vld [vmem:[%s3 + $0x18] sm:$0xff]
  %v78 = vld [vmem:[%s3 + $0x20] sm:$0xf]
  %v79 = vld [vmem:[%s3 + $0x24] sm:$0xff]
  %v80 = vld [vmem:[%s3 + $0x2c] sm:$0xf]
  %v81 = vld [vmem:[%s3 + $0x30] sm:$0xff]
  %v82 = vld [vmem:[%s3 + $0x38] sm:$0xf]
  %v83 = vld [vmem:[%s3 + $0x3c] sm:$0xff]
  %v84 = vld [vmem:[%s3 + $0x44] sm:$0xf]
  %v85 = vld [vmem:[%s3 + $0x48] sm:$0xff]
  %v86 = vld [vmem:[%s3 + $0x50] sm:$0xf]
  %v87 = vld [vmem:[%s3 + $0x54] sm:$0xff]
  %v88 = vld [vmem:[%s3 + $0x5c] sm:$0xf]
  %v89 = vld [vmem:[%s3 + $0x60] sm:$0xff]
  %v90 = vld [vmem:[%s3 + $0x68] sm:$0xf]
  %v91 = vld [vmem:[%s3 + $0x6c] sm:$0xff]
  %v92 = vld [vmem:[%s3 + $0x74] sm:$0xf]
  %v93 = vld [vmem:[%s3 + $0x78] sm:$0xff]
  %v94 = vld [vmem:[%s3 + $0x80] sm:$0xf]
  %v95 = vld [vmem:[%s3 + $0x84] sm:$0xff]
  %v96 = vld [vmem:[%s3 + $0x8c] sm:$0xf]
  %v97 = vld [vmem:[%s3 + $0x90] sm:$0xff]
  %v98 = vld [vmem:[%s3 + $0x98] sm:$0xf]
  %v99 = vld [vmem:[%s3 + $0x9c] sm:$0xff]
  %v100 = vld [vmem:[%s3 + $0xa4] sm:$0xf]
  %v101 = vld [vmem:[%s3 + $0xa8] sm:$0xff]
  %v102 = vld [vmem:[%s3 + $0xb0] sm:$0xf]
  %v103 = vld [vmem:[%s3 + $0xb4] sm:$0xff]
  %v104 = vld [vmem:[%s3 + $0xbc] sm:$0xf]
  %v105 = vld [vmem:[%s4] sm:$0x7]
  %v107 = vlaneseq
  %v108 = vshrl.u32 %v107, 7
  %v109 = vsub.s32 0, %v108
  %v110 = vrot.slane %v105, %v109
  %v111 = vlaneseq
  %v112 = vshrl.u32 %v111, 7
  %v113 = vsub.s32 1, %v112
  %v114 = vrot.slane %v105, %v113
  %v115 = vlaneseq
  %v116 = vshrl.u32 %v115, 7
  %v117 = vsub.s32 2, %v116
  %v118 = vrot.slane %v105, %v117
  %v154 = vunpack.c.l.b16 %v73
  %v155 = vunpack.c.h.b16 %v73
  %v156 = vunpack.c.l.b16 %v74
  %v157 = vunpack.c.l.b16 %v75
  %v158 = vunpack.c.h.b16 %v75
  %v159 = vunpack.c.l.b16 %v76
  %v160 = vunpack.c.l.b16 %v77
  %v161 = vunpack.c.h.b16 %v77
  %v162 = vunpack.c.l.b16 %v78
  %v163 = vunpack.c.l.b16 %v79
  %v164 = vunpack.c.h.b16 %v79
  %v165 = vunpack.c.l.b16 %v80
  %v166 = vunpack.c.l.b16 %v81
  %v167 = vunpack.c.h.b16 %v81
  %v168 = vunpack.c.l.b16 %v82
  %v169 = vunpack.c.l.b16 %v83
  %v170 = vunpack.c.h.b16 %v83
  %v171 = vunpack.c.l.b16 %v84
  %v172 = vunpack.c.l.b16 %v85
  %v173 = vunpack.c.h.b16 %v85
  %v174 = vunpack.c.l.b16 %v86
  %v175 = vunpack.c.l.b16 %v87
  %v176 = vunpack.c.h.b16 %v87
  %v177 = vunpack.c.l.b16 %v88
  %v178 = vunpack.c.l.b16 %v89
  %v179 = vunpack.c.h.b16 %v89
  %v180 = vunpack.c.l.b16 %v90
  %v181 = vunpack.c.l.b16 %v91
  %v182 = vunpack.c.h.b16 %v91
  %v183 = vunpack.c.l.b16 %v92
  %v184 = vunpack.c.l.b16 %v93
  %v185 = vunpack.c.h.b16 %v93
  %v186 = vunpack.c.l.b16 %v94
  %v187 = vunpack.c.l.b16 %v95
  %v188 = vunpack.c.h.b16 %v95
  %v189 = vunpack.c.l.b16 %v96
  %v190 = vunpack.c.l.b16 %v97
  %v191 = vunpack.c.h.b16 %v97
  %v192 = vunpack.c.l.b16 %v98
  %v193 = vunpack.c.l.b16 %v99
  %v194 = vunpack.c.h.b16 %v99
  %v195 = vunpack.c.l.b16 %v100
  %v196 = vunpack.c.l.b16 %v101
  %v197 = vunpack.c.h.b16 %v101
  %v198 = vunpack.c.l.b16 %v102
  %v199 = vunpack.c.l.b16 %v103
  %v200 = vunpack.c.h.b16 %v103
  %v201 = vunpack.c.l.b16 %v104
  %v202 = vpack.c.b16 %v157, %v154
  %v203 = vpack.c.b16 %v158, %v155
  %v204 = vpack.c.b16 %v159, %v156
  %v205 = vpack.c.b16 %v163, %v160
  %v206 = vpack.c.b16 %v164, %v161
  %v207 = vpack.c.b16 %v165, %v162
  %v208 = vpack.c.b16 %v169, %v166
  %v209 = vpack.c.b16 %v170, %v167
  %v210 = vpack.c.b16 %v171, %v168
  %v211 = vpack.c.b16 %v175, %v172
  %v212 = vpack.c.b16 %v176, %v173
  %v213 = vpack.c.b16 %v177, %v174
  %v214 = vpack.c.b16 %v181, %v178
  %v215 = vpack.c.b16 %v182, %v179
  %v216 = vpack.c.b16 %v183, %v180
  %v217 = vpack.c.b16 %v187, %v184
  %v218 = vpack.c.b16 %v188, %v185
  %v219 = vpack.c.b16 %v189, %v186
  %v220 = vpack.c.b16 %v193, %v190
  %v221 = vpack.c.b16 %v194, %v191
  %v222 = vpack.c.b16 %v195, %v192
  %v223 = vpack.c.b16 %v199, %v196
  %v224 = vpack.c.b16 %v200, %v197
  %v225 = vpack.c.b16 %v201, %v198
  %250 = vmatprep.subr.bf16.mxu0 %v203
  %251 = vmatpush1.bf16.msra.mxu0 %v202
  %252 = vmatprep.subr.bf16.mxu0 %v206
  %253 = vmatpush1.bf16.msra.mxu0 %v205
  %254 = vmatprep.subr.bf16.mxu0 %v209
  %255 = vmatpush1.bf16.msra.mxu0 %v208
  %256 = vmatprep.subr.bf16.mxu0 %v212
  %257 = vmatpush1.bf16.msra.mxu0 %v211
  %258 = vmatprep.subr.bf16.mxu0 %v215
  %259 = vmatpush1.bf16.msra.mxu0 %v214
  %260 = vmatprep.subr.bf16.mxu0 %v218
  %261 = vmatpush1.bf16.msra.mxu0 %v217
  %262 = vmatprep.subr.bf16.mxu0 %v221
  %263 = vmatpush1.bf16.msra.mxu0 %v220
  %264 = vmatprep.subr.bf16.mxu0 %v224
  %265 = vmatpush1.bf16.msra.mxu0 %v223
  %266 = vmatprep.subr.bf16.mxu0 0
  %267 = vmatpush1.bf16.msra.mxu0 0
  %268 = vmatprep.subr.bf16.mxu0 0
  %269 = vmatpush1.bf16.msra.mxu0 0
  %270 = vmatprep.subr.bf16.mxu0 0
  %271 = vmatpush1.bf16.msra.mxu0 0
  %272 = vmatprep.subr.bf16.mxu0 0
  %273 = vmatpush1.bf16.msra.mxu0 0
  %274 = vmatprep.subr.bf16.mxu0 0
  %275 = vmatpush1.bf16.msra.mxu0 0
  %276 = vmatprep.subr.bf16.mxu0 0
  %277 = vmatpush1.bf16.msra.mxu0 0
  %278 = vmatprep.subr.bf16.mxu0 0
  %279 = vmatpush1.bf16.msra.mxu0 0
  %280 = vmatprep.subr.bf16.mxu0 0
  %281 = vmatpush1.bf16.msra.mxu0 0
  %282 = vmatprep.mubr.bf16.mxu0 0
  %283 = vmatmul.mubr.bf16.gmra.mrb[0].mxu0 %v72
  %v284 = vpop.f32.mrb[0].mxu0
  %v285 = vadd.f32 %v110, %v284
  %v286 = vpop.f32.mrb[0].mxu0
  %v287 = vadd.f32 %v114, %v286
  %v288 = vpop.f32.mrb[0].mxu0
  %v289 = vadd.f32 %v110, %v288
  %v290 = vpop.f32.mrb[0].mxu0
  %v291 = vadd.f32 %v114, %v290
  %292 = vdwg.mxu0
  %293 = vmatprep.subr.bf16.mxu0 0
  %294 = vmatpush1.bf16.msra.mxu0 %v204
  %295 = vmatprep.subr.bf16.mxu0 0
  %296 = vmatpush1.bf16.msra.mxu0 %v207
  %297 = vmatprep.subr.bf16.mxu0 0
  %298 = vmatpush1.bf16.msra.mxu0 %v210
  %299 = vmatprep.subr.bf16.mxu0 0
  %300 = vmatpush1.bf16.msra.mxu0 %v213
  %301 = vmatprep.subr.bf16.mxu0 0
  %302 = vmatpush1.bf16.msra.mxu0 %v216
  %303 = vmatprep.subr.bf16.mxu0 0
  %304 = vmatpush1.bf16.msra.mxu0 %v219
  %305 = vmatprep.subr.bf16.mxu0 0
  %306 = vmatpush1.bf16.msra.mxu0 %v222
  %307 = vmatprep.subr.bf16.mxu0 0
  %308 = vmatpush1.bf16.msra.mxu0 %v225
  %309 = vmatprep.subr.bf16.mxu0 0
  %310 = vmatpush1.bf16.msra.mxu0 0
  %311 = vmatprep.subr.bf16.mxu0 0
  %312 = vmatpush1.bf16.msra.mxu0 0
  %313 = vmatprep.subr.bf16.mxu0 0
  %314 = vmatpush1.bf16.msra.mxu0 0
  %315 = vmatprep.subr.bf16.mxu0 0
  %316 = vmatpush1.bf16.msra.mxu0 0
  %317 = vmatprep.subr.bf16.mxu0 0
  %318 = vmatpush1.bf16.msra.mxu0 0
  %319 = vmatprep.subr.bf16.mxu0 0
  %320 = vmatpush1.bf16.msra.mxu0 0
  %321 = vmatprep.subr.bf16.mxu0 0
  %322 = vmatpush1.bf16.msra.mxu0 0
  %323 = vmatprep.subr.bf16.mxu0 0
  %324 = vmatpush1.bf16.msra.mxu0 0
  %325 = vmatprep.mubr.bf16.mxu0 0
  %326 = vmatmul.mubr.bf16.gmra.mrb[0].mxu0 %v72
  %v327 = vpop.f32.mrb[0].mxu0
  %v328 = vadd.f32 %v118, %v327
  %v329 = vpop.f32.mrb[0].mxu0
  %v330 = vpop.f32.mrb[0].mxu0
  %v331 = vadd.f32 %v118, %v330
  %v332 = vpop.f32.mrb[0].mxu0
  %333 = vdwg.mxu0
  %v334 = vpack.c.bf16 %v289, %v285
  %v335 = vpack.c.bf16 %v291, %v287
  %v336 = vpack.c.bf16 %v331, %v328
  %v340 = vunpack.c.l.b16 %v334
  %v341 = vunpack.c.l.b16 %v335
  %v342 = vunpack.c.l.b16 %v336
  %v343 = vunpack.c.h.b16 %v334
  %v344 = vunpack.c.h.b16 %v335
  %v345 = vunpack.c.h.b16 %v336
  %v346 = vpack.c.b16 %v341, %v340
  %v347 = vpack.c.b16 %v342, %v342
  %v348 = vpack.c.b16 %v344, %v343
  %v349 = vpack.c.b16 %v345, %v345
  %354 = vst [vmem:[%s5] sm:$0xff] %v346
  %355 = vst [vmem:[%s5 + $0x8] sm:$0xf] %v347
  %356 = vst [vmem:[%s5 + $0xc] sm:$0xff] %v348
  %357 = vst [vmem:[%s5 + $0x14] sm:$0xf] %v349
  // Predicated region
  $region26: #{vit_forward.13} parent=0 // pred_check
    _
  $region27: #{vit_forward.13} parent=0 // pred_check_branch
    %359 = sbr.rel (0) target = $region29
  $region28: #{vit_forward.13} parent=0 // pred_region
    _
  $region29: #{vit_forward.13} parent=0 // pred_fallthru
    _
  // Predicated region
  $region30: #{vit_forward.13} parent=0 // pred_check
    _
  $region31: #{vit_forward.13} parent=0 // pred_check_branch
    %361 = sbr.rel (0) target = $region33
  $region32: #{vit_forward.13} parent=0 // pred_region
    _
  $region33: #{vit_forward.13} parent=0 // pred_fallthru
    _

// kernel: vit_forward.12
$region0: #{vit_forward.12}
  #allocation0 [shape = 'u32[]', space=smem, size = 0x4, offset = 0x4, fixed_abs, tag = 'smem constant byte address 0x4 - core index']
  #allocation1 [shape = 'u32[144,128]{1,0:T(1,128)}', space=vmem, size = 0x12000, scoped, tag = 'internal scratch']
  %s0 = inlined_call_operand.vmem [shape: bf16[8,768], index: 0, kind: input, shape index: {}]
  %s1 = inlined_call_operand.vmem [shape: bf16[768,128], index: 1, kind: input, shape index: {}]
  %s2 = inlined_call_operand.vmem [shape: f32[1,128], index: 2, kind: input, shape index: {}]
  %s3 = inlined_call_operand.vmem [shape: bf16[8,128], index: 3, kind: output, shape index: {}]
  %s4 = sld [smem:[#allocation0]]
  $region22: #{vit_forward.12} parent=0
    _
  %s6 = ssub.s32 1, %s4
  %s7 = scalar_select 0, %s6, %s4
  // Predicated region
  $region2: #{vit_forward.12} parent=0 // pred_check
    _
  $region3: #{vit_forward.12} parent=0 // pred_check_branch
    %9 = sbr.rel (0) target = $region5
  $region4: #{vit_forward.12} parent=0 // pred_region
    _
  $region5: #{vit_forward.12} parent=0 // pred_fallthru
    _
  // Predicated region
  $region6: #{vit_forward.12} parent=0 // pred_check
    _
  $region7: #{vit_forward.12} parent=0 // pred_check_branch
    %11 = sbr.rel (0) target = $region9
  $region8: #{vit_forward.12} parent=0 // pred_region
    _
  $region9: #{vit_forward.12} parent=0 // pred_fallthru
    _
  // Predicated region
  $region10: #{vit_forward.12} parent=0 // pred_check
    _
  $region11: #{vit_forward.12} parent=0 // pred_check_branch
    %13 = sbr.rel (0) target = $region13
  $region12: #{vit_forward.12} parent=0 // pred_region
    _
  $region13: #{vit_forward.12} parent=0 // pred_fallthru
    _
  %v15 = vld [vmem:[%s0] sm:$0xff]
  %v16 = vld [vmem:[%s0 + $0x8] sm:$0xff]
  %v17 = vld [vmem:[%s0 + $0x10] sm:$0xff]
  %v18 = vld [vmem:[%s1] sm:$0xf]
  %v19 = vld [vmem:[%s1 + $0x4] sm:$0xf]
  %v20 = vld [vmem:[%s1 + $0x8] sm:$0xf]
  %v21 = vld [vmem:[%s1 + $0xc] sm:$0xf]
  %v22 = vld [vmem:[%s1 + $0x10] sm:$0xf]
  %v23 = vld [vmem:[%s1 + $0x14] sm:$0xf]
  %v24 = vld [vmem:[%s1 + $0x18] sm:$0xf]
  %v25 = vld [vmem:[%s1 + $0x1c] sm:$0xf]
  %v26 = vld [vmem:[%s1 + $0x20] sm:$0xf]
  %v27 = vld [vmem:[%s1 + $0x24] sm:$0xf]
  %v28 = vld [vmem:[%s1 + $0x28] sm:$0xf]
  %v29 = vld [vmem:[%s1 + $0x2c] sm:$0xf]
  %v30 = vld [vmem:[%s1 + $0x30] sm:$0xf]
  %v31 = vld [vmem:[%s1 + $0x34] sm:$0xf]
  %v32 = vld [vmem:[%s1 + $0x38] sm:$0xf]
  %v33 = vld [vmem:[%s1 + $0x3c] sm:$0xf]
  %v34 = vld [vmem:[%s1 + $0x40] sm:$0xf]
  %v35 = vld [vmem:[%s1 + $0x44] sm:$0xf]
  %v36 = vld [vmem:[%s1 + $0x48] sm:$0xf]
  %v37 = vld [vmem:[%s1 + $0x4c] sm:$0xf]
  %v38 = vld [vmem:[%s1 + $0x50] sm:$0xf]
  %v39 = vld [vmem:[%s1 + $0x54] sm:$0xf]
  %v40 = vld [vmem:[%s1 + $0x58] sm:$0xf]
  %v41 = vld [vmem:[%s1 + $0x5c] sm:$0xf]
  %v42 = vld [vmem:[%s1 + $0x60] sm:$0xf]
  %v43 = vld [vmem:[%s1 + $0x64] sm:$0xf]
  %v44 = vld [vmem:[%s1 + $0x68] sm:$0xf]
  %v45 = vld [vmem:[%s1 + $0x6c] sm:$0xf]
  %v46 = vld [vmem:[%s1 + $0x70] sm:$0xf]
  %v47 = vld [vmem:[%s1 + $0x74] sm:$0xf]
  %v48 = vld [vmem:[%s1 + $0x78] sm:$0xf]
  %v49 = vld [vmem:[%s1 + $0x7c] sm:$0xf]
  %v50 = vld [vmem:[%s1 + $0x80] sm:$0xf]
  %v51 = vld [vmem:[%s1 + $0x84] sm:$0xf]
  %v52 = vld [vmem:[%s1 + $0x88] sm:$0xf]
  %v53 = vld [vmem:[%s1 + $0x8c] sm:$0xf]
  %v54 = vld [vmem:[%s1 + $0x90] sm:$0xf]
  %v55 = vld [vmem:[%s1 + $0x94] sm:$0xf]
  %v56 = vld [vmem:[%s1 + $0x98] sm:$0xf]
  %v57 = vld [vmem:[%s1 + $0x9c] sm:$0xf]
  %v58 = vld [vmem:[%s1 + $0xa0] sm:$0xf]
  %v59 = vld [vmem:[%s1 + $0xa4] sm:$0xf]
  %v60 = vld [vmem:[%s1 + $0xa8] sm:$0xf]
  %v61 = vld [vmem:[%s1 + $0xac] sm:$0xf]
  %v62 = vld [vmem:[%s1 + $0xb0] sm:$0xf]
  %v63 = vld [vmem:[%s1 + $0xb4] sm:$0xf]
  %v64 = vld [vmem:[%s1 + $0xb8] sm:$0xf]
  %v65 = vld [vmem:[%s1 + $0xbc] sm:$0xf]
  %v66 = vld [vmem:[%s1 + $0xc0] sm:$0xf]
  %v67 = vld [vmem:[%s1 + $0xc4] sm:$0xf]
  %v68 = vld [vmem:[%s1 + $0xc8] sm:$0xf]
  %v69 = vld [vmem:[%s1 + $0xcc] sm:$0xf]
  %v70 = vld [vmem:[%s1 + $0xd0] sm:$0xf]
  %v71 = vld [vmem:[%s1 + $0xd4] sm:$0xf]
  %v72 = vld [vmem:[%s1 + $0xd8] sm:$0xf]
  %v73 = vld [vmem:[%s1 + $0xdc] sm:$0xf]
  %v74 = vld [vmem:[%s1 + $0xe0] sm:$0xf]
  %v75 = vld [vmem:[%s1 + $0xe4] sm:$0xf]
  %v76 = vld [vmem:[%s1 + $0xe8] sm:$0xf]
  %v77 = vld [vmem:[%s1 + $0xec] sm:$0xf]
  %v78 = vld [vmem:[%s1 + $0xf0] sm:$0xf]
  %v79 = vld [vmem:[%s1 + $0xf4] sm:$0xf]
  %v80 = vld [vmem:[%s1 + $0xf8] sm:$0xf]
  %v81 = vld [vmem:[%s1 + $0xfc] sm:$0xf]
  %v82 = vld [vmem:[%s1 + $0x100] sm:$0xf]
  %v83 = vld [vmem:[%s1 + $0x104] sm:$0xf]
  %v84 = vld [vmem:[%s1 + $0x108] sm:$0xf]
  %v85 = vld [vmem:[%s1 + $0x10c] sm:$0xf]
  %v86 = vld [vmem:[%s1 + $0x110] sm:$0xf]
  %v87 = vld [vmem:[%s1 + $0x114] sm:$0xf]
  %v88 = vld [vmem:[%s1 + $0x118] sm:$0xf]
  %v89 = vld [vmem:[%s1 + $0x11c] sm:$0xf]
  %v90 = vld [vmem:[%s1 + $0x120] sm:$0xf]
  %v91 = vld [vmem:[%s1 + $0x124] sm:$0xf]
  %v92 = vld [vmem:[%s1 + $0x128] sm:$0xf]
  %v93 = vld [vmem:[%s1 + $0x12c] sm:$0xf]
  %v94 = vld [vmem:[%s1 + $0x130] sm:$0xf]
  %v95 = vld [vmem:[%s1 + $0x134] sm:$0xf]
  %v96 = vld [vmem:[%s1 + $0x138] sm:$0xf]
  %v97 = vld [vmem:[%s1 + $0x13c] sm:$0xf]
  %v98 = vld [vmem:[%s1 + $0x140] sm:$0xf]
  %v99 = vld [vmem:[%s1 + $0x144] sm:$0xf]
  %v100 = vld [vmem:[%s1 + $0x148] sm:$0xf]
  %v101 = vld [vmem:[%s1 + $0x14c] sm:$0xf]
  %v102 = vld [vmem:[%s1 + $0x150] sm:$0xf]
  %v103 = vld [vmem:[%s1 + $0x154] sm:$0xf]
  %v104 = vld [vmem:[%s1 + $0x158] sm:$0xf]
  %v105 = vld [vmem:[%s1 + $0x15c] sm:$0xf]
  %v106 = vld [vmem:[%s1 + $0x160] sm:$0xf]
  %v107 = vld [vmem:[%s1 + $0x164] sm:$0xf]
  %v108 = vld [vmem:[%s1 + $0x168] sm:$0xf]
  %v109 = vld [vmem:[%s1 + $0x16c] sm:$0xf]
  %v110 = vld [vmem:[%s1 + $0x170] sm:$0xf]
  %v111 = vld [vmem:[%s1 + $0x174] sm:$0xf]
  %v112 = vld [vmem:[%s1 + $0x178] sm:$0xf]
  %v113 = vld [vmem:[%s1 + $0x17c] sm:$0xf]
  %v114 = vld [vmem:[%s2] sm:$0x1]
  %v116 = vlaneseq
  %v117 = vshrl.u32 %v116, 7
  %v118 = vsub.s32 0, %v117
  %v119 = vrot.slane %v114, %v118
  %v124 = vunpack.c.l.b16 %v15
  %v125 = vunpack.c.h.b16 %v15
  %v126 = vunpack.c.l.b16 %v16
  %v127 = vunpack.c.h.b16 %v16
  %v128 = vunpack.c.l.b16 %v17
  %v129 = vunpack.c.h.b16 %v17
  %v130 = vpack.c.b16 %v124, %v124
  %v131 = vpack.c.b16 %v125, %v125
  %v132 = vpack.c.b16 %v126, %v126
  %v133 = vpack.c.b16 %v127, %v127
  %v134 = vpack.c.b16 %v128, %v128
  %v135 = vpack.c.b16 %v129, %v129
  %v238 = vunpack.c.l.b16 %v18
  %v239 = vunpack.c.l.b16 %v19
  %v240 = vunpack.c.l.b16 %v20
  %v241 = vunpack.c.l.b16 %v21
  %v242 = vunpack.c.l.b16 %v22
  %v243 = vunpack.c.l.b16 %v23
  %v244 = vunpack.c.l.b16 %v24
  %v245 = vunpack.c.l.b16 %v25
  %v246 = vunpack.c.l.b16 %v26
  %v247 = vunpack.c.l.b16 %v27
  %v248 = vunpack.c.l.b16 %v28
  %v249 = vunpack.c.l.b16 %v29
  %v250 = vunpack.c.l.b16 %v30
  %v251 = vunpack.c.l.b16 %v31
  %v252 = vunpack.c.l.b16 %v32
  %v253 = vunpack.c.l.b16 %v33
  %v254 = vunpack.c.l.b16 %v34
  %v255 = vunpack.c.l.b16 %v35
  %v256 = vunpack.c.l.b16 %v36
  %v257 = vunpack.c.l.b16 %v37
  %v258 = vunpack.c.l.b16 %v38
  %v259 = vunpack.c.l.b16 %v39
  %v260 = vunpack.c.l.b16 %v40
  %v261 = vunpack.c.l.b16 %v41
  %v262 = vunpack.c.l.b16 %v42
  %v263 = vunpack.c.l.b16 %v43
  %v264 = vunpack.c.l.b16 %v44
  %v265 = vunpack.c.l.b16 %v45
  %v266 = vunpack.c.l.b16 %v46
  %v267 = vunpack.c.l.b16 %v47
  %v268 = vunpack.c.l.b16 %v48
  %v269 = vunpack.c.l.b16 %v49
  %v270 = vunpack.c.l.b16 %v50
  %v271 = vunpack.c.l.b16 %v51
  %v272 = vunpack.c.l.b16 %v52
  %v273 = vunpack.c.l.b16 %v53
  %v274 = vunpack.c.l.b16 %v54
  %v275 = vunpack.c.l.b16 %v55
  %v276 = vunpack.c.l.b16 %v56
  %v277 = vunpack.c.l.b16 %v57
  %v278 = vunpack.c.l.b16 %v58
  %v279 = vunpack.c.l.b16 %v59
  %v280 = vunpack.c.l.b16 %v60
  %v281 = vunpack.c.l.b16 %v61
  %v282 = vunpack.c.l.b16 %v62
  %v283 = vunpack.c.l.b16 %v63
  %v284 = vunpack.c.l.b16 %v64
  %v285 = vunpack.c.l.b16 %v65
  %v286 = vunpack.c.l.b16 %v66
  %v287 = vunpack.c.l.b16 %v67
  %v288 = vunpack.c.l.b16 %v68
  %v289 = vunpack.c.l.b16 %v69
  %v290 = vunpack.c.l.b16 %v70
  %v291 = vunpack.c.l.b16 %v71
  %v292 = vunpack.c.l.b16 %v72
  %v293 = vunpack.c.l.b16 %v73
  %v294 = vunpack.c.l.b16 %v74
  %v295 = vunpack.c.l.b16 %v75
  %v296 = vunpack.c.l.b16 %v76
  %v297 = vunpack.c.l.b16 %v77
  %v298 = vunpack.c.l.b16 %v78
  %v299 = vunpack.c.l.b16 %v79
  %v300 = vunpack.c.l.b16 %v80
  %v301 = vunpack.c.l.b16 %v81
  %v302 = vunpack.c.l.b16 %v82
  %v303 = vunpack.c.l.b16 %v83
  %v304 = vunpack.c.l.b16 %v84
  %v305 = vunpack.c.l.b16 %v85
  %v306 = vunpack.c.l.b16 %v86
  %v307 = vunpack.c.l.b16 %v87
  %v308 = vunpack.c.l.b16 %v88
  %v309 = vunpack.c.l.b16 %v89
  %v310 = vunpack.c.l.b16 %v90
  %v311 = vunpack.c.l.b16 %v91
  %v312 = vunpack.c.l.b16 %v92
  %v313 = vunpack.c.l.b16 %v93
  %v314 = vunpack.c.l.b16 %v94
  %v315 = vunpack.c.l.b16 %v95
  %v316 = vunpack.c.l.b16 %v96
  %v317 = vunpack.c.l.b16 %v97
  %v318 = vunpack.c.l.b16 %v98
  %v319 = vunpack.c.l.b16 %v99
  %v320 = vunpack.c.l.b16 %v100
  %v321 = vunpack.c.l.b16 %v101
  %v322 = vunpack.c.l.b16 %v102
  %v323 = vunpack.c.l.b16 %v103
  %v324 = vunpack.c.l.b16 %v104
  %v325 = vunpack.c.l.b16 %v105
  %v326 = vunpack.c.l.b16 %v106
  %v327 = vunpack.c.l.b16 %v107
  %v328 = vunpack.c.l.b16 %v108
  %v329 = vunpack.c.l.b16 %v109
  %v330 = vunpack.c.l.b16 %v110
  %v331 = vunpack.c.l.b16 %v111
  %v332 = vunpack.c.l.b16 %v112
  %v333 = vunpack.c.l.b16 %v113
  %v334 = vpack.c.b16 %v239, %v238
  %v335 = vpack.c.b16 %v241, %v240
  %v336 = vpack.c.b16 %v243, %v242
  %v337 = vpack.c.b16 %v245, %v244
  %v338 = vpack.c.b16 %v247, %v246
  %v339 = vpack.c.b16 %v249, %v248
  %v340 = vpack.c.b16 %v251, %v250
  %v341 = vpack.c.b16 %v253, %v252
  %v342 = vpack.c.b16 %v255, %v254
  %v343 = vpack.c.b16 %v257, %v256
  %v344 = vpack.c.b16 %v259, %v258
  %v345 = vpack.c.b16 %v261, %v260
  %v346 = vpack.c.b16 %v263, %v262
  %v347 = vpack.c.b16 %v265, %v264
  %v348 = vpack.c.b16 %v267, %v266
  %v349 = vpack.c.b16 %v269, %v268
  %v350 = vpack.c.b16 %v271, %v270
  %v351 = vpack.c.b16 %v273, %v272
  %v352 = vpack.c.b16 %v275, %v274
  %v353 = vpack.c.b16 %v277, %v276
  %v354 = vpack.c.b16 %v279, %v278
  %v355 = vpack.c.b16 %v281, %v280
  %v356 = vpack.c.b16 %v283, %v282
  %v357 = vpack.c.b16 %v285, %v284
  %v358 = vpack.c.b16 %v287, %v286
  %v359 = vpack.c.b16 %v289, %v288
  %v360 = vpack.c.b16 %v291, %v290
  %v361 = vpack.c.b16 %v293, %v292
  %v362 = vpack.c.b16 %v295, %v294
  %v363 = vpack.c.b16 %v297, %v296
  %v364 = vpack.c.b16 %v299, %v298
  %v365 = vpack.c.b16 %v301, %v300
  %v366 = vpack.c.b16 %v303, %v302
  %v367 = vpack.c.b16 %v305, %v304
  %v368 = vpack.c.b16 %v307, %v306
  %v369 = vpack.c.b16 %v309, %v308
  %v370 = vpack.c.b16 %v311, %v310
  %v371 = vpack.c.b16 %v313, %v312
  %v372 = vpack.c.b16 %v315, %v314
  %v373 = vpack.c.b16 %v317, %v316
  %v374 = vpack.c.b16 %v319, %v318
  %v375 = vpack.c.b16 %v321, %v320
  %v376 = vpack.c.b16 %v323, %v322
  %v377 = vpack.c.b16 %v325, %v324
  %v378 = vpack.c.b16 %v327, %v326
  %v379 = vpack.c.b16 %v329, %v328
  %v380 = vpack.c.b16 %v331, %v330
  %v381 = vpack.c.b16 %v333, %v332
  %430 = vmatprep.subr.bf16.mxu0 0
  %431 = vmatpush1.bf16.msra.mxu0 %v334
  %432 = vmatprep.subr.bf16.mxu0 0
  %433 = vmatpush1.bf16.msra.mxu0 %v335
  %434 = vmatprep.subr.bf16.mxu0 0
  %435 = vmatpush1.bf16.msra.mxu0 %v336
  %436 = vmatprep.subr.bf16.mxu0 0
  %437 = vmatpush1.bf16.msra.mxu0 %v337
  %438 = vmatprep.subr.bf16.mxu0 0
  %439 = vmatpush1.bf16.msra.mxu0 %v338
  %440 = vmatprep.subr.bf16.mxu0 0
  %441 = vmatpush1.bf16.msra.mxu0 %v339
  %442 = vmatprep.subr.bf16.mxu0 0
  %443 = vmatpush1.bf16.msra.mxu0 %v340
  %444 = vmatprep.subr.bf16.mxu0 0
  %445 = vmatpush1.bf16.msra.mxu0 %v341
  %446 = vmatprep.subr.bf16.mxu0 0
  %447 = vmatpush1.bf16.msra.mxu0 %v342
  %448 = vmatprep.subr.bf16.mxu0 0
  %449 = vmatpush1.bf16.msra.mxu0 %v343
  %450 = vmatprep.subr.bf16.mxu0 0
  %451 = vmatpush1.bf16.msra.mxu0 %v344
  %452 = vmatprep.subr.bf16.mxu0 0
  %453 = vmatpush1.bf16.msra.mxu0 %v345
  %454 = vmatprep.subr.bf16.mxu0 0
  %455 = vmatpush1.bf16.msra.mxu0 %v346
  %456 = vmatprep.subr.bf16.mxu0 0
  %457 = vmatpush1.bf16.msra.mxu0 %v347
  %458 = vmatprep.subr.bf16.mxu0 0
  %459 = vmatpush1.bf16.msra.mxu0 %v348
  %460 = vmatprep.subr.bf16.mxu0 0
  %461 = vmatpush1.bf16.msra.mxu0 %v349
  %462 = vmatprep.mubr.bf16.mxu0 %v131
  %463 = vmatmul.mubr.bf16.gmra.mrb[0].mxu0 %v130
  %v464 = vpop.f32.mrb[0].mxu0
  %v465 = vadd.f32 %v119, %v464
  %v466 = vpop.f32.mrb[0].mxu0
  %v467 = vpop.f32.mrb[0].mxu0
  %v468 = vpop.f32.mrb[0].mxu0
  %469 = vdwg.mxu0
  %470 = vmatprep.subr.bf16.mxu0 0
  %471 = vmatpush1.bf16.msra.mxu0 %v350
  %472 = vmatprep.subr.bf16.mxu0 0
  %473 = vmatpush1.bf16.msra.mxu0 %v351
  %474 = vmatprep.subr.bf16.mxu0 0
  %475 = vmatpush1.bf16.msra.mxu0 %v352
  %476 = vmatprep.subr.bf16.mxu0 0
  %477 = vmatpush1.bf16.msra.mxu0 %v353
  %478 = vmatprep.subr.bf16.mxu0 0
  %479 = vmatpush1.bf16.msra.mxu0 %v354
  %480 = vmatprep.subr.bf16.mxu0 0
  %481 = vmatpush1.bf16.msra.mxu0 %v355
  %482 = vmatprep.subr.bf16.mxu0 0
  %483 = vmatpush1.bf16.msra.mxu0 %v356
  %484 = vmatprep.subr.bf16.mxu0 0
  %485 = vmatpush1.bf16.msra.mxu0 %v357
  %486 = vmatprep.subr.bf16.mxu0 0
  %487 = vmatpush1.bf16.msra.mxu0 %v358
  %488 = vmatprep.subr.bf16.mxu0 0
  %489 = vmatpush1.bf16.msra.mxu0 %v359
  %490 = vmatprep.subr.bf16.mxu0 0
  %491 = vmatpush1.bf16.msra.mxu0 %v360
  %492 = vmatprep.subr.bf16.mxu0 0
  %493 = vmatpush1.bf16.msra.mxu0 %v361
  %494 = vmatprep.subr.bf16.mxu0 0
  %495 = vmatpush1.bf16.msra.mxu0 %v362
  %496 = vmatprep.subr.bf16.mxu0 0
  %497 = vmatpush1.bf16.msra.mxu0 %v363
  %498 = vmatprep.subr.bf16.mxu0 0
  %499 = vmatpush1.bf16.msra.mxu0 %v364
  %500 = vmatprep.subr.bf16.mxu0 0
  %501 = vmatpush1.bf16.msra.mxu0 %v365
  %502 = vmatprep.mubr.bf16.mxu0 %v133
  %503 = vmatmul.mubr.bf16.gmra.mrb[0].mxu0 %v132
  %v504 = vpop.f32.mrb[0].mxu0
  %v505 = vadd.f32 %v465, %v504
  %v506 = vpop.f32.mrb[0].mxu0
  %v507 = vpop.f32.mrb[0].mxu0
  %v508 = vpop.f32.mrb[0].mxu0
  %509 = vdwg.mxu0
  %510 = vmatprep.subr.bf16.mxu0 0
  %511 = vmatpush1.bf16.msra.mxu0 %v366
  %512 = vmatprep.subr.bf16.mxu0 0
  %513 = vmatpush1.bf16.msra.mxu0 %v367
  %514 = vmatprep.subr.bf16.mxu0 0
  %515 = vmatpush1.bf16.msra.mxu0 %v368
  %516 = vmatprep.subr.bf16.mxu0 0
  %517 = vmatpush1.bf16.msra.mxu0 %v369
  %518 = vmatprep.subr.bf16.mxu0 0
  %519 = vmatpush1.bf16.msra.mxu0 %v370
  %520 = vmatprep.subr.bf16.mxu0 0
  %521 = vmatpush1.bf16.msra.mxu0 %v371
  %522 = vmatprep.subr.bf16.mxu0 0
  %523 = vmatpush1.bf16.msra.mxu0 %v372
  %524 = vmatprep.subr.bf16.mxu0 0
  %525 = vmatpush1.bf16.msra.mxu0 %v373
  %526 = vmatprep.subr.bf16.mxu0 0
  %527 = vmatpush1.bf16.msra.mxu0 %v374
  %528 = vmatprep.subr.bf16.mxu0 0
  %529 = vmatpush1.bf16.msra.mxu0 %v375
  %530 = vmatprep.subr.bf16.mxu0 0
  %531 = vmatpush1.bf16.msra.mxu0 %v376
  %532 = vmatprep.subr.bf16.mxu0 0
  %533 = vmatpush1.bf16.msra.mxu0 %v377
  %534 = vmatprep.subr.bf16.mxu0 0
  %535 = vmatpush1.bf16.msra.mxu0 %v378
  %536 = vmatprep.subr.bf16.mxu0 0
  %537 = vmatpush1.bf16.msra.mxu0 %v379
  %538 = vmatprep.subr.bf16.mxu0 0
  %539 = vmatpush1.bf16.msra.mxu0 %v380
  %540 = vmatprep.subr.bf16.mxu0 0
  %541 = vmatpush1.bf16.msra.mxu0 %v381
  %542 = vmatprep.mubr.bf16.mxu0 %v135
  %543 = vmatmul.mubr.bf16.gmra.mrb[0].mxu0 %v134
  %v544 = vpop.f32.mrb[0].mxu0
  %v545 = vadd.f32 %v505, %v544
  %v546 = vpop.f32.mrb[0].mxu0
  %v547 = vpop.f32.mrb[0].mxu0
  %v548 = vpop.f32.mrb[0].mxu0
  %549 = vdwg.mxu0
  %v550 = vpack.c.bf16 %v545, %v545
  %551 = vst [vmem:[%s3] sm:$0xf] %v550
  // Predicated region
  $region14: #{vit_forward.12} parent=0 // pred_check
    _
  $region15: #{vit_forward.12} parent=0 // pred_check_branch
    %553 = sbr.rel (0) target = $region17
  $region16: #{vit_forward.12} parent=0 // pred_region
    _
  $region17: #{vit_forward.12} parent=0 // pred_fallthru
    _
  // Predicated region
  $region18: #{vit_forward.12} parent=0 // pred_check
    _
  $region19: #{vit_forward.12} parent=0 // pred_check_branch
    %555 = sbr.rel (0) target = $region21
  $region20: #{vit_forward.12} parent=0 // pred_region
    _
  $region21: #{vit_forward.12} parent=0 // pred_fallthru
    _

// kernel: vit_forward.17
$region0: #{vit_forward.17}
  #allocation0 [shape = 'u32[]', space=smem, size = 0x4, offset = 0x4, fixed_abs, tag = 'smem constant byte address 0x4 - core index']
  #allocation1 [shape = 'u32[144,128]{1,0:T(1,128)}', space=vmem, size = 0x12000, scoped, tag = 'internal scratch']
  %s0 = inlined_call_operand.vmem [shape: bf16[16,256], index: 0, kind: input, shape index: {}]
  %s1 = inlined_call_operand.vmem [shape: bf16[256,128], index: 1, kind: input, shape index: {}]
  %s2 = inlined_call_operand.vmem [shape: f32[1,128], index: 2, kind: input, shape index: {}]
  %s3 = inlined_call_operand.vmem [shape: bf16[16,128], index: 3, kind: input, shape index: {}]
  %s4 = inlined_call_operand.vmem [shape: bf16[16,128], index: 4, kind: output, shape index: {}]
  %s5 = sld [smem:[#allocation0]]
  $region26: #{vit_forward.17} parent=0
    _
  %s7 = ssub.s32 1, %s5
  %s8 = scalar_select 0, %s7, %s5
  // Predicated region
  $region2: #{vit_forward.17} parent=0 // pred_check
    _
  $region3: #{vit_forward.17} parent=0 // pred_check_branch
    %10 = sbr.rel (0) target = $region5
  $region4: #{vit_forward.17} parent=0 // pred_region
    _
  $region5: #{vit_forward.17} parent=0 // pred_fallthru
    _
  // Predicated region
  $region6: #{vit_forward.17} parent=0 // pred_check
    _
  $region7: #{vit_forward.17} parent=0 // pred_check_branch
    %12 = sbr.rel (0) target = $region9
  $region8: #{vit_forward.17} parent=0 // pred_region
    _
  $region9: #{vit_forward.17} parent=0 // pred_fallthru
    _
  // Predicated region
  $region10: #{vit_forward.17} parent=0 // pred_check
    _
  $region11: #{vit_forward.17} parent=0 // pred_check_branch
    %14 = sbr.rel (0) target = $region13
  $region12: #{vit_forward.17} parent=0 // pred_region
    _
  $region13: #{vit_forward.17} parent=0 // pred_fallthru
    _
  // Predicated region
  $region14: #{vit_forward.17} parent=0 // pred_check
    _
  $region15: #{vit_forward.17} parent=0 // pred_check_branch
    %16 = sbr.rel (0) target = $region17
  $region16: #{vit_forward.17} parent=0 // pred_region
    _
  $region17: #{vit_forward.17} parent=0 // pred_fallthru
    _
  %v18 = vld [vmem:[%s0] sm:$0xff]
  %v19 = vld [vmem:[%s0 + $0x8] sm:$0xff]
  %v20 = vld [vmem:[%s1] sm:$0xf]
  %v21 = vld [vmem:[%s1 + $0x4] sm:$0xf]
  %v22 = vld [vmem:[%s1 + $0x8] sm:$0xf]
  %v23 = vld [vmem:[%s1 + $0xc] sm:$0xf]
  %v24 = vld [vmem:[%s1 + $0x10] sm:$0xf]
  %v25 = vld [vmem:[%s1 + $0x14] sm:$0xf]
  %v26 = vld [vmem:[%s1 + $0x18] sm:$0xf]
  %v27 = vld [vmem:[%s1 + $0x1c] sm:$0xf]
  %v28 = vld [vmem:[%s1 + $0x20] sm:$0xf]
  %v29 = vld [vmem:[%s1 + $0x24] sm:$0xf]
  %v30 = vld [vmem:[%s1 + $0x28] sm:$0xf]
  %v31 = vld [vmem:[%s1 + $0x2c] sm:$0xf]
  %v32 = vld [vmem:[%s1 + $0x30] sm:$0xf]
  %v33 = vld [vmem:[%s1 + $0x34] sm:$0xf]
  %v34 = vld [vmem:[%s1 + $0x38] sm:$0xf]
  %v35 = vld [vmem:[%s1 + $0x3c] sm:$0xf]
  %v36 = vld [vmem:[%s1 + $0x40] sm:$0xf]
  %v37 = vld [vmem:[%s1 + $0x44] sm:$0xf]
  %v38 = vld [vmem:[%s1 + $0x48] sm:$0xf]
  %v39 = vld [vmem:[%s1 + $0x4c] sm:$0xf]
  %v40 = vld [vmem:[%s1 + $0x50] sm:$0xf]
  %v41 = vld [vmem:[%s1 + $0x54] sm:$0xf]
  %v42 = vld [vmem:[%s1 + $0x58] sm:$0xf]
  %v43 = vld [vmem:[%s1 + $0x5c] sm:$0xf]
  %v44 = vld [vmem:[%s1 + $0x60] sm:$0xf]
  %v45 = vld [vmem:[%s1 + $0x64] sm:$0xf]
  %v46 = vld [vmem:[%s1 + $0x68] sm:$0xf]
  %v47 = vld [vmem:[%s1 + $0x6c] sm:$0xf]
  %v48 = vld [vmem:[%s1 + $0x70] sm:$0xf]
  %v49 = vld [vmem:[%s1 + $0x74] sm:$0xf]
  %v50 = vld [vmem:[%s1 + $0x78] sm:$0xf]
  %v51 = vld [vmem:[%s1 + $0x7c] sm:$0xf]
  %v52 = vld [vmem:[%s2] sm:$0x1]
  %v54 = vlaneseq
  %v55 = vshrl.u32 %v54, 7
  %v56 = vsub.s32 0, %v55
  %v57 = vrot.slane %v52, %v56
  %v61 = vunpack.c.l.b16 %v18
  %v62 = vunpack.c.h.b16 %v18
  %v63 = vunpack.c.l.b16 %v19
  %v64 = vunpack.c.h.b16 %v19
  %v65 = vpack.c.b16 %v63, %v61
  %v66 = vpack.c.b16 %v64, %v62
  %v101 = vunpack.c.l.b16 %v20
  %v102 = vunpack.c.l.b16 %v21
  %v103 = vunpack.c.l.b16 %v22
  %v104 = vunpack.c.l.b16 %v23
  %v105 = vunpack.c.l.b16 %v24
  %v106 = vunpack.c.l.b16 %v25
  %v107 = vunpack.c.l.b16 %v26
  %v108 = vunpack.c.l.b16 %v27
  %v109 = vunpack.c.l.b16 %v28
  %v110 = vunpack.c.l.b16 %v29
  %v111 = vunpack.c.l.b16 %v30
  %v112 = vunpack.c.l.b16 %v31
  %v113 = vunpack.c.l.b16 %v32
  %v114 = vunpack.c.l.b16 %v33
  %v115 = vunpack.c.l.b16 %v34
  %v116 = vunpack.c.l.b16 %v35
  %v117 = vunpack.c.l.b16 %v36
  %v118 = vunpack.c.l.b16 %v37
  %v119 = vunpack.c.l.b16 %v38
  %v120 = vunpack.c.l.b16 %v39
  %v121 = vunpack.c.l.b16 %v40
  %v122 = vunpack.c.l.b16 %v41
  %v123 = vunpack.c.l.b16 %v42
  %v124 = vunpack.c.l.b16 %v43
  %v125 = vunpack.c.l.b16 %v44
  %v126 = vunpack.c.l.b16 %v45
  %v127 = vunpack.c.l.b16 %v46
  %v128 = vunpack.c.l.b16 %v47
  %v129 = vunpack.c.l.b16 %v48
  %v130 = vunpack.c.l.b16 %v49
  %v131 = vunpack.c.l.b16 %v50
  %v132 = vunpack.c.l.b16 %v51
  %v133 = vpack.c.b16 %v102, %v101
  %v134 = vpack.c.b16 %v104, %v103
  %v135 = vpack.c.b16 %v106, %v105
  %v136 = vpack.c.b16 %v108, %v107
  %v137 = vpack.c.b16 %v110, %v109
  %v138 = vpack.c.b16 %v112, %v111
  %v139 = vpack.c.b16 %v114, %v113
  %v140 = vpack.c.b16 %v116, %v115
  %v141 = vpack.c.b16 %v118, %v117
  %v142 = vpack.c.b16 %v120, %v119
  %v143 = vpack.c.b16 %v122, %v121
  %v144 = vpack.c.b16 %v124, %v123
  %v145 = vpack.c.b16 %v126, %v125
  %v146 = vpack.c.b16 %v128, %v127
  %v147 = vpack.c.b16 %v130, %v129
  %v148 = vpack.c.b16 %v132, %v131
  %165 = vmatprep.subr.bf16.mxu0 0
  %166 = vmatpush1.bf16.msra.mxu0 %v133
  %167 = vmatprep.subr.bf16.mxu0 0
  %168 = vmatpush1.bf16.msra.mxu0 %v134
  %169 = vmatprep.subr.bf16.mxu0 0
  %170 = vmatpush1.bf16.msra.mxu0 %v135
  %171 = vmatprep.subr.bf16.mxu0 0
  %172 = vmatpush1.bf16.msra.mxu0 %v136
  %173 = vmatprep.subr.bf16.mxu0 0
  %174 = vmatpush1.bf16.msra.mxu0 %v137
  %175 = vmatprep.subr.bf16.mxu0 0
  %176 = vmatpush1.bf16.msra.mxu0 %v138
  %177 = vmatprep.subr.bf16.mxu0 0
  %178 = vmatpush1.bf16.msra.mxu0 %v139
  %179 = vmatprep.subr.bf16.mxu0 0
  %180 = vmatpush1.bf16.msra.mxu0 %v140
  %181 = vmatprep.subr.bf16.mxu0 0
  %182 = vmatpush1.bf16.msra.mxu0 %v141
  %183 = vmatprep.subr.bf16.mxu0 0
  %184 = vmatpush1.bf16.msra.mxu0 %v142
  %185 = vmatprep.subr.bf16.mxu0 0
  %186 = vmatpush1.bf16.msra.mxu0 %v143
  %187 = vmatprep.subr.bf16.mxu0 0
  %188 = vmatpush1.bf16.msra.mxu0 %v144
  %189 = vmatprep.subr.bf16.mxu0 0
  %190 = vmatpush1.bf16.msra.mxu0 %v145
  %191 = vmatprep.subr.bf16.mxu0 0
  %192 = vmatpush1.bf16.msra.mxu0 %v146
  %193 = vmatprep.subr.bf16.mxu0 0
  %194 = vmatpush1.bf16.msra.mxu0 %v147
  %195 = vmatprep.subr.bf16.mxu0 0
  %196 = vmatpush1.bf16.msra.mxu0 %v148
  %197 = vmatprep.mubr.bf16.mxu0 %v66
  %198 = vmatmul.mubr.bf16.gmra.mrb[0].mxu0 %v65
  %v199 = vpop.f32.mrb[0].mxu0
  %v200 = vadd.f32 %v57, %v199
  %v201 = vpop.f32.mrb[0].mxu0
  %v202 = vpop.f32.mrb[0].mxu0
  %v203 = vadd.f32 %v57, %v202
  %v204 = vpop.f32.mrb[0].mxu0
  %205 = vdwg.mxu0
  %v206 = vld [vmem:[%s3] sm:$0xf]
  %v207 = vld [vmem:[%s3 + $0x4] sm:$0xf]
  %v208 = vunpack.c.l.bf16 %v206
  %v209 = vunpack.c.l.bf16 %v207
  %v210 = vadd.f32 %v200, %v208
  %v211 = vadd.f32 %v203, %v209
  %v212 = vpack.c.bf16 %v211, %v210
  %v214 = vunpack.c.l.b16 %v212
  %v215 = vunpack.c.h.b16 %v212
  %v216 = vpack.c.b16 %v214, %v214
  %v217 = vpack.c.b16 %v215, %v215
  %220 = vst [vmem:[%s4] sm:$0xf] %v216
  %221 = vst [vmem:[%s4 + $0x4] sm:$0xf] %v217
  // Predicated region
  $region18: #{vit_forward.17} parent=0 // pred_check
    _
  $region19: #{vit_forward.17} parent=0 // pred_check_branch
    %223 = sbr.rel (0) target = $region21
  $region20: #{vit_forward.17} parent=0 // pred_region
    _
  $region21: #{vit_forward.17} parent=0 // pred_fallthru
    _
  // Predicated region
  $region22: #{vit_forward.17} parent=0 // pred_check
    _
  $region23: #{vit_forward.17} parent=0 // pred_check_branch
    %225 = sbr.rel (0) target = $region25
  $region24: #{vit_forward.17} parent=0 // pred_region
    _
  $region25: #{vit_forward.17} parent=0 // pred_fallthru
    _

// kernel: vit_forward.16
$region0: #{vit_forward.16}
  #allocation0 [shape = 'u32[]', space=smem, size = 0x4, offset = 0x4, fixed_abs, tag = 'smem constant byte address 0x4 - core index']
  #allocation1 [shape = 'u32[144,128]{1,0:T(1,128)}', space=vmem, size = 0x12000, scoped, tag = 'internal scratch']
  #allocation2 [shape = 'bf16[16,128]{1,0:T(16,128)(2,1)}', space=vmem, size = 0x1000, scoped, tag = 'scratch operand']
  %s0 = inlined_call_operand.vmem [shape: bf16[16,128], index: 0, kind: input, shape index: {}]
  %s1 = inlined_call_operand.vmem [shape: f32[1,128], index: 1, kind: input, shape index: {}]
  %s2 = inlined_call_operand.vmem [shape: f32[1,128], index: 2, kind: input, shape index: {}]
  %s3 = inlined_call_operand.vmem [shape: bf16[128,256], index: 3, kind: input, shape index: {}]
  %s4 = inlined_call_operand.vmem [shape: f32[1,256], index: 4, kind: input, shape index: {}]
  %s5 = inlined_call_operand.vmem [shape: bf16[16,256], index: 5, kind: output, shape index: {}]
  %s6 = sld [smem:[#allocation0]]
  $region34: #{vit_forward.16} parent=0
    _
  %s8 = ssub.s32 1, %s6
  %s9 = scalar_select 0, %s8, %s6
  // Predicated region
  $region2: #{vit_forward.16} parent=0 // pred_check
    _
  $region3: #{vit_forward.16} parent=0 // pred_check_branch
    %11 = sbr.rel (0) target = $region5
  $region4: #{vit_forward.16} parent=0 // pred_region
    _
  $region5: #{vit_forward.16} parent=0 // pred_fallthru
    _
  // Predicated region
  $region6: #{vit_forward.16} parent=0 // pred_check
    _
  $region7: #{vit_forward.16} parent=0 // pred_check_branch
    %13 = sbr.rel (0) target = $region9
  $region8: #{vit_forward.16} parent=0 // pred_region
    _
  $region9: #{vit_forward.16} parent=0 // pred_fallthru
    _
  // Predicated region
  $region10: #{vit_forward.16} parent=0 // pred_check
    _
  $region11: #{vit_forward.16} parent=0 // pred_check_branch
    %15 = sbr.rel (0) target = $region13
  $region12: #{vit_forward.16} parent=0 // pred_region
    _
  $region13: #{vit_forward.16} parent=0 // pred_fallthru
    _
  // Predicated region
  $region14: #{vit_forward.16} parent=0 // pred_check
    _
  $region15: #{vit_forward.16} parent=0 // pred_check_branch
    %17 = sbr.rel (0) target = $region17
  $region16: #{vit_forward.16} parent=0 // pred_region
    _
  $region17: #{vit_forward.16} parent=0 // pred_fallthru
    _
  // Predicated region
  $region18: #{vit_forward.16} parent=0 // pred_check
    _
  $region19: #{vit_forward.16} parent=0 // pred_check_branch
    %19 = sbr.rel (0) target = $region21
  $region20: #{vit_forward.16} parent=0 // pred_region
    _
  $region21: #{vit_forward.16} parent=0 // pred_fallthru
    _
  %p21 = scmp.eq.s32.totalorder 0, 0
  // Predicated region
  $region22: #{vit_forward.16} parent=0 // pred_check
    %p22 = pneg %p21
  $region23: #{vit_forward.16} parent=0 // pred_check_branch
    %24 = sbr.rel (%p22) target = $region25
  $region24: #{vit_forward.16} parent=0 // pred_region
    %v25 = vld [vmem:[%s0] sm:$0xf]
    %v26 = vld [vmem:[%s0 + $0x4] sm:$0xf]
    %v27 = vunpack.c.l.bf16 %v25
    %v28 = vunpack.c.l.bf16 %v26
    %29 = vadd.xlane.f32.xlu0 %v27
    %v30 = vpop.xlane.xlu0 %29
    %31 = vadd.xlane.f32.xlu0 %v28
    %v32 = vpop.xlane.xlu0 %31
    %v33 = vrcp.pop 128.0
    %v34 = vmul.f32 %v30, %v33
    %v35 = vmul.f32 %v32, %v33
    %v36 = vsub.f32 %v27, %v34
    %v37 = vsub.f32 %v28, %v35
    %v38 = vmul.f32 %v36, %v36
    %v39 = vmul.f32 %v37, %v37
    %40 = vadd.xlane.f32.xlu0 %v38
    %v41 = vpop.xlane.xlu0 %40
    %42 = vadd.xlane.f32.xlu0 %v39
    %v43 = vpop.xlane.xlu0 %42
    %v44 = vmul.f32 %v41, %v33
    %v45 = vmul.f32 %v43, %v33
    %v46 = vadd.f32 %v44, 1e-06
    %v47 = vadd.f32 %v45, 1e-06
    %v48 = vrsqrt.pop %v46
    %v49 = vrsqrt.pop %v47
    %v50 = vmul.f32 %v36, %v48
    %v51 = vmul.f32 %v37, %v49
    %v52 = vld [vmem:[%s1] sm:$0x1]
    %v54 = vlaneseq
    %v55 = vshrl.u32 %v54, 7
    %v56 = vsub.s32 0, %v55
    %v57 = vrot.slane %v52, %v56
    %v59 = vmul.f32 %v50, %v57
    %v60 = vmul.f32 %v51, %v57
    %v61 = vld [vmem:[%s2] sm:$0x1]
    %v63 = vlaneseq
    %v64 = vshrl.u32 %v63, 7
    %v65 = vsub.s32 0, %v64
    %v66 = vrot.slane %v61, %v65
    %v68 = vadd.f32 %v59, %v66
    %v69 = vadd.f32 %v60, %v66
    %v70 = vpack.c.bf16 %v69, %v68
    %71 = vst [vmem:[#allocation2] sm:$0xff] %v70
  $region25: #{vit_forward.16} parent=0 // pred_fallthru
    _
  %v72 = vld [vmem:[#allocation2] sm:$0xff]
  %v73 = vld [vmem:[%s3] sm:$0xff]
  %v74 = vld [vmem:[%s3 + $0x8] sm:$0xff]
  %v75 = vld [vmem:[%s3 + $0x10] sm:$0xff]
  %v76 = vld [vmem:[%s3 + $0x18] sm:$0xff]
  %v77 = vld [vmem:[%s3 + $0x20] sm:$0xff]
  %v78 = vld [vmem:[%s3 + $0x28] sm:$0xff]
  %v79 = vld [vmem:[%s3 + $0x30] sm:$0xff]
  %v80 = vld [vmem:[%s3 + $0x38] sm:$0xff]
  %v81 = vld [vmem:[%s3 + $0x40] sm:$0xff]
  %v82 = vld [vmem:[%s3 + $0x48] sm:$0xff]
  %v83 = vld [vmem:[%s3 + $0x50] sm:$0xff]
  %v84 = vld [vmem:[%s3 + $0x58] sm:$0xff]
  %v85 = vld [vmem:[%s3 + $0x60] sm:$0xff]
  %v86 = vld [vmem:[%s3 + $0x68] sm:$0xff]
  %v87 = vld [vmem:[%s3 + $0x70] sm:$0xff]
  %v88 = vld [vmem:[%s3 + $0x78] sm:$0xff]
  %v89 = vld [vmem:[%s4] sm:$0x3]
  %v91 = vlaneseq
  %v92 = vshrl.u32 %v91, 7
  %v93 = vsub.s32 0, %v92
  %v94 = vrot.slane %v89, %v93
  %v95 = vlaneseq
  %v96 = vshrl.u32 %v95, 7
  %v97 = vsub.s32 1, %v96
  %v98 = vrot.slane %v89, %v97
  %v117 = vunpack.c.l.b16 %v73
  %v118 = vunpack.c.h.b16 %v73
  %v119 = vunpack.c.l.b16 %v74
  %v120 = vunpack.c.h.b16 %v74
  %v121 = vunpack.c.l.b16 %v75
  %v122 = vunpack.c.h.b16 %v75
  %v123 = vunpack.c.l.b16 %v76
  %v124 = vunpack.c.h.b16 %v76
  %v125 = vunpack.c.l.b16 %v77
  %v126 = vunpack.c.h.b16 %v77
  %v127 = vunpack.c.l.b16 %v78
  %v128 = vunpack.c.h.b16 %v78
  %v129 = vunpack.c.l.b16 %v79
  %v130 = vunpack.c.h.b16 %v79
  %v131 = vunpack.c.l.b16 %v80
  %v132 = vunpack.c.h.b16 %v80
  %v133 = vunpack.c.l.b16 %v81
  %v134 = vunpack.c.h.b16 %v81
  %v135 = vunpack.c.l.b16 %v82
  %v136 = vunpack.c.h.b16 %v82
  %v137 = vunpack.c.l.b16 %v83
  %v138 = vunpack.c.h.b16 %v83
  %v139 = vunpack.c.l.b16 %v84
  %v140 = vunpack.c.h.b16 %v84
  %v141 = vunpack.c.l.b16 %v85
  %v142 = vunpack.c.h.b16 %v85
  %v143 = vunpack.c.l.b16 %v86
  %v144 = vunpack.c.h.b16 %v86
  %v145 = vunpack.c.l.b16 %v87
  %v146 = vunpack.c.h.b16 %v87
  %v147 = vunpack.c.l.b16 %v88
  %v148 = vunpack.c.h.b16 %v88
  %v149 = vpack.c.b16 %v119, %v117
  %v150 = vpack.c.b16 %v120, %v118
  %v151 = vpack.c.b16 %v123, %v121
  %v152 = vpack.c.b16 %v124, %v122
  %v153 = vpack.c.b16 %v127, %v125
  %v154 = vpack.c.b16 %v128, %v126
  %v155 = vpack.c.b16 %v131, %v129
  %v156 = vpack.c.b16 %v132, %v130
  %v157 = vpack.c.b16 %v135, %v133
  %v158 = vpack.c.b16 %v136, %v134
  %v159 = vpack.c.b16 %v139, %v137
  %v160 = vpack.c.b16 %v140, %v138
  %v161 = vpack.c.b16 %v143, %v141
  %v162 = vpack.c.b16 %v144, %v142
  %v163 = vpack.c.b16 %v147, %v145
  %v164 = vpack.c.b16 %v148, %v146
  %181 = vmatprep.subr.bf16.mxu0 %v150
  %182 = vmatpush1.bf16.msra.mxu0 %v149
  %183 = vmatprep.subr.bf16.mxu0 %v152
  %184 = vmatpush1.bf16.msra.mxu0 %v151
  %185 = vmatprep.subr.bf16.mxu0 %v154
  %186 = vmatpush1.bf16.msra.mxu0 %v153
  %187 = vmatprep.subr.bf16.mxu0 %v156
  %188 = vmatpush1.bf16.msra.mxu0 %v155
  %189 = vmatprep.subr.bf16.mxu0 %v158
  %190 = vmatpush1.bf16.msra.mxu0 %v157
  %191 = vmatprep.subr.bf16.mxu0 %v160
  %192 = vmatpush1.bf16.msra.mxu0 %v159
  %193 = vmatprep.subr.bf16.mxu0 %v162
  %194 = vmatpush1.bf16.msra.mxu0 %v161
  %195 = vmatprep.subr.bf16.mxu0 %v164
  %196 = vmatpush1.bf16.msra.mxu0 %v163
  %197 = vmatprep.subr.bf16.mxu0 0
  %198 = vmatpush1.bf16.msra.mxu0 0
  %199 = vmatprep.subr.bf16.mxu0 0
  %200 = vmatpush1.bf16.msra.mxu0 0
  %201 = vmatprep.subr.bf16.mxu0 0
  %202 = vmatpush1.bf16.msra.mxu0 0
  %203 = vmatprep.subr.bf16.mxu0 0
  %204 = vmatpush1.bf16.msra.mxu0 0
  %205 = vmatprep.subr.bf16.mxu0 0
  %206 = vmatpush1.bf16.msra.mxu0 0
  %207 = vmatprep.subr.bf16.mxu0 0
  %208 = vmatpush1.bf16.msra.mxu0 0
  %209 = vmatprep.subr.bf16.mxu0 0
  %210 = vmatpush1.bf16.msra.mxu0 0
  %211 = vmatprep.subr.bf16.mxu0 0
  %212 = vmatpush1.bf16.msra.mxu0 0
  %213 = vmatprep.mubr.bf16.mxu0 0
  %214 = vmatmul.mubr.bf16.gmra.mrb[0].mxu0 %v72
  %v215 = vpop.f32.mrb[0].mxu0
  %v216 = vadd.f32 %v94, %v215
  %v217 = vpop.f32.mrb[0].mxu0
  %v218 = vadd.f32 %v98, %v217
  %v219 = vpop.f32.mrb[0].mxu0
  %v220 = vadd.f32 %v94, %v219
  %v221 = vpop.f32.mrb[0].mxu0
  %v222 = vadd.f32 %v98, %v221
  %223 = vdwg.mxu0
  %v224 = vmul.f32 %v216, 0.5
  %v225 = vmul.f32 %v218, 0.5
  %v226 = vmul.f32 %v220, 0.5
  %v227 = vmul.f32 %v222, 0.5
  %v228 = vmul.f32 %v216, 0.044715
  %v229 = vmul.f32 %v218, 0.044715
  %v230 = vmul.f32 %v220, 0.044715
  %v231 = vmul.f32 %v222, 0.044715
  %v232 = vmul.f32 %v228, %v216
  %v233 = vmul.f32 %v229, %v218
  %v234 = vmul.f32 %v230, %v220
  %v235 = vmul.f32 %v231, %v222
  %v236 = vmul.f32 %v232, %v216
  %v237 = vmul.f32 %v233, %v218
  %v238 = vmul.f32 %v234, %v220
  %v239 = vmul.f32 %v235, %v222
  %v240 = vadd.f32 %v216, %v236
  %v241 = vadd.f32 %v218, %v237
  %v242 = vadd.f32 %v220, %v238
  %v243 = vadd.f32 %v222, %v239
  %v244 = vmul.f32 %v240, 0.7978846
  %v245 = vmul.f32 %v241, 0.7978846
  %v246 = vmul.f32 %v242, 0.7978846
  %v247 = vmul.f32 %v243, 0.7978846
  %v248 = vtanh.pop %v244
  %v249 = vtanh.pop %v245
  %v250 = vtanh.pop %v246
  %v251 = vtanh.pop %v247
  %v252 = vadd.f32 %v248, 1.0
  %v253 = vadd.f32 %v249, 1.0
  %v254 = vadd.f32 %v250, 1.0
  %v255 = vadd.f32 %v251, 1.0
  %v256 = vmul.f32 %v224, %v252
  %v257 = vmul.f32 %v225, %v253
  %v258 = vmul.f32 %v226, %v254
  %v259 = vmul.f32 %v227, %v255
  %v260 = vpack.c.bf16 %v258, %v256
  %v261 = vpack.c.bf16 %v259, %v257
  %v264 = vunpack.c.l.b16 %v260
  %v265 = vunpack.c.l.b16 %v261
  %v266 = vunpack.c.h.b16 %v260
  %v267 = vunpack.c.h.b16 %v261
  %v268 = vpack.c.b16 %v265, %v264
  %v269 = vpack.c.b16 %v267, %v266
  %272 = vst [vmem:[%s5] sm:$0xff] %v268
  %273 = vst [vmem:[%s5 + $0x8] sm:$0xff] %v269
  // Predicated region
  $region26: #{vit_forward.16} parent=0 // pred_check
    _
  $region27: #{vit_forward.16} parent=0 // pred_check_branch
    %275 = sbr.rel (0) target = $region29
  $region28: #{vit_forward.16} parent=0 // pred_region
    _
  $region29: #{vit_forward.16} parent=0 // pred_fallthru
    _
  // Predicated region
  $region30: #{vit_forward.16} parent=0 // pred_check
    _
  $region31: #{vit_forward.16} parent=0 // pred_check_branch
    %277 = sbr.rel (0) target = $region33
  $region32: #{vit_forward.16} parent=0 // pred_region
    _
  $region33: #{vit_forward.16} parent=0 // pred_fallthru
    _

// kernel: vit_forward.23
$region0: #{vit_forward.23}
  #allocation0 [shape = 'u32[]', space=smem, size = 0x4, offset = 0x4, fixed_abs, tag = 'smem constant byte address 0x4 - core index']
  #allocation1 [shape = 'u32[144,128]{1,0:T(1,128)}', space=vmem, size = 0x12000, scoped, tag = 'internal scratch']
  #allocation2 [shape = 'bf16[8,128]{1,0:T(8,128)(2,1)}', space=vmem, size = 0x800, scoped, tag = 'scratch operand']
  %s0 = inlined_call_operand.vmem [shape: bf16[8,128], index: 0, kind: input, shape index: {}]
  %s1 = inlined_call_operand.vmem [shape: f32[1,128], index: 1, kind: input, shape index: {}]
  %s2 = inlined_call_operand.vmem [shape: f32[1,128], index: 2, kind: input, shape index: {}]
  %s3 = inlined_call_operand.vmem [shape: bf16[128,128], index: 3, kind: input, shape index: {}]
  %s4 = inlined_call_operand.vmem [shape: f32[1,128], index: 4, kind: input, shape index: {}]
  %s5 = inlined_call_operand.vmem [shape: f32[8,128], index: 5, kind: output, shape index: {}]
  %s6 = sld [smem:[#allocation0]]
  $region34: #{vit_forward.23} parent=0
    _
  %s8 = ssub.s32 1, %s6
  %s9 = scalar_select 0, %s8, %s6
  // Predicated region
  $region2: #{vit_forward.23} parent=0 // pred_check
    _
  $region3: #{vit_forward.23} parent=0 // pred_check_branch
    %11 = sbr.rel (0) target = $region5
  $region4: #{vit_forward.23} parent=0 // pred_region
    _
  $region5: #{vit_forward.23} parent=0 // pred_fallthru
    _
  // Predicated region
  $region6: #{vit_forward.23} parent=0 // pred_check
    _
  $region7: #{vit_forward.23} parent=0 // pred_check_branch
    %13 = sbr.rel (0) target = $region9
  $region8: #{vit_forward.23} parent=0 // pred_region
    _
  $region9: #{vit_forward.23} parent=0 // pred_fallthru
    _
  // Predicated region
  $region10: #{vit_forward.23} parent=0 // pred_check
    _
  $region11: #{vit_forward.23} parent=0 // pred_check_branch
    %15 = sbr.rel (0) target = $region13
  $region12: #{vit_forward.23} parent=0 // pred_region
    _
  $region13: #{vit_forward.23} parent=0 // pred_fallthru
    _
  // Predicated region
  $region14: #{vit_forward.23} parent=0 // pred_check
    _
  $region15: #{vit_forward.23} parent=0 // pred_check_branch
    %17 = sbr.rel (0) target = $region17
  $region16: #{vit_forward.23} parent=0 // pred_region
    _
  $region17: #{vit_forward.23} parent=0 // pred_fallthru
    _
  // Predicated region
  $region18: #{vit_forward.23} parent=0 // pred_check
    _
  $region19: #{vit_forward.23} parent=0 // pred_check_branch
    %19 = sbr.rel (0) target = $region21
  $region20: #{vit_forward.23} parent=0 // pred_region
    _
  $region21: #{vit_forward.23} parent=0 // pred_fallthru
    _
  %p21 = scmp.eq.s32.totalorder 0, 0
  // Predicated region
  $region22: #{vit_forward.23} parent=0 // pred_check
    %p22 = pneg %p21
  $region23: #{vit_forward.23} parent=0 // pred_check_branch
    %24 = sbr.rel (%p22) target = $region25
  $region24: #{vit_forward.23} parent=0 // pred_region
    %v25 = vld [vmem:[%s0] sm:$0xf]
    %v26 = vunpack.c.l.bf16 %v25
    %27 = vadd.xlane.f32.xlu0 %v26
    %v28 = vpop.xlane.xlu0 %27
    %v29 = vrcp.pop 128.0
    %v30 = vmul.f32 %v28, %v29
    %v31 = vsub.f32 %v26, %v30
    %v32 = vmul.f32 %v31, %v31
    %33 = vadd.xlane.f32.xlu0 %v32
    %v34 = vpop.xlane.xlu0 %33
    %v35 = vmul.f32 %v34, %v29
    %v36 = vadd.f32 %v35, 1e-06
    %v37 = vrsqrt.pop %v36
    %v38 = vmul.f32 %v31, %v37
    %v39 = vld [vmem:[%s1] sm:$0x1]
    %v41 = vlaneseq
    %v42 = vshrl.u32 %v41, 7
    %v43 = vsub.s32 0, %v42
    %v44 = vrot.slane %v39, %v43
    %v46 = vmul.f32 %v38, %v44
    %v47 = vld [vmem:[%s2] sm:$0x1]
    %v49 = vlaneseq
    %v50 = vshrl.u32 %v49, 7
    %v51 = vsub.s32 0, %v50
    %v52 = vrot.slane %v47, %v51
    %v54 = vadd.f32 %v46, %v52
    %v55 = vpack.c.bf16 %v54, %v54
    %56 = vst [vmem:[#allocation2] sm:$0xf] %v55
  $region25: #{vit_forward.23} parent=0 // pred_fallthru
    _
  %v57 = vld [vmem:[#allocation2] sm:$0xf]
  %v58 = vld [vmem:[%s3] sm:$0xf]
  %v59 = vld [vmem:[%s3 + $0x4] sm:$0xf]
  %v60 = vld [vmem:[%s3 + $0x8] sm:$0xf]
  %v61 = vld [vmem:[%s3 + $0xc] sm:$0xf]
  %v62 = vld [vmem:[%s3 + $0x10] sm:$0xf]
  %v63 = vld [vmem:[%s3 + $0x14] sm:$0xf]
  %v64 = vld [vmem:[%s3 + $0x18] sm:$0xf]
  %v65 = vld [vmem:[%s3 + $0x1c] sm:$0xf]
  %v66 = vld [vmem:[%s3 + $0x20] sm:$0xf]
  %v67 = vld [vmem:[%s3 + $0x24] sm:$0xf]
  %v68 = vld [vmem:[%s3 + $0x28] sm:$0xf]
  %v69 = vld [vmem:[%s3 + $0x2c] sm:$0xf]
  %v70 = vld [vmem:[%s3 + $0x30] sm:$0xf]
  %v71 = vld [vmem:[%s3 + $0x34] sm:$0xf]
  %v72 = vld [vmem:[%s3 + $0x38] sm:$0xf]
  %v73 = vld [vmem:[%s3 + $0x3c] sm:$0xf]
  %v74 = vld [vmem:[%s4] sm:$0x1]
  %v76 = vlaneseq
  %v77 = vshrl.u32 %v76, 7
  %v78 = vsub.s32 0, %v77
  %v79 = vrot.slane %v74, %v78
  %v97 = vunpack.c.l.b16 %v58
  %v98 = vunpack.c.l.b16 %v59
  %v99 = vunpack.c.l.b16 %v60
  %v100 = vunpack.c.l.b16 %v61
  %v101 = vunpack.c.l.b16 %v62
  %v102 = vunpack.c.l.b16 %v63
  %v103 = vunpack.c.l.b16 %v64
  %v104 = vunpack.c.l.b16 %v65
  %v105 = vunpack.c.l.b16 %v66
  %v106 = vunpack.c.l.b16 %v67
  %v107 = vunpack.c.l.b16 %v68
  %v108 = vunpack.c.l.b16 %v69
  %v109 = vunpack.c.l.b16 %v70
  %v110 = vunpack.c.l.b16 %v71
  %v111 = vunpack.c.l.b16 %v72
  %v112 = vunpack.c.l.b16 %v73
  %v113 = vpack.c.b16 %v98, %v97
  %v114 = vpack.c.b16 %v100, %v99
  %v115 = vpack.c.b16 %v102, %v101
  %v116 = vpack.c.b16 %v104, %v103
  %v117 = vpack.c.b16 %v106, %v105
  %v118 = vpack.c.b16 %v108, %v107
  %v119 = vpack.c.b16 %v110, %v109
  %v120 = vpack.c.b16 %v112, %v111
  %129 = vmatprep.subr.bf16.mxu0 0
  %130 = vmatpush1.bf16.msra.mxu0 %v113
  %131 = vmatprep.subr.bf16.mxu0 0
  %132 = vmatpush1.bf16.msra.mxu0 %v114
  %133 = vmatprep.subr.bf16.mxu0 0
  %134 = vmatpush1.bf16.msra.mxu0 %v115
  %135 = vmatprep.subr.bf16.mxu0 0
  %136 = vmatpush1.bf16.msra.mxu0 %v116
  %137 = vmatprep.subr.bf16.mxu0 0
  %138 = vmatpush1.bf16.msra.mxu0 %v117
  %139 = vmatprep.subr.bf16.mxu0 0
  %140 = vmatpush1.bf16.msra.mxu0 %v118
  %141 = vmatprep.subr.bf16.mxu0 0
  %142 = vmatpush1.bf16.msra.mxu0 %v119
  %143 = vmatprep.subr.bf16.mxu0 0
  %144 = vmatpush1.bf16.msra.mxu0 %v120
  %145 = vmatprep.subr.bf16.mxu0 0
  %146 = vmatpush1.bf16.msra.mxu0 0
  %147 = vmatprep.subr.bf16.mxu0 0
  %148 = vmatpush1.bf16.msra.mxu0 0
  %149 = vmatprep.subr.bf16.mxu0 0
  %150 = vmatpush1.bf16.msra.mxu0 0
  %151 = vmatprep.subr.bf16.mxu0 0
  %152 = vmatpush1.bf16.msra.mxu0 0
  %153 = vmatprep.subr.bf16.mxu0 0
  %154 = vmatpush1.bf16.msra.mxu0 0
  %155 = vmatprep.subr.bf16.mxu0 0
  %156 = vmatpush1.bf16.msra.mxu0 0
  %157 = vmatprep.subr.bf16.mxu0 0
  %158 = vmatpush1.bf16.msra.mxu0 0
  %159 = vmatprep.subr.bf16.mxu0 0
  %160 = vmatpush1.bf16.msra.mxu0 0
  %161 = vmatprep.mubr.bf16.mxu0 0
  %162 = vmatmul.mubr.bf16.gmra.mrb[0].mxu0 %v57
  %v163 = vpop.f32.mrb[0].mxu0
  %v164 = vadd.f32 %v79, %v163
  %v165 = vpop.f32.mrb[0].mxu0
  %v166 = vpop.f32.mrb[0].mxu0
  %v167 = vpop.f32.mrb[0].mxu0
  %168 = vdwg.mxu0
  %169 = vst [vmem:[%s5] sm:$0xff] %v164
  // Predicated region
  $region26: #{vit_forward.23} parent=0 // pred_check
    _
  $region27: #{vit_forward.23} parent=0 // pred_check_branch
    %171 = sbr.rel (0) target = $region29
  $region28: #{vit_forward.23} parent=0 // pred_region
    _
  $region29: #{vit_forward.23} parent=0 // pred_fallthru
    _
  // Predicated region
  $region30: #{vit_forward.23} parent=0 // pred_check
    _
  $region31: #{vit_forward.23} parent=0 // pred_check_branch
    %173 = sbr.rel (0) target = $region33
  $region32: #{vit_forward.23} parent=0 // pred_region
    _
  $region33: #{vit_forward.23} parent=0 // pred_fallthru
    _

</llo_original>
